<compile_context>
chip_gen: v7x
topology: tpu7x:2x2x1
jax: 0.10.0
libtpu: 0.0.40
codegen_flags: <defaults>
</compile_context>

<pallas_src>
import jax
import jax.numpy as jnp
from jax.experimental import pallas as pl
from jax.experimental.pallas import tpu as pltpu

# ---------------- static configuration (small synthetic sizes) ----------------
D       = 32           # d_model == cif_hidden_size
H       = 4            # attention heads
DK      = D // H       # head dim
HDK     = H * DK       # fused head dim (== D)
FF      = 64           # per-layer feed-forward hidden
FF3     = 64           # decoders3 feed-forward hidden
K       = 5            # fsmn kernel size
T       = 8            # list_frame length (static chunk length)
TE      = 16           # encoder_out frames of this chunk
TKC     = 4            # cached key/value frames
LC      = 6            # cached fsmn frames (>= K-1)
LOOK_BACK_B  = 2
LOOK_BACK_DE = 4
LB      = LOOK_BACK_DE * LOOK_BACK_B   # saved key/value frames
NLAYERS = 2            # cached transformer layers
VOCAB   = 128
EPS     = 1e-5         # torch LayerNorm default eps
IDS_W   = 128          # lane-dense width of the argmax-id output slab

assert LB <= TE, "saved k/v frames must come entirely from the new chunk"

F32    = jnp.float32
MXU_DT = jnp.bfloat16  # MXU operand dtype (f32 accumulation); LN/softmax stay f32

# packed-slab geometry
KV_W   = NLAYERS * 2 * HDK     # 128: [k_l0 | v_l0 | k_l1 | v_l1] on lanes
WROWS  = 160                   # per-layer weight slab rows: wq(32) wo(32) w1(32) w2(64)
WLANES = 64
VROWS  = 24                    # per-layer vector slab rows (17 used, padded to 24)
FWROWS = 128                   # final weight slab rows: fw1(32) fw2(64) fow(32)
GROWS  = 16                    # global vector slab rows (10 used)


def _layernorm(x, g, b):
    mu = jnp.mean(x, axis=-1, keepdims=True)
    var = jnp.mean((x - mu) ** 2, axis=-1, keepdims=True)
    return (x - mu) * jax.lax.rsqrt(var + EPS) * g + b


# --------------------------- single fused kernel -------------------------------
def fused_decoder_kernel(
    lf_ref, enc_ref,                 # (T, D), (TE, D)
    fsmn_c_ref,                      # (NLAYERS, LC, D)            time-major fsmn cache
    kv_c_ref,                        # (TKC, KV_W)                 packed cached keys/values
    wkv_ref,                         # (D, KV_W) bf16              all-layer K/V weights
    lw_ref,                          # (NLAYERS, WROWS, WLANES) bf16
    lv_ref,                          # (NLAYERS, VROWS, 128) f32
    fw_ref,                          # (FWROWS, 128) bf16
    gv_ref,                          # (GROWS, 128) f32
    out_fsmn_ref,                    # (NLAYERS, K-1+T, D)         time-major fsmn cache save
    out_kv_ref,                      # (LB, KV_W)                  packed key/value cache save
    out_ids_ref,                     # (T, IDS_W) int32            argmax ids (lane-dense)
    att_sc,                          # scratch: (T, HDK) f32
):
    lf = lf_ref[...]                                   # (T, D)
    enc_bf = enc_ref[...].astype(MXU_DT)               # hoisted bf16 cast, reused by all layers

    # ---- all-layer K/V projection in ONE MXU op (layer-invariant, hoisted) ----
    bkv = gv_ref[0:1, :]                               # (1, KV_W)
    kv_all = jnp.dot(enc_bf, wkv_ref[...], preferred_element_type=F32) + bkv   # (TE, KV_W)

    # saved key/value caches of ALL layers: one lane-dense (LB, 128) store,
    # keys stored non-transposed (next chunk contracts over d_k, like new keys).
    out_kv_ref[...] = kv_all[TE - LB:, :]

    kv_c = kv_c_ref[...]                               # (TKC, KV_W) cached keys/values

    # ------------------------------ layer loop ---------------------------------
    for l in range(NLAYERS):
        # per-layer vector params (one slab, static row offsets)
        n1g = lv_ref[l, 0:1, 0:D];   n1b = lv_ref[l, 1:2, 0:D]
        b1  = lv_ref[l, 2:3, 0:FF]
        nfg = lv_ref[l, 3:4, 0:FF];  nfb = lv_ref[l, 4:5, 0:FF]
        b2  = lv_ref[l, 5:6, 0:D]
        n2g = lv_ref[l, 6:7, 0:D];   n2b = lv_ref[l, 7:8, 0:D]
        w_t = lv_ref[l, 8:8 + K, 0:D]                  # (K, D) fsmn taps, time-major
        n3g = lv_ref[l, 13:14, 0:D]; n3b = lv_ref[l, 14:15, 0:D]
        bq  = lv_ref[l, 15:16, 0:HDK]
        bo  = lv_ref[l, 16:17, 0:D]

        residual = lf

        # ---- norm1 -> FFN (w1, relu, norm, w2) -> norm2 ----
        h = _layernorm(lf, n1g, n1b)
        h = jnp.dot(h.astype(MXU_DT), lw_ref[l, 64:96, 0:FF],
                    preferred_element_type=F32) + b1
        h = jnp.maximum(h, 0.0)
        h = _layernorm(h, nfg, nfb)
        h = jnp.dot(h.astype(MXU_DT), lw_ref[l, 96:160, 0:D],
                    preferred_element_type=F32) + b2
        h = _layernorm(h, n2g, n2b)                    # (T, D)

        # ---- FSMN depthwise conv, time-major (taps = sublane-offset slices) ----
        cache_tail = fsmn_c_ref[l, LC - (K - 1):, :]   # (K-1, D)
        xf = jnp.concatenate([cache_tail, h], axis=0)  # (K-1+T, D)
        conv = xf[0:T, :] * w_t[0:1, :]
        for kk in range(1, K):
            conv = conv + xf[kk:kk + T, :] * w_t[kk:kk + 1, :]
        x = conv + h + residual                        # (T, D)
        residual2 = x
        out_fsmn_ref[l] = xf                           # time-major cache save

        # ---- multi-head cross attention (Q per layer; K/V hoisted above) ----
        xn = _layernorm(x, n3g, n3b)
        q_all = jnp.dot(xn.astype(MXU_DT), lw_ref[l, 0:32, 0:HDK],
                        preferred_element_type=F32) + bq          # (T, HDK)
        k_all  = kv_all[:, l * 2 * HDK: l * 2 * HDK + HDK]         # (TE, HDK)
        v_all  = kv_all[:, l * 2 * HDK + HDK: (l + 1) * 2 * HDK]   # (TE, HDK)
        kc_all = kv_c[:, l * 2 * HDK: l * 2 * HDK + HDK]           # (TKC, HDK)
        vc_all = kv_c[:, l * 2 * HDK + HDK: (l + 1) * 2 * HDK]     # (TKC, HDK)

        for hh in range(H):
            sl = slice(hh * DK, (hh + 1) * DK)
            qh = q_all[:, sl]                                      # (T, DK)
            kh = k_all[:, sl];  vh = v_all[:, sl]                  # (TE, DK)
            kch = kc_all[:, sl]; vch = vc_all[:, sl]               # (TKC, DK)

            # joint softmax over [cached | new] scores without lane concats
            sc_c = jax.lax.dot_general(qh, kch, (((1,), (1,)), ((), ())),
                                       preferred_element_type=F32)  # (T, TKC)
            sc_n = jax.lax.dot_general(qh, kh, (((1,), (1,)), ((), ())),
                                       preferred_element_type=F32)  # (T, TE)
            m = jnp.maximum(jnp.max(sc_c, axis=-1, keepdims=True),
                            jnp.max(sc_n, axis=-1, keepdims=True))
            p_c = jnp.exp(sc_c - m)
            p_n = jnp.exp(sc_n - m)
            inv = pl.reciprocal(jnp.sum(p_c, axis=-1, keepdims=True)
                                + jnp.sum(p_n, axis=-1, keepdims=True), approx=True)
            pv = (jnp.dot(p_c, vch, preferred_element_type=F32)
                  + jnp.dot(p_n, vh, preferred_element_type=F32))  # (T, DK)
            att_sc[:, sl] = pv * inv                               # lane-slice scratch write

        # fused output projection on the concatenated heads (read scratch once)
        att = att_sc[...]                                          # (T, HDK)
        x_att = jnp.dot(att.astype(MXU_DT), lw_ref[l, 32:64, 0:D],
                        preferred_element_type=F32) + bo
        lf = residual2 + x_att                                     # carried to next layer

    # ---- decoders3 FFN + after_norm + output_layer + argmax (after the loop) ----
    fn1g = gv_ref[1:2, 0:D];   fn1b = gv_ref[2:3, 0:D]
    fb1  = gv_ref[3:4, 0:FF3]
    fnfg = gv_ref[4:5, 0:FF3]; fnfb = gv_ref[5:6, 0:FF3]
    fb2  = gv_ref[6:7, 0:D]
    fag  = gv_ref[7:8, 0:D];   fab = gv_ref[8:9, 0:D]
    fob  = gv_ref[9:10, 0:VOCAB]

    y = _layernorm(lf, fn1g, fn1b)
    y = jnp.dot(y.astype(MXU_DT), fw_ref[0:32, 0:FF3], preferred_element_type=F32) + fb1
    y = jnp.maximum(y, 0.0)
    y = _layernorm(y, fnfg, fnfb)
    y = jnp.dot(y.astype(MXU_DT), fw_ref[32:96, 0:D], preferred_element_type=F32) + fb2
    y = _layernorm(y, fag, fab)
    logits = jnp.dot(y.astype(MXU_DT), fw_ref[96:128, 0:VOCAB],
                     preferred_element_type=F32) + fob             # (T, VOCAB)
    mx = jnp.max(logits, axis=-1, keepdims=True)
    col = jax.lax.broadcasted_iota(jnp.int32, logits.shape, 1)
    masked = jnp.where(logits == mx, col, VOCAB)                   # first argmax
    ids = jnp.min(masked, axis=-1, keepdims=True)                  # (T, 1)
    out_ids_ref[...] = jnp.broadcast_to(ids, (T, IDS_W)).astype(jnp.int32)


# ------------------------------- parameter init ---------------------------------
def init_params(key):
    keys = iter(jax.random.split(key, 40))

    def nrm(shape, scale=0.05):
        return (scale * jax.random.normal(next(keys), shape)).astype(F32)

    factor = float(DK ** (-0.25))

    # raw per-layer parameters (q / k carry the d_k^-0.25 factor, like torch __init__)
    wq = nrm((NLAYERS, D, HDK)) * factor; bq = nrm((NLAYERS, HDK)) * factor
    wk = nrm((NLAYERS, D, HDK)) * factor; bk = nrm((NLAYERS, HDK)) * factor
    wv = nrm((NLAYERS, D, HDK));          bv = nrm((NLAYERS, HDK))
    wo = nrm((NLAYERS, HDK, D));          bo = nrm((NLAYERS, D))
    w1 = nrm((NLAYERS, D, FF));           b1 = nrm((NLAYERS, FF))
    w2 = nrm((NLAYERS, FF, D));           b2 = nrm((NLAYERS, D))
    fsmn_w = nrm((NLAYERS, K, D))                          # (K, D): time-major conv taps

    # ---- packed all-layer K/V projection weight / bias: lanes [k_l | v_l] per layer ----
    wkv = jnp.zeros((D, KV_W), F32)
    bkv = jnp.zeros((KV_W,), F32)
    for l in range(NLAYERS):
        wkv = wkv.at[:, l * 2 * HDK: l * 2 * HDK + HDK].set(wk[l])
        wkv = wkv.at[:, l * 2 * HDK + HDK: (l + 1) * 2 * HDK].set(wv[l])
        bkv = bkv.at[l * 2 * HDK: l * 2 * HDK + HDK].set(bk[l])
        bkv = bkv.at[l * 2 * HDK + HDK: (l + 1) * 2 * HDK].set(bv[l])
    wkv = wkv.astype(MXU_DT)

    # ---- per-layer weight slab (bf16): wq | wo | w1 | w2 at fixed row offsets ----
    layer_w = jnp.zeros((NLAYERS, WROWS, WLANES), F32)
    layer_w = layer_w.at[:, 0:32, 0:HDK].set(wq)
    layer_w = layer_w.at[:, 32:64, 0:D].set(wo)
    layer_w = layer_w.at[:, 64:96, 0:FF].set(w1)
    layer_w = layer_w.at[:, 96:160, 0:D].set(w2)
    layer_w = layer_w.astype(MXU_DT)

    # ---- per-layer vector slab (f32): LN gains/biases, biases, fsmn taps ----
    ones_d = jnp.ones((NLAYERS, D), F32)
    ones_f = jnp.ones((NLAYERS, FF), F32)
    layer_v = jnp.zeros((NLAYERS, VROWS, 128), F32)
    layer_v = layer_v.at[:, 0, 0:D].set(ones_d)            # n1g (n1b row 1 stays 0)
    layer_v = layer_v.at[:, 2, 0:FF].set(b1)
    layer_v = layer_v.at[:, 3, 0:FF].set(ones_f)           # nfg (nfb row 4 stays 0)
    layer_v = layer_v.at[:, 5, 0:D].set(b2)
    layer_v = layer_v.at[:, 6, 0:D].set(ones_d)            # n2g (n2b row 7 stays 0)
    layer_v = layer_v.at[:, 8:8 + K, 0:D].set(fsmn_w)
    layer_v = layer_v.at[:, 13, 0:D].set(ones_d)           # n3g (n3b row 14 stays 0)
    layer_v = layer_v.at[:, 15, 0:HDK].set(bq)
    layer_v = layer_v.at[:, 16, 0:D].set(bo)

    # ---- final-stage params (decoders3 + after_norm + output_layer) ----
    fw1 = nrm((D, FF3));   fb1 = nrm((FF3,))
    fw2 = nrm((FF3, D));   fb2 = nrm((D,))
    fow = nrm((D, VOCAB)); fob = nrm((VOCAB,))

    final_w = jnp.zeros((FWROWS, 128), F32)
    final_w = final_w.at[0:32, 0:FF3].set(fw1)
    final_w = final_w.at[32:96, 0:D].set(fw2)
    final_w = final_w.at[96:128, 0:VOCAB].set(fow)
    final_w = final_w.astype(MXU_DT)

    glob_v = jnp.zeros((GROWS, 128), F32)
    glob_v = glob_v.at[0, :].set(bkv)
    glob_v = glob_v.at[1, 0:D].set(jnp.ones((D,), F32))    # fn1g (fn1b row 2 stays 0)
    glob_v = glob_v.at[3, 0:FF3].set(fb1)
    glob_v = glob_v.at[4, 0:FF3].set(jnp.ones((FF3,), F32))  # fnfg (fnfb row 5 stays 0)
    glob_v = glob_v.at[6, 0:D].set(fb2)
    glob_v = glob_v.at[7, 0:D].set(jnp.ones((D,), F32))    # fag (fab row 8 stays 0)
    glob_v = glob_v.at[9, 0:VOCAB].set(fob)

    return wkv, layer_w, layer_v, final_w, glob_v


# ----------------------------------- forward -------------------------------------
@jax.jit
def paraformer_decoder_forward(wkv, layer_w, layer_v, final_w, glob_v,
                               fsmn_caches, kv_caches, encoder_out, list_frame,
                               list_frame_len):
    # list_frame_len kept for API parity; the kernel is specialized to static T.
    del list_frame_len

    out_shape = (
        jax.ShapeDtypeStruct((NLAYERS, K - 1 + T, D), F32),   # save_fsmn (time-major)
        jax.ShapeDtypeStruct((LB, KV_W), F32),                # save_keys/values (packed)
        jax.ShapeDtypeStruct((T, IDS_W), jnp.int32),          # argmax ids (lane-dense slab)
    )
    # Single grid step: no grid, whole arrays resident in VMEM (tiny footprint);
    # double-buffering / dimension_semantics are irrelevant here.
    out_fsmn, out_kv, out_ids = pl.pallas_call(
        fused_decoder_kernel,
        out_shape=out_shape,
        scratch_shapes=[pltpu.VMEM((T, HDK), F32)],           # per-head attention slab
    )(list_frame, encoder_out, fsmn_caches, kv_caches,
      wkv, layer_w, layer_v, final_w, glob_v)

    max_logit_ids = out_ids[:, 0].reshape(1, T)
    return out_fsmn, out_kv, max_logit_ids


# -------------------------------------- main --------------------------------------
if __name__ == "__main__":
    key = jax.random.PRNGKey(0)
    k_params, k_inputs = jax.random.split(key)
    params = init_params(k_params)

    ks = jax.random.split(k_inputs, 4)
    # streaming state, in the kernel's (lane-dense, time-major) cache layouts
    fsmn_caches = 0.1 * jax.random.normal(ks[0], (NLAYERS, LC, D), F32)    # time-major
    kv_caches = 0.1 * jax.random.normal(ks[1], (TKC, KV_W), F32)           # [k_l0|v_l0|k_l1|v_l1]
    encoder_out = 0.1 * jax.random.normal(ks[2], (TE, D), F32)
    list_frame = 0.1 * jax.random.normal(ks[3], (T, D), F32)
    list_frame_len = jnp.array([T], jnp.int32)

    outputs = paraformer_decoder_forward(
        *params, fsmn_caches, kv_caches, encoder_out, list_frame, list_frame_len)
    jax.block_until_ready(outputs)
    print("KERNEL_OK")
</pallas_src>

<mosaic_0001>
module attributes {stable_mosaic.version = 11 : i64} {
  func.func @fused_decoder_kernel(%arg0: memref<8x32xf32, #tpu.memory_space<vmem>>, %arg1: memref<16x32xf32, #tpu.memory_space<vmem>>, %arg2: memref<2x6x32xf32, #tpu.memory_space<vmem>>, %arg3: memref<4x128xf32, #tpu.memory_space<vmem>>, %arg4: memref<32x128xbf16, #tpu.memory_space<vmem>>, %arg5: memref<2x160x64xbf16, #tpu.memory_space<vmem>>, %arg6: memref<2x24x128xf32, #tpu.memory_space<vmem>>, %arg7: memref<128x128xbf16, #tpu.memory_space<vmem>>, %arg8: memref<16x128xf32, #tpu.memory_space<vmem>>, %arg9: memref<2x12x32xf32, #tpu.memory_space<vmem>>, %arg10: memref<8x128xf32, #tpu.memory_space<vmem>>, %arg11: memref<8x128xi32, #tpu.memory_space<vmem>>, %arg12: memref<8x32xf32, #tpu.memory_space<vmem>>) attributes {dimension_semantics = [], scalar_prefetch = 0 : i64, scratch_operands = 1 : i64, tpu.core_type = #tpu.core_type<tc>} {
    %c0 = arith.constant 0 : index
    %c0_0 = arith.constant 0 : index
    %0 = vector.load %arg0[%c0, %c0_0] : memref<8x32xf32, #tpu.memory_space<vmem>>, vector<8x32xf32>
    %c0_1 = arith.constant 0 : index
    %c0_2 = arith.constant 0 : index
    %1 = vector.load %arg1[%c0_1, %c0_2] : memref<16x32xf32, #tpu.memory_space<vmem>>, vector<16x32xf32>
    %2 = arith.truncf %1 : vector<16x32xf32> to vector<16x32xbf16>
    %c0_3 = arith.constant 0 : index
    %c0_4 = arith.constant 0 : index
    %3 = vector.load %arg8[%c0_3, %c0_4] : memref<16x128xf32, #tpu.memory_space<vmem>>, vector<1x128xf32>
    %c0_5 = arith.constant 0 : index
    %c0_6 = arith.constant 0 : index
    %4 = vector.load %arg4[%c0_5, %c0_6] : memref<32x128xbf16, #tpu.memory_space<vmem>>, vector<32x128xbf16>
    %cst = arith.constant dense<0.000000e+00> : vector<16x128xf32>
    %5 = tpu.matmul %2, %4, %cst {dimension_numbers = #tpu.dot_dimension_numbers<[1], [0], [0], [1], [0, 0, 1, 1], [], []>} : vector<16x32xbf16>, vector<32x128xbf16>, vector<16x128xf32> -> vector<16x128xf32>
    %6 = vector.broadcast %3 : vector<1x128xf32> to vector<16x128xf32>
    %7 = arith.addf %5, %6 : vector<16x128xf32>
    %8 = vector.extract_strided_slice %7 {offsets = [8, 0], sizes = [8, 128], strides = [1, 1]} : vector<16x128xf32> to vector<8x128xf32>
    %c0_7 = arith.constant 0 : index
    %c0_8 = arith.constant 0 : index
    %9 = vector.load %arg10[%c0_7, %c0_8] : memref<8x128xf32, #tpu.memory_space<vmem>>, vector<8x128xf32>
    tpu.vector_store %arg10[%c0_7, %c0_8], %8 {strides = array<i32>} : memref<8x128xf32, #tpu.memory_space<vmem>>, vector<8x128xf32>,
    %c0_9 = arith.constant 0 : index
    %c0_10 = arith.constant 0 : index
    %10 = vector.load %arg3[%c0_9, %c0_10] : memref<4x128xf32, #tpu.memory_space<vmem>>, vector<4x128xf32>
    %c0_11 = arith.constant 0 : index
    %c0_12 = arith.constant 0 : index
    %c0_13 = arith.constant 0 : index
    %11 = vector.load %arg6[%c0_11, %c0_12, %c0_13] : memref<2x24x128xf32, #tpu.memory_space<vmem>>, vector<1x1x32xf32>
    %12 = vector.shape_cast %11 : vector<1x1x32xf32> to vector<1x32xf32>
    %c0_14 = arith.constant 0 : index
    %c1 = arith.constant 1 : index
    %c0_15 = arith.constant 0 : index
    %13 = vector.load %arg6[%c0_14, %c1, %c0_15] : memref<2x24x128xf32, #tpu.memory_space<vmem>>, vector<1x1x32xf32>
    %14 = vector.shape_cast %13 : vector<1x1x32xf32> to vector<1x32xf32>
    %c0_16 = arith.constant 0 : index
    %c2 = arith.constant 2 : index
    %c0_17 = arith.constant 0 : index
    %15 = vector.load %arg6[%c0_16, %c2, %c0_17] : memref<2x24x128xf32, #tpu.memory_space<vmem>>, vector<1x1x64xf32>
    %16 = vector.shape_cast %15 : vector<1x1x64xf32> to vector<1x64xf32>
    %c0_18 = arith.constant 0 : index
    %c3 = arith.constant 3 : index
    %c0_19 = arith.constant 0 : index
    %17 = vector.load %arg6[%c0_18, %c3, %c0_19] : memref<2x24x128xf32, #tpu.memory_space<vmem>>, vector<1x1x64xf32>
    %18 = vector.shape_cast %17 : vector<1x1x64xf32> to vector<1x64xf32>
    %c0_20 = arith.constant 0 : index
    %c4 = arith.constant 4 : index
    %c0_21 = arith.constant 0 : index
    %19 = vector.load %arg6[%c0_20, %c4, %c0_21] : memref<2x24x128xf32, #tpu.memory_space<vmem>>, vector<1x1x64xf32>
    %20 = vector.shape_cast %19 : vector<1x1x64xf32> to vector<1x64xf32>
    %c0_22 = arith.constant 0 : index
    %c5 = arith.constant 5 : index
    %c0_23 = arith.constant 0 : index
    %21 = vector.load %arg6[%c0_22, %c5, %c0_23] : memref<2x24x128xf32, #tpu.memory_space<vmem>>, vector<1x1x32xf32>
    %22 = vector.shape_cast %21 : vector<1x1x32xf32> to vector<1x32xf32>
    %c0_24 = arith.constant 0 : index
    %c6 = arith.constant 6 : index
    %c0_25 = arith.constant 0 : index
    %23 = vector.load %arg6[%c0_24, %c6, %c0_25] : memref<2x24x128xf32, #tpu.memory_space<vmem>>, vector<1x1x32xf32>
    %24 = vector.shape_cast %23 : vector<1x1x32xf32> to vector<1x32xf32>
    %c0_26 = arith.constant 0 : index
    %c7 = arith.constant 7 : index
    %c0_27 = arith.constant 0 : index
    %25 = vector.load %arg6[%c0_26, %c7, %c0_27] : memref<2x24x128xf32, #tpu.memory_space<vmem>>, vector<1x1x32xf32>
    %26 = vector.shape_cast %25 : vector<1x1x32xf32> to vector<1x32xf32>
    %c0_28 = arith.constant 0 : index
    %c8 = arith.constant 8 : index
    %c0_29 = arith.constant 0 : index
    %27 = vector.load %arg6[%c0_28, %c8, %c0_29] : memref<2x24x128xf32, #tpu.memory_space<vmem>>, vector<1x5x32xf32>
    %28 = vector.shape_cast %27 : vector<1x5x32xf32> to vector<5x32xf32>
    %c0_30 = arith.constant 0 : index
    %c13 = arith.constant 13 : index
    %c0_31 = arith.constant 0 : index
    %29 = vector.load %arg6[%c0_30, %c13, %c0_31] : memref<2x24x128xf32, #tpu.memory_space<vmem>>, vector<1x1x32xf32>
    %30 = vector.shape_cast %29 : vector<1x1x32xf32> to vector<1x32xf32>
    %c0_32 = arith.constant 0 : index
    %c14 = arith.constant 14 : index
    %c0_33 = arith.constant 0 : index
    %31 = vector.load %arg6[%c0_32, %c14, %c0_33] : memref<2x24x128xf32, #tpu.memory_space<vmem>>, vector<1x1x32xf32>
    %32 = vector.shape_cast %31 : vector<1x1x32xf32> to vector<1x32xf32>
    %c0_34 = arith.constant 0 : index
    %c15 = arith.constant 15 : index
    %c0_35 = arith.constant 0 : index
    %33 = vector.load %arg6[%c0_34, %c15, %c0_35] : memref<2x24x128xf32, #tpu.memory_space<vmem>>, vector<1x1x32xf32>
    %34 = vector.shape_cast %33 : vector<1x1x32xf32> to vector<1x32xf32>
    %c0_36 = arith.constant 0 : index
    %c16 = arith.constant 16 : index
    %c0_37 = arith.constant 0 : index
    %35 = vector.load %arg6[%c0_36, %c16, %c0_37] : memref<2x24x128xf32, #tpu.memory_space<vmem>>, vector<1x1x32xf32>
    %36 = vector.shape_cast %35 : vector<1x1x32xf32> to vector<1x32xf32>
    %cst_38 = arith.constant dense<0.000000e+00> : vector<8xf32>
    %37 = vector.multi_reduction <add>, %0, %cst_38 [1] : vector<8x32xf32> to vector<8xf32>
    %38 = vector.shape_cast %37 : vector<8xf32> to vector<8x1xf32>
    %cst_39 = arith.constant 3.200000e+01 : f32
    %39 = vector.broadcast %cst_39 : f32 to vector<8x1xf32>
    %40 = arith.divf %38, %39 : vector<8x1xf32>
    %41 = vector.broadcast %40 : vector<8x1xf32> to vector<8x32xf32>
    %42 = arith.subf %0, %41 : vector<8x32xf32>
    %43 = arith.mulf %42, %42 : vector<8x32xf32>
    %cst_40 = arith.constant dense<0.000000e+00> : vector<8xf32>
    %44 = vector.multi_reduction <add>, %43, %cst_40 [1] : vector<8x32xf32> to vector<8xf32>
    %45 = vector.shape_cast %44 : vector<8xf32> to vector<8x1xf32>
    %cst_41 = arith.constant 3.200000e+01 : f32
    %46 = vector.broadcast %cst_41 : f32 to vector<8x1xf32>
    %47 = arith.divf %45, %46 : vector<8x1xf32>
    %48 = vector.broadcast %40 : vector<8x1xf32> to vector<8x32xf32>
    %49 = arith.subf %0, %48 : vector<8x32xf32>
    %cst_42 = arith.constant 9.99999974E-6 : f32
    %50 = vector.broadcast %cst_42 : f32 to vector<8x1xf32>
    %51 = arith.addf %47, %50 : vector<8x1xf32>
    %52 = math.rsqrt %51 : vector<8x1xf32>
    %53 = vector.broadcast %52 : vector<8x1xf32> to vector<8x32xf32>
    %54 = arith.mulf %49, %53 : vector<8x32xf32>
    %55 = vector.broadcast %12 : vector<1x32xf32> to vector<8x32xf32>
    %56 = arith.mulf %54, %55 : vector<8x32xf32>
    %57 = vector.broadcast %14 : vector<1x32xf32> to vector<8x32xf32>
    %58 = arith.addf %56, %57 : vector<8x32xf32>
    %59 = arith.truncf %58 : vector<8x32xf32> to vector<8x32xbf16>
    %c0_43 = arith.constant 0 : index
    %c64 = arith.constant 64 : index
    %c0_44 = arith.constant 0 : index
    %60 = vector.load %arg5[%c0_43, %c64, %c0_44] : memref<2x160x64xbf16, #tpu.memory_space<vmem>>, vector<1x32x64xbf16>
    %61 = vector.shape_cast %60 : vector<1x32x64xbf16> to vector<32x64xbf16>
    %cst_45 = arith.constant dense<0.000000e+00> : vector<8x64xf32>
    %62 = tpu.matmul %59, %61, %cst_45 {dimension_numbers = #tpu.dot_dimension_numbers<[1], [0], [0], [1], [0, 0, 1, 1], [], []>} : vector<8x32xbf16>, vector<32x64xbf16>, vector<8x64xf32> -> vector<8x64xf32>
    %63 = vector.broadcast %16 : vector<1x64xf32> to vector<8x64xf32>
    %64 = arith.addf %62, %63 : vector<8x64xf32>
    %cst_46 = arith.constant 0.000000e+00 : f32
    %65 = vector.broadcast %cst_46 : f32 to vector<8x64xf32>
    %66 = arith.maximumf %64, %65 : vector<8x64xf32>
    %cst_47 = arith.constant dense<0.000000e+00> : vector<8xf32>
    %67 = vector.multi_reduction <add>, %66, %cst_47 [1] : vector<8x64xf32> to vector<8xf32>
    %68 = vector.shape_cast %67 : vector<8xf32> to vector<8x1xf32>
    %cst_48 = arith.constant 6.400000e+01 : f32
    %69 = vector.broadcast %cst_48 : f32 to vector<8x1xf32>
    %70 = arith.divf %68, %69 : vector<8x1xf32>
    %71 = vector.broadcast %70 : vector<8x1xf32> to vector<8x64xf32>
    %72 = arith.subf %66, %71 : vector<8x64xf32>
    %73 = arith.mulf %72, %72 : vector<8x64xf32>
    %cst_49 = arith.constant dense<0.000000e+00> : vector<8xf32>
    %74 = vector.multi_reduction <add>, %73, %cst_49 [1] : vector<8x64xf32> to vector<8xf32>
    %75 = vector.shape_cast %74 : vector<8xf32> to vector<8x1xf32>
    %cst_50 = arith.constant 6.400000e+01 : f32
    %76 = vector.broadcast %cst_50 : f32 to vector<8x1xf32>
    %77 = arith.divf %75, %76 : vector<8x1xf32>
    %78 = vector.broadcast %70 : vector<8x1xf32> to vector<8x64xf32>
    %79 = arith.subf %66, %78 : vector<8x64xf32>
    %cst_51 = arith.constant 9.99999974E-6 : f32
    %80 = vector.broadcast %cst_51 : f32 to vector<8x1xf32>
    %81 = arith.addf %77, %80 : vector<8x1xf32>
    %82 = math.rsqrt %81 : vector<8x1xf32>
    %83 = vector.broadcast %82 : vector<8x1xf32> to vector<8x64xf32>
    %84 = arith.mulf %79, %83 : vector<8x64xf32>
    %85 = vector.broadcast %18 : vector<1x64xf32> to vector<8x64xf32>
    %86 = arith.mulf %84, %85 : vector<8x64xf32>
    %87 = vector.broadcast %20 : vector<1x64xf32> to vector<8x64xf32>
    %88 = arith.addf %86, %87 : vector<8x64xf32>
    %89 = arith.truncf %88 : vector<8x64xf32> to vector<8x64xbf16>
    %c0_52 = arith.constant 0 : index
    %c96 = arith.constant 96 : index
    %c0_53 = arith.constant 0 : index
    %90 = vector.load %arg5[%c0_52, %c96, %c0_53] : memref<2x160x64xbf16, #tpu.memory_space<vmem>>, vector<1x64x32xbf16>
    %91 = vector.shape_cast %90 : vector<1x64x32xbf16> to vector<64x32xbf16>
    %cst_54 = arith.constant dense<0.000000e+00> : vector<8x32xf32>
    %92 = tpu.matmul %89, %91, %cst_54 {dimension_numbers = #tpu.dot_dimension_numbers<[1], [0], [0], [1], [0, 0, 1, 1], [], []>} : vector<8x64xbf16>, vector<64x32xbf16>, vector<8x32xf32> -> vector<8x32xf32>
    %93 = vector.broadcast %22 : vector<1x32xf32> to vector<8x32xf32>
    %94 = arith.addf %92, %93 : vector<8x32xf32>
    %cst_55 = arith.constant dense<0.000000e+00> : vector<8xf32>
    %95 = vector.multi_reduction <add>, %94, %cst_55 [1] : vector<8x32xf32> to vector<8xf32>
    %96 = vector.shape_cast %95 : vector<8xf32> to vector<8x1xf32>
    %cst_56 = arith.constant 3.200000e+01 : f32
    %97 = vector.broadcast %cst_56 : f32 to vector<8x1xf32>
    %98 = arith.divf %96, %97 : vector<8x1xf32>
    %99 = vector.broadcast %98 : vector<8x1xf32> to vector<8x32xf32>
    %100 = arith.subf %94, %99 : vector<8x32xf32>
    %101 = arith.mulf %100, %100 : vector<8x32xf32>
    %cst_57 = arith.constant dense<0.000000e+00> : vector<8xf32>
    %102 = vector.multi_reduction <add>, %101, %cst_57 [1] : vector<8x32xf32> to vector<8xf32>
    %103 = vector.shape_cast %102 : vector<8xf32> to vector<8x1xf32>
    %cst_58 = arith.constant 3.200000e+01 : f32
    %104 = vector.broadcast %cst_58 : f32 to vector<8x1xf32>
    %105 = arith.divf %103, %104 : vector<8x1xf32>
    %106 = vector.broadcast %98 : vector<8x1xf32> to vector<8x32xf32>
    %107 = arith.subf %94, %106 : vector<8x32xf32>
    %cst_59 = arith.constant 9.99999974E-6 : f32
    %108 = vector.broadcast %cst_59 : f32 to vector<8x1xf32>
    %109 = arith.addf %105, %108 : vector<8x1xf32>
    %110 = math.rsqrt %109 : vector<8x1xf32>
    %111 = vector.broadcast %110 : vector<8x1xf32> to vector<8x32xf32>
    %112 = arith.mulf %107, %111 : vector<8x32xf32>
    %113 = vector.broadcast %24 : vector<1x32xf32> to vector<8x32xf32>
    %114 = arith.mulf %112, %113 : vector<8x32xf32>
    %115 = vector.broadcast %26 : vector<1x32xf32> to vector<8x32xf32>
    %116 = arith.addf %114, %115 : vector<8x32xf32>
    %c0_60 = arith.constant 0 : index
    %c2_61 = arith.constant 2 : index
    %c0_62 = arith.constant 0 : index
    %117 = vector.load %arg2[%c0_60, %c2_61, %c0_62] : memref<2x6x32xf32, #tpu.memory_space<vmem>>, vector<1x4x32xf32>
    %118 = vector.shape_cast %117 : vector<1x4x32xf32> to vector<4x32xf32>
    %119 = tpu.concatenate %118, %116 in 0 : vector<4x32xf32>, vector<8x32xf32> -> vector<12x32xf32>
    %120 = vector.extract_strided_slice %119 {offsets = [0, 0], sizes = [8, 32], strides = [1, 1]} : vector<12x32xf32> to vector<8x32xf32>
    %121 = vector.extract_strided_slice %28 {offsets = [0, 0], sizes = [1, 32], strides = [1, 1]} : vector<5x32xf32> to vector<1x32xf32>
    %122 = vector.broadcast %121 : vector<1x32xf32> to vector<8x32xf32>
    %123 = arith.mulf %120, %122 : vector<8x32xf32>
    %124 = vector.extract_strided_slice %119 {offsets = [1, 0], sizes = [8, 32], strides = [1, 1]} : vector<12x32xf32> to vector<8x32xf32>
    %125 = vector.extract_strided_slice %28 {offsets = [1, 0], sizes = [1, 32], strides = [1, 1]} : vector<5x32xf32> to vector<1x32xf32>
    %126 = vector.broadcast %125 : vector<1x32xf32> to vector<8x32xf32>
    %127 = arith.mulf %124, %126 : vector<8x32xf32>
    %128 = arith.addf %123, %127 : vector<8x32xf32>
    %129 = vector.extract_strided_slice %119 {offsets = [2, 0], sizes = [8, 32], strides = [1, 1]} : vector<12x32xf32> to vector<8x32xf32>
    %130 = vector.extract_strided_slice %28 {offsets = [2, 0], sizes = [1, 32], strides = [1, 1]} : vector<5x32xf32> to vector<1x32xf32>
    %131 = vector.broadcast %130 : vector<1x32xf32> to vector<8x32xf32>
    %132 = arith.mulf %129, %131 : vector<8x32xf32>
    %133 = arith.addf %128, %132 : vector<8x32xf32>
    %134 = vector.extract_strided_slice %119 {offsets = [3, 0], sizes = [8, 32], strides = [1, 1]} : vector<12x32xf32> to vector<8x32xf32>
    %135 = vector.extract_strided_slice %28 {offsets = [3, 0], sizes = [1, 32], strides = [1, 1]} : vector<5x32xf32> to vector<1x32xf32>
    %136 = vector.broadcast %135 : vector<1x32xf32> to vector<8x32xf32>
    %137 = arith.mulf %134, %136 : vector<8x32xf32>
    %138 = arith.addf %133, %137 : vector<8x32xf32>
    %139 = vector.extract_strided_slice %119 {offsets = [4, 0], sizes = [8, 32], strides = [1, 1]} : vector<12x32xf32> to vector<8x32xf32>
    %140 = vector.extract_strided_slice %28 {offsets = [4, 0], sizes = [1, 32], strides = [1, 1]} : vector<5x32xf32> to vector<1x32xf32>
    %141 = vector.broadcast %140 : vector<1x32xf32> to vector<8x32xf32>
    %142 = arith.mulf %139, %141 : vector<8x32xf32>
    %143 = arith.addf %138, %142 : vector<8x32xf32>
    %144 = arith.addf %143, %116 : vector<8x32xf32>
    %145 = arith.addf %144, %0 : vector<8x32xf32>
    %c0_63 = arith.constant 0 : index
    %c0_64 = arith.constant 0 : index
    %c0_65 = arith.constant 0 : index
    %146 = vector.load %arg9[%c0_63, %c0_64, %c0_65] : memref<2x12x32xf32, #tpu.memory_space<vmem>>, vector<1x12x32xf32>
    %147 = vector.shape_cast %146 : vector<1x12x32xf32> to vector<12x32xf32>
    %148 = vector.shape_cast %119 : vector<12x32xf32> to vector<1x12x32xf32>
    tpu.vector_store %arg9[%c0_63, %c0_64, %c0_65], %148 {strides = array<i32>} : memref<2x12x32xf32, #tpu.memory_space<vmem>>, vector<1x12x32xf32>,
    %cst_66 = arith.constant dense<0.000000e+00> : vector<8xf32>
    %149 = vector.multi_reduction <add>, %145, %cst_66 [1] : vector<8x32xf32> to vector<8xf32>
    %150 = vector.shape_cast %149 : vector<8xf32> to vector<8x1xf32>
    %cst_67 = arith.constant 3.200000e+01 : f32
    %151 = vector.broadcast %cst_67 : f32 to vector<8x1xf32>
    %152 = arith.divf %150, %151 : vector<8x1xf32>
    %153 = vector.broadcast %152 : vector<8x1xf32> to vector<8x32xf32>
    %154 = arith.subf %145, %153 : vector<8x32xf32>
    %155 = arith.mulf %154, %154 : vector<8x32xf32>
    %cst_68 = arith.constant dense<0.000000e+00> : vector<8xf32>
    %156 = vector.multi_reduction <add>, %155, %cst_68 [1] : vector<8x32xf32> to vector<8xf32>
    %157 = vector.shape_cast %156 : vector<8xf32> to vector<8x1xf32>
    %cst_69 = arith.constant 3.200000e+01 : f32
    %158 = vector.broadcast %cst_69 : f32 to vector<8x1xf32>
    %159 = arith.divf %157, %158 : vector<8x1xf32>
    %160 = vector.broadcast %152 : vector<8x1xf32> to vector<8x32xf32>
    %161 = arith.subf %145, %160 : vector<8x32xf32>
    %cst_70 = arith.constant 9.99999974E-6 : f32
    %162 = vector.broadcast %cst_70 : f32 to vector<8x1xf32>
    %163 = arith.addf %159, %162 : vector<8x1xf32>
    %164 = math.rsqrt %163 : vector<8x1xf32>
    %165 = vector.broadcast %164 : vector<8x1xf32> to vector<8x32xf32>
    %166 = arith.mulf %161, %165 : vector<8x32xf32>
    %167 = vector.broadcast %30 : vector<1x32xf32> to vector<8x32xf32>
    %168 = arith.mulf %166, %167 : vector<8x32xf32>
    %169 = vector.broadcast %32 : vector<1x32xf32> to vector<8x32xf32>
    %170 = arith.addf %168, %169 : vector<8x32xf32>
    %171 = arith.truncf %170 : vector<8x32xf32> to vector<8x32xbf16>
    %c0_71 = arith.constant 0 : index
    %c0_72 = arith.constant 0 : index
    %c0_73 = arith.constant 0 : index
    %172 = vector.load %arg5[%c0_71, %c0_72, %c0_73] : memref<2x160x64xbf16, #tpu.memory_space<vmem>>, vector<1x32x32xbf16>
    %173 = vector.shape_cast %172 : vector<1x32x32xbf16> to vector<32x32xbf16>
    %cst_74 = arith.constant dense<0.000000e+00> : vector<8x32xf32>
    %174 = tpu.matmul %171, %173, %cst_74 {dimension_numbers = #tpu.dot_dimension_numbers<[1], [0], [0], [1], [0, 0, 1, 1], [], []>} : vector<8x32xbf16>, vector<32x32xbf16>, vector<8x32xf32> -> vector<8x32xf32>
    %175 = vector.broadcast %34 : vector<1x32xf32> to vector<8x32xf32>
    %176 = arith.addf %174, %175 : vector<8x32xf32>
    %177 = vector.extract_strided_slice %7 {offsets = [0, 0], sizes = [16, 32], strides = [1, 1]} : vector<16x128xf32> to vector<16x32xf32>
    %178 = vector.extract_strided_slice %7 {offsets = [0, 32], sizes = [16, 32], strides = [1, 1]} : vector<16x128xf32> to vector<16x32xf32>
    %179 = vector.extract_strided_slice %10 {offsets = [0, 0], sizes = [4, 32], strides = [1, 1]} : vector<4x128xf32> to vector<4x32xf32>
    %180 = vector.extract_strided_slice %10 {offsets = [0, 32], sizes = [4, 32], strides = [1, 1]} : vector<4x128xf32> to vector<4x32xf32>
    %181 = vector.extract_strided_slice %176 {offsets = [0, 0], sizes = [8, 8], strides = [1, 1]} : vector<8x32xf32> to vector<8x8xf32>
    %182 = vector.extract_strided_slice %177 {offsets = [0, 0], sizes = [16, 8], strides = [1, 1]} : vector<16x32xf32> to vector<16x8xf32>
    %183 = vector.extract_strided_slice %178 {offsets = [0, 0], sizes = [16, 8], strides = [1, 1]} : vector<16x32xf32> to vector<16x8xf32>
    %184 = vector.extract_strided_slice %179 {offsets = [0, 0], sizes = [4, 8], strides = [1, 1]} : vector<4x32xf32> to vector<4x8xf32>
    %185 = vector.extract_strided_slice %180 {offsets = [0, 0], sizes = [4, 8], strides = [1, 1]} : vector<4x32xf32> to vector<4x8xf32>
    %cst_75 = arith.constant dense<0.000000e+00> : vector<8x4xf32>
    %186 = tpu.matmul %181, %184, %cst_75 {dimension_numbers = #tpu.dot_dimension_numbers<[1], [1], [0], [0], [0, 0, 1, 0], [], []>} : vector<8x8xf32>, vector<4x8xf32>, vector<8x4xf32> -> vector<8x4xf32>
    %cst_76 = arith.constant dense<0.000000e+00> : vector<8x16xf32>
    %187 = tpu.matmul %181, %182, %cst_76 {dimension_numbers = #tpu.dot_dimension_numbers<[1], [1], [0], [0], [0, 0, 1, 0], [], []>} : vector<8x8xf32>, vector<16x8xf32>, vector<8x16xf32> -> vector<8x16xf32>
    %cst_77 = arith.constant dense<0xFF800000> : vector<8xf32>
    %188 = vector.multi_reduction <maximumf>, %186, %cst_77 [1] : vector<8x4xf32> to vector<8xf32>
    %189 = vector.shape_cast %188 : vector<8xf32> to vector<8x1xf32>
    %cst_78 = arith.constant dense<0xFF800000> : vector<8xf32>
    %190 = vector.multi_reduction <maximumf>, %187, %cst_78 [1] : vector<8x16xf32> to vector<8xf32>
    %191 = vector.shape_cast %190 : vector<8xf32> to vector<8x1xf32>
    %192 = arith.maximumf %189, %191 : vector<8x1xf32>
    %193 = vector.broadcast %192 : vector<8x1xf32> to vector<8x4xf32>
    %194 = arith.subf %186, %193 : vector<8x4xf32>
    %195 = math.exp %194 : vector<8x4xf32>
    %196 = vector.broadcast %192 : vector<8x1xf32> to vector<8x16xf32>
    %197 = arith.subf %187, %196 : vector<8x16xf32>
    %198 = math.exp %197 : vector<8x16xf32>
    %cst_79 = arith.constant dense<0.000000e+00> : vector<8xf32>
    %199 = vector.multi_reduction <add>, %195, %cst_79 [1] : vector<8x4xf32> to vector<8xf32>
    %200 = vector.shape_cast %199 : vector<8xf32> to vector<8x1xf32>
    %cst_80 = arith.constant dense<0.000000e+00> : vector<8xf32>
    %201 = vector.multi_reduction <add>, %198, %cst_80 [1] : vector<8x16xf32> to vector<8xf32>
    %202 = vector.shape_cast %201 : vector<8xf32> to vector<8x1xf32>
    %203 = arith.addf %200, %202 : vector<8x1xf32>
    %204 = tpu.reciprocal %203 {approx = true} : vector<8x1xf32> -> vector<8x1xf32>
    %cst_81 = arith.constant dense<0.000000e+00> : vector<8x8xf32>
    %205 = tpu.matmul %195, %185, %cst_81 {dimension_numbers = #tpu.dot_dimension_numbers<[1], [0], [0], [1], [0, 0, 1, 1], [], []>} : vector<8x4xf32>, vector<4x8xf32>, vector<8x8xf32> -> vector<8x8xf32>
    %cst_82 = arith.constant dense<0.000000e+00> : vector<8x8xf32>
    %206 = tpu.matmul %198, %183, %cst_82 {dimension_numbers = #tpu.dot_dimension_numbers<[1], [0], [0], [1], [0, 0, 1, 1], [], []>} : vector<8x16xf32>, vector<16x8xf32>, vector<8x8xf32> -> vector<8x8xf32>
    %207 = arith.addf %205, %206 : vector<8x8xf32>
    %208 = vector.broadcast %204 : vector<8x1xf32> to vector<8x8xf32>
    %209 = arith.mulf %207, %208 : vector<8x8xf32>
    %c0_83 = arith.constant 0 : index
    %c0_84 = arith.constant 0 : index
    %210 = vector.load %arg12[%c0_83, %c0_84] : memref<8x32xf32, #tpu.memory_space<vmem>>, vector<8x8xf32>
    tpu.vector_store %arg12[%c0_83, %c0_84], %209 {strides = array<i32>} : memref<8x32xf32, #tpu.memory_space<vmem>>, vector<8x8xf32>,
    %211 = vector.extract_strided_slice %176 {offsets = [0, 8], sizes = [8, 8], strides = [1, 1]} : vector<8x32xf32> to vector<8x8xf32>
    %212 = vector.extract_strided_slice %177 {offsets = [0, 8], sizes = [16, 8], strides = [1, 1]} : vector<16x32xf32> to vector<16x8xf32>
    %213 = vector.extract_strided_slice %178 {offsets = [0, 8], sizes = [16, 8], strides = [1, 1]} : vector<16x32xf32> to vector<16x8xf32>
    %214 = vector.extract_strided_slice %179 {offsets = [0, 8], sizes = [4, 8], strides = [1, 1]} : vector<4x32xf32> to vector<4x8xf32>
    %215 = vector.extract_strided_slice %180 {offsets = [0, 8], sizes = [4, 8], strides = [1, 1]} : vector<4x32xf32> to vector<4x8xf32>
    %cst_85 = arith.constant dense<0.000000e+00> : vector<8x4xf32>
    %216 = tpu.matmul %211, %214, %cst_85 {dimension_numbers = #tpu.dot_dimension_numbers<[1], [1], [0], [0], [0, 0, 1, 0], [], []>} : vector<8x8xf32>, vector<4x8xf32>, vector<8x4xf32> -> vector<8x4xf32>
    %cst_86 = arith.constant dense<0.000000e+00> : vector<8x16xf32>
    %217 = tpu.matmul %211, %212, %cst_86 {dimension_numbers = #tpu.dot_dimension_numbers<[1], [1], [0], [0], [0, 0, 1, 0], [], []>} : vector<8x8xf32>, vector<16x8xf32>, vector<8x16xf32> -> vector<8x16xf32>
    %cst_87 = arith.constant dense<0xFF800000> : vector<8xf32>
    %218 = vector.multi_reduction <maximumf>, %216, %cst_87 [1] : vector<8x4xf32> to vector<8xf32>
    %219 = vector.shape_cast %218 : vector<8xf32> to vector<8x1xf32>
    %cst_88 = arith.constant dense<0xFF800000> : vector<8xf32>
    %220 = vector.multi_reduction <maximumf>, %217, %cst_88 [1] : vector<8x16xf32> to vector<8xf32>
    %221 = vector.shape_cast %220 : vector<8xf32> to vector<8x1xf32>
    %222 = arith.maximumf %219, %221 : vector<8x1xf32>
    %223 = vector.broadcast %222 : vector<8x1xf32> to vector<8x4xf32>
    %224 = arith.subf %216, %223 : vector<8x4xf32>
    %225 = math.exp %224 : vector<8x4xf32>
    %226 = vector.broadcast %222 : vector<8x1xf32> to vector<8x16xf32>
    %227 = arith.subf %217, %226 : vector<8x16xf32>
    %228 = math.exp %227 : vector<8x16xf32>
    %cst_89 = arith.constant dense<0.000000e+00> : vector<8xf32>
    %229 = vector.multi_reduction <add>, %225, %cst_89 [1] : vector<8x4xf32> to vector<8xf32>
    %230 = vector.shape_cast %229 : vector<8xf32> to vector<8x1xf32>
    %cst_90 = arith.constant dense<0.000000e+00> : vector<8xf32>
    %231 = vector.multi_reduction <add>, %228, %cst_90 [1] : vector<8x16xf32> to vector<8xf32>
    %232 = vector.shape_cast %231 : vector<8xf32> to vector<8x1xf32>
    %233 = arith.addf %230, %232 : vector<8x1xf32>
    %234 = tpu.reciprocal %233 {approx = true} : vector<8x1xf32> -> vector<8x1xf32>
    %cst_91 = arith.constant dense<0.000000e+00> : vector<8x8xf32>
    %235 = tpu.matmul %225, %215, %cst_91 {dimension_numbers = #tpu.dot_dimension_numbers<[1], [0], [0], [1], [0, 0, 1, 1], [], []>} : vector<8x4xf32>, vector<4x8xf32>, vector<8x8xf32> -> vector<8x8xf32>
    %cst_92 = arith.constant dense<0.000000e+00> : vector<8x8xf32>
    %236 = tpu.matmul %228, %213, %cst_92 {dimension_numbers = #tpu.dot_dimension_numbers<[1], [0], [0], [1], [0, 0, 1, 1], [], []>} : vector<8x16xf32>, vector<16x8xf32>, vector<8x8xf32> -> vector<8x8xf32>
    %237 = arith.addf %235, %236 : vector<8x8xf32>
    %238 = vector.broadcast %234 : vector<8x1xf32> to vector<8x8xf32>
    %239 = arith.mulf %237, %238 : vector<8x8xf32>
    %c0_93 = arith.constant 0 : index
    %c8_94 = arith.constant 8 : index
    %240 = vector.load %arg12[%c0_93, %c8_94] : memref<8x32xf32, #tpu.memory_space<vmem>>, vector<8x8xf32>
    tpu.vector_store %arg12[%c0_93, %c8_94], %239 {strides = array<i32>} : memref<8x32xf32, #tpu.memory_space<vmem>>, vector<8x8xf32>,
    %241 = vector.extract_strided_slice %176 {offsets = [0, 16], sizes = [8, 8], strides = [1, 1]} : vector<8x32xf32> to vector<8x8xf32>
    %242 = vector.extract_strided_slice %177 {offsets = [0, 16], sizes = [16, 8], strides = [1, 1]} : vector<16x32xf32> to vector<16x8xf32>
    %243 = vector.extract_strided_slice %178 {offsets = [0, 16], sizes = [16, 8], strides = [1, 1]} : vector<16x32xf32> to vector<16x8xf32>
    %244 = vector.extract_strided_slice %179 {offsets = [0, 16], sizes = [4, 8], strides = [1, 1]} : vector<4x32xf32> to vector<4x8xf32>
    %245 = vector.extract_strided_slice %180 {offsets = [0, 16], sizes = [4, 8], strides = [1, 1]} : vector<4x32xf32> to vector<4x8xf32>
    %cst_95 = arith.constant dense<0.000000e+00> : vector<8x4xf32>
    %246 = tpu.matmul %241, %244, %cst_95 {dimension_numbers = #tpu.dot_dimension_numbers<[1], [1], [0], [0], [0, 0, 1, 0], [], []>} : vector<8x8xf32>, vector<4x8xf32>, vector<8x4xf32> -> vector<8x4xf32>
    %cst_96 = arith.constant dense<0.000000e+00> : vector<8x16xf32>
    %247 = tpu.matmul %241, %242, %cst_96 {dimension_numbers = #tpu.dot_dimension_numbers<[1], [1], [0], [0], [0, 0, 1, 0], [], []>} : vector<8x8xf32>, vector<16x8xf32>, vector<8x16xf32> -> vector<8x16xf32>
    %cst_97 = arith.constant dense<0xFF800000> : vector<8xf32>
    %248 = vector.multi_reduction <maximumf>, %246, %cst_97 [1] : vector<8x4xf32> to vector<8xf32>
    %249 = vector.shape_cast %248 : vector<8xf32> to vector<8x1xf32>
    %cst_98 = arith.constant dense<0xFF800000> : vector<8xf32>
    %250 = vector.multi_reduction <maximumf>, %247, %cst_98 [1] : vector<8x16xf32> to vector<8xf32>
    %251 = vector.shape_cast %250 : vector<8xf32> to vector<8x1xf32>
    %252 = arith.maximumf %249, %251 : vector<8x1xf32>
    %253 = vector.broadcast %252 : vector<8x1xf32> to vector<8x4xf32>
    %254 = arith.subf %246, %253 : vector<8x4xf32>
    %255 = math.exp %254 : vector<8x4xf32>
    %256 = vector.broadcast %252 : vector<8x1xf32> to vector<8x16xf32>
    %257 = arith.subf %247, %256 : vector<8x16xf32>
    %258 = math.exp %257 : vector<8x16xf32>
    %cst_99 = arith.constant dense<0.000000e+00> : vector<8xf32>
    %259 = vector.multi_reduction <add>, %255, %cst_99 [1] : vector<8x4xf32> to vector<8xf32>
    %260 = vector.shape_cast %259 : vector<8xf32> to vector<8x1xf32>
    %cst_100 = arith.constant dense<0.000000e+00> : vector<8xf32>
    %261 = vector.multi_reduction <add>, %258, %cst_100 [1] : vector<8x16xf32> to vector<8xf32>
    %262 = vector.shape_cast %261 : vector<8xf32> to vector<8x1xf32>
    %263 = arith.addf %260, %262 : vector<8x1xf32>
    %264 = tpu.reciprocal %263 {approx = true} : vector<8x1xf32> -> vector<8x1xf32>
    %cst_101 = arith.constant dense<0.000000e+00> : vector<8x8xf32>
    %265 = tpu.matmul %255, %245, %cst_101 {dimension_numbers = #tpu.dot_dimension_numbers<[1], [0], [0], [1], [0, 0, 1, 1], [], []>} : vector<8x4xf32>, vector<4x8xf32>, vector<8x8xf32> -> vector<8x8xf32>
    %cst_102 = arith.constant dense<0.000000e+00> : vector<8x8xf32>
    %266 = tpu.matmul %258, %243, %cst_102 {dimension_numbers = #tpu.dot_dimension_numbers<[1], [0], [0], [1], [0, 0, 1, 1], [], []>} : vector<8x16xf32>, vector<16x8xf32>, vector<8x8xf32> -> vector<8x8xf32>
    %267 = arith.addf %265, %266 : vector<8x8xf32>
    %268 = vector.broadcast %264 : vector<8x1xf32> to vector<8x8xf32>
    %269 = arith.mulf %267, %268 : vector<8x8xf32>
    %c0_103 = arith.constant 0 : index
    %c16_104 = arith.constant 16 : index
    %270 = vector.load %arg12[%c0_103, %c16_104] : memref<8x32xf32, #tpu.memory_space<vmem>>, vector<8x8xf32>
    tpu.vector_store %arg12[%c0_103, %c16_104], %269 {strides = array<i32>} : memref<8x32xf32, #tpu.memory_space<vmem>>, vector<8x8xf32>,
    %271 = vector.extract_strided_slice %176 {offsets = [0, 24], sizes = [8, 8], strides = [1, 1]} : vector<8x32xf32> to vector<8x8xf32>
    %272 = vector.extract_strided_slice %177 {offsets = [0, 24], sizes = [16, 8], strides = [1, 1]} : vector<16x32xf32> to vector<16x8xf32>
    %273 = vector.extract_strided_slice %178 {offsets = [0, 24], sizes = [16, 8], strides = [1, 1]} : vector<16x32xf32> to vector<16x8xf32>
    %274 = vector.extract_strided_slice %179 {offsets = [0, 24], sizes = [4, 8], strides = [1, 1]} : vector<4x32xf32> to vector<4x8xf32>
    %275 = vector.extract_strided_slice %180 {offsets = [0, 24], sizes = [4, 8], strides = [1, 1]} : vector<4x32xf32> to vector<4x8xf32>
    %cst_105 = arith.constant dense<0.000000e+00> : vector<8x4xf32>
    %276 = tpu.matmul %271, %274, %cst_105 {dimension_numbers = #tpu.dot_dimension_numbers<[1], [1], [0], [0], [0, 0, 1, 0], [], []>} : vector<8x8xf32>, vector<4x8xf32>, vector<8x4xf32> -> vector<8x4xf32>
    %cst_106 = arith.constant dense<0.000000e+00> : vector<8x16xf32>
    %277 = tpu.matmul %271, %272, %cst_106 {dimension_numbers = #tpu.dot_dimension_numbers<[1], [1], [0], [0], [0, 0, 1, 0], [], []>} : vector<8x8xf32>, vector<16x8xf32>, vector<8x16xf32> -> vector<8x16xf32>
    %cst_107 = arith.constant dense<0xFF800000> : vector<8xf32>
    %278 = vector.multi_reduction <maximumf>, %276, %cst_107 [1] : vector<8x4xf32> to vector<8xf32>
    %279 = vector.shape_cast %278 : vector<8xf32> to vector<8x1xf32>
    %cst_108 = arith.constant dense<0xFF800000> : vector<8xf32>
    %280 = vector.multi_reduction <maximumf>, %277, %cst_108 [1] : vector<8x16xf32> to vector<8xf32>
    %281 = vector.shape_cast %280 : vector<8xf32> to vector<8x1xf32>
    %282 = arith.maximumf %279, %281 : vector<8x1xf32>
    %283 = vector.broadcast %282 : vector<8x1xf32> to vector<8x4xf32>
    %284 = arith.subf %276, %283 : vector<8x4xf32>
    %285 = math.exp %284 : vector<8x4xf32>
    %286 = vector.broadcast %282 : vector<8x1xf32> to vector<8x16xf32>
    %287 = arith.subf %277, %286 : vector<8x16xf32>
    %288 = math.exp %287 : vector<8x16xf32>
    %cst_109 = arith.constant dense<0.000000e+00> : vector<8xf32>
    %289 = vector.multi_reduction <add>, %285, %cst_109 [1] : vector<8x4xf32> to vector<8xf32>
    %290 = vector.shape_cast %289 : vector<8xf32> to vector<8x1xf32>
    %cst_110 = arith.constant dense<0.000000e+00> : vector<8xf32>
    %291 = vector.multi_reduction <add>, %288, %cst_110 [1] : vector<8x16xf32> to vector<8xf32>
    %292 = vector.shape_cast %291 : vector<8xf32> to vector<8x1xf32>
    %293 = arith.addf %290, %292 : vector<8x1xf32>
    %294 = tpu.reciprocal %293 {approx = true} : vector<8x1xf32> -> vector<8x1xf32>
    %cst_111 = arith.constant dense<0.000000e+00> : vector<8x8xf32>
    %295 = tpu.matmul %285, %275, %cst_111 {dimension_numbers = #tpu.dot_dimension_numbers<[1], [0], [0], [1], [0, 0, 1, 1], [], []>} : vector<8x4xf32>, vector<4x8xf32>, vector<8x8xf32> -> vector<8x8xf32>
    %cst_112 = arith.constant dense<0.000000e+00> : vector<8x8xf32>
    %296 = tpu.matmul %288, %273, %cst_112 {dimension_numbers = #tpu.dot_dimension_numbers<[1], [0], [0], [1], [0, 0, 1, 1], [], []>} : vector<8x16xf32>, vector<16x8xf32>, vector<8x8xf32> -> vector<8x8xf32>
    %297 = arith.addf %295, %296 : vector<8x8xf32>
    %298 = vector.broadcast %294 : vector<8x1xf32> to vector<8x8xf32>
    %299 = arith.mulf %297, %298 : vector<8x8xf32>
    %c0_113 = arith.constant 0 : index
    %c24 = arith.constant 24 : index
    %300 = vector.load %arg12[%c0_113, %c24] : memref<8x32xf32, #tpu.memory_space<vmem>>, vector<8x8xf32>
    tpu.vector_store %arg12[%c0_113, %c24], %299 {strides = array<i32>} : memref<8x32xf32, #tpu.memory_space<vmem>>, vector<8x8xf32>,
    %c0_114 = arith.constant 0 : index
    %c0_115 = arith.constant 0 : index
    %301 = vector.load %arg12[%c0_114, %c0_115] : memref<8x32xf32, #tpu.memory_space<vmem>>, vector<8x32xf32>
    %302 = arith.truncf %301 : vector<8x32xf32> to vector<8x32xbf16>
    %c0_116 = arith.constant 0 : index
    %c32 = arith.constant 32 : index
    %c0_117 = arith.constant 0 : index
    %303 = vector.load %arg5[%c0_116, %c32, %c0_117] : memref<2x160x64xbf16, #tpu.memory_space<vmem>>, vector<1x32x32xbf16>
    %304 = vector.shape_cast %303 : vector<1x32x32xbf16> to vector<32x32xbf16>
    %cst_118 = arith.constant dense<0.000000e+00> : vector<8x32xf32>
    %305 = tpu.matmul %302, %304, %cst_118 {dimension_numbers = #tpu.dot_dimension_numbers<[1], [0], [0], [1], [0, 0, 1, 1], [], []>} : vector<8x32xbf16>, vector<32x32xbf16>, vector<8x32xf32> -> vector<8x32xf32>
    %306 = vector.broadcast %36 : vector<1x32xf32> to vector<8x32xf32>
    %307 = arith.addf %305, %306 : vector<8x32xf32>
    %308 = arith.addf %145, %307 : vector<8x32xf32>
    %c1_119 = arith.constant 1 : index
    %c0_120 = arith.constant 0 : index
    %c0_121 = arith.constant 0 : index
    %309 = vector.load %arg6[%c1_119, %c0_120, %c0_121] : memref<2x24x128xf32, #tpu.memory_space<vmem>>, vector<1x1x32xf32>
    %310 = vector.shape_cast %309 : vector<1x1x32xf32> to vector<1x32xf32>
    %c1_122 = arith.constant 1 : index
    %c1_123 = arith.constant 1 : index
    %c0_124 = arith.constant 0 : index
    %311 = vector.load %arg6[%c1_122, %c1_123, %c0_124] : memref<2x24x128xf32, #tpu.memory_space<vmem>>, vector<1x1x32xf32>
    %312 = vector.shape_cast %311 : vector<1x1x32xf32> to vector<1x32xf32>
    %c1_125 = arith.constant 1 : index
    %c2_126 = arith.constant 2 : index
    %c0_127 = arith.constant 0 : index
    %313 = vector.load %arg6[%c1_125, %c2_126, %c0_127] : memref<2x24x128xf32, #tpu.memory_space<vmem>>, vector<1x1x64xf32>
    %314 = vector.shape_cast %313 : vector<1x1x64xf32> to vector<1x64xf32>
    %c1_128 = arith.constant 1 : index
    %c3_129 = arith.constant 3 : index
    %c0_130 = arith.constant 0 : index
    %315 = vector.load %arg6[%c1_128, %c3_129, %c0_130] : memref<2x24x128xf32, #tpu.memory_space<vmem>>, vector<1x1x64xf32>
    %316 = vector.shape_cast %315 : vector<1x1x64xf32> to vector<1x64xf32>
    %c1_131 = arith.constant 1 : index
    %c4_132 = arith.constant 4 : index
    %c0_133 = arith.constant 0 : index
    %317 = vector.load %arg6[%c1_131, %c4_132, %c0_133] : memref<2x24x128xf32, #tpu.memory_space<vmem>>, vector<1x1x64xf32>
    %318 = vector.shape_cast %317 : vector<1x1x64xf32> to vector<1x64xf32>
    %c1_134 = arith.constant 1 : index
    %c5_135 = arith.constant 5 : index
    %c0_136 = arith.constant 0 : index
    %319 = vector.load %arg6[%c1_134, %c5_135, %c0_136] : memref<2x24x128xf32, #tpu.memory_space<vmem>>, vector<1x1x32xf32>
    %320 = vector.shape_cast %319 : vector<1x1x32xf32> to vector<1x32xf32>
    %c1_137 = arith.constant 1 : index
    %c6_138 = arith.constant 6 : index
    %c0_139 = arith.constant 0 : index
    %321 = vector.load %arg6[%c1_137, %c6_138, %c0_139] : memref<2x24x128xf32, #tpu.memory_space<vmem>>, vector<1x1x32xf32>
    %322 = vector.shape_cast %321 : vector<1x1x32xf32> to vector<1x32xf32>
    %c1_140 = arith.constant 1 : index
    %c7_141 = arith.constant 7 : index
    %c0_142 = arith.constant 0 : index
    %323 = vector.load %arg6[%c1_140, %c7_141, %c0_142] : memref<2x24x128xf32, #tpu.memory_space<vmem>>, vector<1x1x32xf32>
    %324 = vector.shape_cast %323 : vector<1x1x32xf32> to vector<1x32xf32>
    %c1_143 = arith.constant 1 : index
    %c8_144 = arith.constant 8 : index
    %c0_145 = arith.constant 0 : index
    %325 = vector.load %arg6[%c1_143, %c8_144, %c0_145] : memref<2x24x128xf32, #tpu.memory_space<vmem>>, vector<1x5x32xf32>
    %326 = vector.shape_cast %325 : vector<1x5x32xf32> to vector<5x32xf32>
    %c1_146 = arith.constant 1 : index
    %c13_147 = arith.constant 13 : index
    %c0_148 = arith.constant 0 : index
    %327 = vector.load %arg6[%c1_146, %c13_147, %c0_148] : memref<2x24x128xf32, #tpu.memory_space<vmem>>, vector<1x1x32xf32>
    %328 = vector.shape_cast %327 : vector<1x1x32xf32> to vector<1x32xf32>
    %c1_149 = arith.constant 1 : index
    %c14_150 = arith.constant 14 : index
    %c0_151 = arith.constant 0 : index
    %329 = vector.load %arg6[%c1_149, %c14_150, %c0_151] : memref<2x24x128xf32, #tpu.memory_space<vmem>>, vector<1x1x32xf32>
    %330 = vector.shape_cast %329 : vector<1x1x32xf32> to vector<1x32xf32>
    %c1_152 = arith.constant 1 : index
    %c15_153 = arith.constant 15 : index
    %c0_154 = arith.constant 0 : index
    %331 = vector.load %arg6[%c1_152, %c15_153, %c0_154] : memref<2x24x128xf32, #tpu.memory_space<vmem>>, vector<1x1x32xf32>
    %332 = vector.shape_cast %331 : vector<1x1x32xf32> to vector<1x32xf32>
    %c1_155 = arith.constant 1 : index
    %c16_156 = arith.constant 16 : index
    %c0_157 = arith.constant 0 : index
    %333 = vector.load %arg6[%c1_155, %c16_156, %c0_157] : memref<2x24x128xf32, #tpu.memory_space<vmem>>, vector<1x1x32xf32>
    %334 = vector.shape_cast %333 : vector<1x1x32xf32> to vector<1x32xf32>
    %cst_158 = arith.constant dense<0.000000e+00> : vector<8xf32>
    %335 = vector.multi_reduction <add>, %308, %cst_158 [1] : vector<8x32xf32> to vector<8xf32>
    %336 = vector.shape_cast %335 : vector<8xf32> to vector<8x1xf32>
    %cst_159 = arith.constant 3.200000e+01 : f32
    %337 = vector.broadcast %cst_159 : f32 to vector<8x1xf32>
    %338 = arith.divf %336, %337 : vector<8x1xf32>
    %339 = vector.broadcast %338 : vector<8x1xf32> to vector<8x32xf32>
    %340 = arith.subf %308, %339 : vector<8x32xf32>
    %341 = arith.mulf %340, %340 : vector<8x32xf32>
    %cst_160 = arith.constant dense<0.000000e+00> : vector<8xf32>
    %342 = vector.multi_reduction <add>, %341, %cst_160 [1] : vector<8x32xf32> to vector<8xf32>
    %343 = vector.shape_cast %342 : vector<8xf32> to vector<8x1xf32>
    %cst_161 = arith.constant 3.200000e+01 : f32
    %344 = vector.broadcast %cst_161 : f32 to vector<8x1xf32>
    %345 = arith.divf %343, %344 : vector<8x1xf32>
    %346 = vector.broadcast %338 : vector<8x1xf32> to vector<8x32xf32>
    %347 = arith.subf %308, %346 : vector<8x32xf32>
    %cst_162 = arith.constant 9.99999974E-6 : f32
    %348 = vector.broadcast %cst_162 : f32 to vector<8x1xf32>
    %349 = arith.addf %345, %348 : vector<8x1xf32>
    %350 = math.rsqrt %349 : vector<8x1xf32>
    %351 = vector.broadcast %350 : vector<8x1xf32> to vector<8x32xf32>
    %352 = arith.mulf %347, %351 : vector<8x32xf32>
    %353 = vector.broadcast %310 : vector<1x32xf32> to vector<8x32xf32>
    %354 = arith.mulf %352, %353 : vector<8x32xf32>
    %355 = vector.broadcast %312 : vector<1x32xf32> to vector<8x32xf32>
    %356 = arith.addf %354, %355 : vector<8x32xf32>
    %357 = arith.truncf %356 : vector<8x32xf32> to vector<8x32xbf16>
    %c1_163 = arith.constant 1 : index
    %c64_164 = arith.constant 64 : index
    %c0_165 = arith.constant 0 : index
    %358 = vector.load %arg5[%c1_163, %c64_164, %c0_165] : memref<2x160x64xbf16, #tpu.memory_space<vmem>>, vector<1x32x64xbf16>
    %359 = vector.shape_cast %358 : vector<1x32x64xbf16> to vector<32x64xbf16>
    %cst_166 = arith.constant dense<0.000000e+00> : vector<8x64xf32>
    %360 = tpu.matmul %357, %359, %cst_166 {dimension_numbers = #tpu.dot_dimension_numbers<[1], [0], [0], [1], [0, 0, 1, 1], [], []>} : vector<8x32xbf16>, vector<32x64xbf16>, vector<8x64xf32> -> vector<8x64xf32>
    %361 = vector.broadcast %314 : vector<1x64xf32> to vector<8x64xf32>
    %362 = arith.addf %360, %361 : vector<8x64xf32>
    %cst_167 = arith.constant 0.000000e+00 : f32
    %363 = vector.broadcast %cst_167 : f32 to vector<8x64xf32>
    %364 = arith.maximumf %362, %363 : vector<8x64xf32>
    %cst_168 = arith.constant dense<0.000000e+00> : vector<8xf32>
    %365 = vector.multi_reduction <add>, %364, %cst_168 [1] : vector<8x64xf32> to vector<8xf32>
    %366 = vector.shape_cast %365 : vector<8xf32> to vector<8x1xf32>
    %cst_169 = arith.constant 6.400000e+01 : f32
    %367 = vector.broadcast %cst_169 : f32 to vector<8x1xf32>
    %368 = arith.divf %366, %367 : vector<8x1xf32>
    %369 = vector.broadcast %368 : vector<8x1xf32> to vector<8x64xf32>
    %370 = arith.subf %364, %369 : vector<8x64xf32>
    %371 = arith.mulf %370, %370 : vector<8x64xf32>
    %cst_170 = arith.constant dense<0.000000e+00> : vector<8xf32>
    %372 = vector.multi_reduction <add>, %371, %cst_170 [1] : vector<8x64xf32> to vector<8xf32>
    %373 = vector.shape_cast %372 : vector<8xf32> to vector<8x1xf32>
    %cst_171 = arith.constant 6.400000e+01 : f32
    %374 = vector.broadcast %cst_171 : f32 to vector<8x1xf32>
    %375 = arith.divf %373, %374 : vector<8x1xf32>
    %376 = vector.broadcast %368 : vector<8x1xf32> to vector<8x64xf32>
    %377 = arith.subf %364, %376 : vector<8x64xf32>
    %cst_172 = arith.constant 9.99999974E-6 : f32
    %378 = vector.broadcast %cst_172 : f32 to vector<8x1xf32>
    %379 = arith.addf %375, %378 : vector<8x1xf32>
    %380 = math.rsqrt %379 : vector<8x1xf32>
    %381 = vector.broadcast %380 : vector<8x1xf32> to vector<8x64xf32>
    %382 = arith.mulf %377, %381 : vector<8x64xf32>
    %383 = vector.broadcast %316 : vector<1x64xf32> to vector<8x64xf32>
    %384 = arith.mulf %382, %383 : vector<8x64xf32>
    %385 = vector.broadcast %318 : vector<1x64xf32> to vector<8x64xf32>
    %386 = arith.addf %384, %385 : vector<8x64xf32>
    %387 = arith.truncf %386 : vector<8x64xf32> to vector<8x64xbf16>
    %c1_173 = arith.constant 1 : index
    %c96_174 = arith.constant 96 : index
    %c0_175 = arith.constant 0 : index
    %388 = vector.load %arg5[%c1_173, %c96_174, %c0_175] : memref<2x160x64xbf16, #tpu.memory_space<vmem>>, vector<1x64x32xbf16>
    %389 = vector.shape_cast %388 : vector<1x64x32xbf16> to vector<64x32xbf16>
    %cst_176 = arith.constant dense<0.000000e+00> : vector<8x32xf32>
    %390 = tpu.matmul %387, %389, %cst_176 {dimension_numbers = #tpu.dot_dimension_numbers<[1], [0], [0], [1], [0, 0, 1, 1], [], []>} : vector<8x64xbf16>, vector<64x32xbf16>, vector<8x32xf32> -> vector<8x32xf32>
    %391 = vector.broadcast %320 : vector<1x32xf32> to vector<8x32xf32>
    %392 = arith.addf %390, %391 : vector<8x32xf32>
    %cst_177 = arith.constant dense<0.000000e+00> : vector<8xf32>
    %393 = vector.multi_reduction <add>, %392, %cst_177 [1] : vector<8x32xf32> to vector<8xf32>
    %394 = vector.shape_cast %393 : vector<8xf32> to vector<8x1xf32>
    %cst_178 = arith.constant 3.200000e+01 : f32
    %395 = vector.broadcast %cst_178 : f32 to vector<8x1xf32>
    %396 = arith.divf %394, %395 : vector<8x1xf32>
    %397 = vector.broadcast %396 : vector<8x1xf32> to vector<8x32xf32>
    %398 = arith.subf %392, %397 : vector<8x32xf32>
    %399 = arith.mulf %398, %398 : vector<8x32xf32>
    %cst_179 = arith.constant dense<0.000000e+00> : vector<8xf32>
    %400 = vector.multi_reduction <add>, %399, %cst_179 [1] : vector<8x32xf32> to vector<8xf32>
    %401 = vector.shape_cast %400 : vector<8xf32> to vector<8x1xf32>
    %cst_180 = arith.constant 3.200000e+01 : f32
    %402 = vector.broadcast %cst_180 : f32 to vector<8x1xf32>
    %403 = arith.divf %401, %402 : vector<8x1xf32>
    %404 = vector.broadcast %396 : vector<8x1xf32> to vector<8x32xf32>
    %405 = arith.subf %392, %404 : vector<8x32xf32>
    %cst_181 = arith.constant 9.99999974E-6 : f32
    %406 = vector.broadcast %cst_181 : f32 to vector<8x1xf32>
    %407 = arith.addf %403, %406 : vector<8x1xf32>
    %408 = math.rsqrt %407 : vector<8x1xf32>
    %409 = vector.broadcast %408 : vector<8x1xf32> to vector<8x32xf32>
    %410 = arith.mulf %405, %409 : vector<8x32xf32>
    %411 = vector.broadcast %322 : vector<1x32xf32> to vector<8x32xf32>
    %412 = arith.mulf %410, %411 : vector<8x32xf32>
    %413 = vector.broadcast %324 : vector<1x32xf32> to vector<8x32xf32>
    %414 = arith.addf %412, %413 : vector<8x32xf32>
    %c1_182 = arith.constant 1 : index
    %c2_183 = arith.constant 2 : index
    %c0_184 = arith.constant 0 : index
    %415 = vector.load %arg2[%c1_182, %c2_183, %c0_184] : memref<2x6x32xf32, #tpu.memory_space<vmem>>, vector<1x4x32xf32>
    %416 = vector.shape_cast %415 : vector<1x4x32xf32> to vector<4x32xf32>
    %417 = tpu.concatenate %416, %414 in 0 : vector<4x32xf32>, vector<8x32xf32> -> vector<12x32xf32>
    %418 = vector.extract_strided_slice %417 {offsets = [0, 0], sizes = [8, 32], strides = [1, 1]} : vector<12x32xf32> to vector<8x32xf32>
    %419 = vector.extract_strided_slice %326 {offsets = [0, 0], sizes = [1, 32], strides = [1, 1]} : vector<5x32xf32> to vector<1x32xf32>
    %420 = vector.broadcast %419 : vector<1x32xf32> to vector<8x32xf32>
    %421 = arith.mulf %418, %420 : vector<8x32xf32>
    %422 = vector.extract_strided_slice %417 {offsets = [1, 0], sizes = [8, 32], strides = [1, 1]} : vector<12x32xf32> to vector<8x32xf32>
    %423 = vector.extract_strided_slice %326 {offsets = [1, 0], sizes = [1, 32], strides = [1, 1]} : vector<5x32xf32> to vector<1x32xf32>
    %424 = vector.broadcast %423 : vector<1x32xf32> to vector<8x32xf32>
    %425 = arith.mulf %422, %424 : vector<8x32xf32>
    %426 = arith.addf %421, %425 : vector<8x32xf32>
    %427 = vector.extract_strided_slice %417 {offsets = [2, 0], sizes = [8, 32], strides = [1, 1]} : vector<12x32xf32> to vector<8x32xf32>
    %428 = vector.extract_strided_slice %326 {offsets = [2, 0], sizes = [1, 32], strides = [1, 1]} : vector<5x32xf32> to vector<1x32xf32>
    %429 = vector.broadcast %428 : vector<1x32xf32> to vector<8x32xf32>
    %430 = arith.mulf %427, %429 : vector<8x32xf32>
    %431 = arith.addf %426, %430 : vector<8x32xf32>
    %432 = vector.extract_strided_slice %417 {offsets = [3, 0], sizes = [8, 32], strides = [1, 1]} : vector<12x32xf32> to vector<8x32xf32>
    %433 = vector.extract_strided_slice %326 {offsets = [3, 0], sizes = [1, 32], strides = [1, 1]} : vector<5x32xf32> to vector<1x32xf32>
    %434 = vector.broadcast %433 : vector<1x32xf32> to vector<8x32xf32>
    %435 = arith.mulf %432, %434 : vector<8x32xf32>
    %436 = arith.addf %431, %435 : vector<8x32xf32>
    %437 = vector.extract_strided_slice %417 {offsets = [4, 0], sizes = [8, 32], strides = [1, 1]} : vector<12x32xf32> to vector<8x32xf32>
    %438 = vector.extract_strided_slice %326 {offsets = [4, 0], sizes = [1, 32], strides = [1, 1]} : vector<5x32xf32> to vector<1x32xf32>
    %439 = vector.broadcast %438 : vector<1x32xf32> to vector<8x32xf32>
    %440 = arith.mulf %437, %439 : vector<8x32xf32>
    %441 = arith.addf %436, %440 : vector<8x32xf32>
    %442 = arith.addf %441, %414 : vector<8x32xf32>
    %443 = arith.addf %442, %308 : vector<8x32xf32>
    %c1_185 = arith.constant 1 : index
    %c0_186 = arith.constant 0 : index
    %c0_187 = arith.constant 0 : index
    %444 = vector.load %arg9[%c1_185, %c0_186, %c0_187] : memref<2x12x32xf32, #tpu.memory_space<vmem>>, vector<1x12x32xf32>
    %445 = vector.shape_cast %444 : vector<1x12x32xf32> to vector<12x32xf32>
    %446 = vector.shape_cast %417 : vector<12x32xf32> to vector<1x12x32xf32>
    tpu.vector_store %arg9[%c1_185, %c0_186, %c0_187], %446 {strides = array<i32>} : memref<2x12x32xf32, #tpu.memory_space<vmem>>, vector<1x12x32xf32>,
    %cst_188 = arith.constant dense<0.000000e+00> : vector<8xf32>
    %447 = vector.multi_reduction <add>, %443, %cst_188 [1] : vector<8x32xf32> to vector<8xf32>
    %448 = vector.shape_cast %447 : vector<8xf32> to vector<8x1xf32>
    %cst_189 = arith.constant 3.200000e+01 : f32
    %449 = vector.broadcast %cst_189 : f32 to vector<8x1xf32>
    %450 = arith.divf %448, %449 : vector<8x1xf32>
    %451 = vector.broadcast %450 : vector<8x1xf32> to vector<8x32xf32>
    %452 = arith.subf %443, %451 : vector<8x32xf32>
    %453 = arith.mulf %452, %452 : vector<8x32xf32>
    %cst_190 = arith.constant dense<0.000000e+00> : vector<8xf32>
    %454 = vector.multi_reduction <add>, %453, %cst_190 [1] : vector<8x32xf32> to vector<8xf32>
    %455 = vector.shape_cast %454 : vector<8xf32> to vector<8x1xf32>
    %cst_191 = arith.constant 3.200000e+01 : f32
    %456 = vector.broadcast %cst_191 : f32 to vector<8x1xf32>
    %457 = arith.divf %455, %456 : vector<8x1xf32>
    %458 = vector.broadcast %450 : vector<8x1xf32> to vector<8x32xf32>
    %459 = arith.subf %443, %458 : vector<8x32xf32>
    %cst_192 = arith.constant 9.99999974E-6 : f32
    %460 = vector.broadcast %cst_192 : f32 to vector<8x1xf32>
    %461 = arith.addf %457, %460 : vector<8x1xf32>
    %462 = math.rsqrt %461 : vector<8x1xf32>
    %463 = vector.broadcast %462 : vector<8x1xf32> to vector<8x32xf32>
    %464 = arith.mulf %459, %463 : vector<8x32xf32>
    %465 = vector.broadcast %328 : vector<1x32xf32> to vector<8x32xf32>
    %466 = arith.mulf %464, %465 : vector<8x32xf32>
    %467 = vector.broadcast %330 : vector<1x32xf32> to vector<8x32xf32>
    %468 = arith.addf %466, %467 : vector<8x32xf32>
    %469 = arith.truncf %468 : vector<8x32xf32> to vector<8x32xbf16>
    %c1_193 = arith.constant 1 : index
    %c0_194 = arith.constant 0 : index
    %c0_195 = arith.constant 0 : index
    %470 = vector.load %arg5[%c1_193, %c0_194, %c0_195] : memref<2x160x64xbf16, #tpu.memory_space<vmem>>, vector<1x32x32xbf16>
    %471 = vector.shape_cast %470 : vector<1x32x32xbf16> to vector<32x32xbf16>
    %cst_196 = arith.constant dense<0.000000e+00> : vector<8x32xf32>
    %472 = tpu.matmul %469, %471, %cst_196 {dimension_numbers = #tpu.dot_dimension_numbers<[1], [0], [0], [1], [0, 0, 1, 1], [], []>} : vector<8x32xbf16>, vector<32x32xbf16>, vector<8x32xf32> -> vector<8x32xf32>
    %473 = vector.broadcast %332 : vector<1x32xf32> to vector<8x32xf32>
    %474 = arith.addf %472, %473 : vector<8x32xf32>
    %475 = vector.extract_strided_slice %7 {offsets = [0, 64], sizes = [16, 32], strides = [1, 1]} : vector<16x128xf32> to vector<16x32xf32>
    %476 = vector.extract_strided_slice %7 {offsets = [0, 96], sizes = [16, 32], strides = [1, 1]} : vector<16x128xf32> to vector<16x32xf32>
    %477 = vector.extract_strided_slice %10 {offsets = [0, 64], sizes = [4, 32], strides = [1, 1]} : vector<4x128xf32> to vector<4x32xf32>
    %478 = vector.extract_strided_slice %10 {offsets = [0, 96], sizes = [4, 32], strides = [1, 1]} : vector<4x128xf32> to vector<4x32xf32>
    %479 = vector.extract_strided_slice %474 {offsets = [0, 0], sizes = [8, 8], strides = [1, 1]} : vector<8x32xf32> to vector<8x8xf32>
    %480 = vector.extract_strided_slice %475 {offsets = [0, 0], sizes = [16, 8], strides = [1, 1]} : vector<16x32xf32> to vector<16x8xf32>
    %481 = vector.extract_strided_slice %476 {offsets = [0, 0], sizes = [16, 8], strides = [1, 1]} : vector<16x32xf32> to vector<16x8xf32>
    %482 = vector.extract_strided_slice %477 {offsets = [0, 0], sizes = [4, 8], strides = [1, 1]} : vector<4x32xf32> to vector<4x8xf32>
    %483 = vector.extract_strided_slice %478 {offsets = [0, 0], sizes = [4, 8], strides = [1, 1]} : vector<4x32xf32> to vector<4x8xf32>
    %cst_197 = arith.constant dense<0.000000e+00> : vector<8x4xf32>
    %484 = tpu.matmul %479, %482, %cst_197 {dimension_numbers = #tpu.dot_dimension_numbers<[1], [1], [0], [0], [0, 0, 1, 0], [], []>} : vector<8x8xf32>, vector<4x8xf32>, vector<8x4xf32> -> vector<8x4xf32>
    %cst_198 = arith.constant dense<0.000000e+00> : vector<8x16xf32>
    %485 = tpu.matmul %479, %480, %cst_198 {dimension_numbers = #tpu.dot_dimension_numbers<[1], [1], [0], [0], [0, 0, 1, 0], [], []>} : vector<8x8xf32>, vector<16x8xf32>, vector<8x16xf32> -> vector<8x16xf32>
    %cst_199 = arith.constant dense<0xFF800000> : vector<8xf32>
    %486 = vector.multi_reduction <maximumf>, %484, %cst_199 [1] : vector<8x4xf32> to vector<8xf32>
    %487 = vector.shape_cast %486 : vector<8xf32> to vector<8x1xf32>
    %cst_200 = arith.constant dense<0xFF800000> : vector<8xf32>
    %488 = vector.multi_reduction <maximumf>, %485, %cst_200 [1] : vector<8x16xf32> to vector<8xf32>
    %489 = vector.shape_cast %488 : vector<8xf32> to vector<8x1xf32>
    %490 = arith.maximumf %487, %489 : vector<8x1xf32>
    %491 = vector.broadcast %490 : vector<8x1xf32> to vector<8x4xf32>
    %492 = arith.subf %484, %491 : vector<8x4xf32>
    %493 = math.exp %492 : vector<8x4xf32>
    %494 = vector.broadcast %490 : vector<8x1xf32> to vector<8x16xf32>
    %495 = arith.subf %485, %494 : vector<8x16xf32>
    %496 = math.exp %495 : vector<8x16xf32>
    %cst_201 = arith.constant dense<0.000000e+00> : vector<8xf32>
    %497 = vector.multi_reduction <add>, %493, %cst_201 [1] : vector<8x4xf32> to vector<8xf32>
    %498 = vector.shape_cast %497 : vector<8xf32> to vector<8x1xf32>
    %cst_202 = arith.constant dense<0.000000e+00> : vector<8xf32>
    %499 = vector.multi_reduction <add>, %496, %cst_202 [1] : vector<8x16xf32> to vector<8xf32>
    %500 = vector.shape_cast %499 : vector<8xf32> to vector<8x1xf32>
    %501 = arith.addf %498, %500 : vector<8x1xf32>
    %502 = tpu.reciprocal %501 {approx = true} : vector<8x1xf32> -> vector<8x1xf32>
    %cst_203 = arith.constant dense<0.000000e+00> : vector<8x8xf32>
    %503 = tpu.matmul %493, %483, %cst_203 {dimension_numbers = #tpu.dot_dimension_numbers<[1], [0], [0], [1], [0, 0, 1, 1], [], []>} : vector<8x4xf32>, vector<4x8xf32>, vector<8x8xf32> -> vector<8x8xf32>
    %cst_204 = arith.constant dense<0.000000e+00> : vector<8x8xf32>
    %504 = tpu.matmul %496, %481, %cst_204 {dimension_numbers = #tpu.dot_dimension_numbers<[1], [0], [0], [1], [0, 0, 1, 1], [], []>} : vector<8x16xf32>, vector<16x8xf32>, vector<8x8xf32> -> vector<8x8xf32>
    %505 = arith.addf %503, %504 : vector<8x8xf32>
    %506 = vector.broadcast %502 : vector<8x1xf32> to vector<8x8xf32>
    %507 = arith.mulf %505, %506 : vector<8x8xf32>
    %c0_205 = arith.constant 0 : index
    %c0_206 = arith.constant 0 : index
    %508 = vector.load %arg12[%c0_205, %c0_206] : memref<8x32xf32, #tpu.memory_space<vmem>>, vector<8x8xf32>
    tpu.vector_store %arg12[%c0_205, %c0_206], %507 {strides = array<i32>} : memref<8x32xf32, #tpu.memory_space<vmem>>, vector<8x8xf32>,
    %509 = vector.extract_strided_slice %474 {offsets = [0, 8], sizes = [8, 8], strides = [1, 1]} : vector<8x32xf32> to vector<8x8xf32>
    %510 = vector.extract_strided_slice %475 {offsets = [0, 8], sizes = [16, 8], strides = [1, 1]} : vector<16x32xf32> to vector<16x8xf32>
    %511 = vector.extract_strided_slice %476 {offsets = [0, 8], sizes = [16, 8], strides = [1, 1]} : vector<16x32xf32> to vector<16x8xf32>
    %512 = vector.extract_strided_slice %477 {offsets = [0, 8], sizes = [4, 8], strides = [1, 1]} : vector<4x32xf32> to vector<4x8xf32>
    %513 = vector.extract_strided_slice %478 {offsets = [0, 8], sizes = [4, 8], strides = [1, 1]} : vector<4x32xf32> to vector<4x8xf32>
    %cst_207 = arith.constant dense<0.000000e+00> : vector<8x4xf32>
    %514 = tpu.matmul %509, %512, %cst_207 {dimension_numbers = #tpu.dot_dimension_numbers<[1], [1], [0], [0], [0, 0, 1, 0], [], []>} : vector<8x8xf32>, vector<4x8xf32>, vector<8x4xf32> -> vector<8x4xf32>
    %cst_208 = arith.constant dense<0.000000e+00> : vector<8x16xf32>
    %515 = tpu.matmul %509, %510, %cst_208 {dimension_numbers = #tpu.dot_dimension_numbers<[1], [1], [0], [0], [0, 0, 1, 0], [], []>} : vector<8x8xf32>, vector<16x8xf32>, vector<8x16xf32> -> vector<8x16xf32>
    %cst_209 = arith.constant dense<0xFF800000> : vector<8xf32>
    %516 = vector.multi_reduction <maximumf>, %514, %cst_209 [1] : vector<8x4xf32> to vector<8xf32>
    %517 = vector.shape_cast %516 : vector<8xf32> to vector<8x1xf32>
    %cst_210 = arith.constant dense<0xFF800000> : vector<8xf32>
    %518 = vector.multi_reduction <maximumf>, %515, %cst_210 [1] : vector<8x16xf32> to vector<8xf32>
    %519 = vector.shape_cast %518 : vector<8xf32> to vector<8x1xf32>
    %520 = arith.maximumf %517, %519 : vector<8x1xf32>
    %521 = vector.broadcast %520 : vector<8x1xf32> to vector<8x4xf32>
    %522 = arith.subf %514, %521 : vector<8x4xf32>
    %523 = math.exp %522 : vector<8x4xf32>
    %524 = vector.broadcast %520 : vector<8x1xf32> to vector<8x16xf32>
    %525 = arith.subf %515, %524 : vector<8x16xf32>
    %526 = math.exp %525 : vector<8x16xf32>
    %cst_211 = arith.constant dense<0.000000e+00> : vector<8xf32>
    %527 = vector.multi_reduction <add>, %523, %cst_211 [1] : vector<8x4xf32> to vector<8xf32>
    %528 = vector.shape_cast %527 : vector<8xf32> to vector<8x1xf32>
    %cst_212 = arith.constant dense<0.000000e+00> : vector<8xf32>
    %529 = vector.multi_reduction <add>, %526, %cst_212 [1] : vector<8x16xf32> to vector<8xf32>
    %530 = vector.shape_cast %529 : vector<8xf32> to vector<8x1xf32>
    %531 = arith.addf %528, %530 : vector<8x1xf32>
    %532 = tpu.reciprocal %531 {approx = true} : vector<8x1xf32> -> vector<8x1xf32>
    %cst_213 = arith.constant dense<0.000000e+00> : vector<8x8xf32>
    %533 = tpu.matmul %523, %513, %cst_213 {dimension_numbers = #tpu.dot_dimension_numbers<[1], [0], [0], [1], [0, 0, 1, 1], [], []>} : vector<8x4xf32>, vector<4x8xf32>, vector<8x8xf32> -> vector<8x8xf32>
    %cst_214 = arith.constant dense<0.000000e+00> : vector<8x8xf32>
    %534 = tpu.matmul %526, %511, %cst_214 {dimension_numbers = #tpu.dot_dimension_numbers<[1], [0], [0], [1], [0, 0, 1, 1], [], []>} : vector<8x16xf32>, vector<16x8xf32>, vector<8x8xf32> -> vector<8x8xf32>
    %535 = arith.addf %533, %534 : vector<8x8xf32>
    %536 = vector.broadcast %532 : vector<8x1xf32> to vector<8x8xf32>
    %537 = arith.mulf %535, %536 : vector<8x8xf32>
    %c0_215 = arith.constant 0 : index
    %c8_216 = arith.constant 8 : index
    %538 = vector.load %arg12[%c0_215, %c8_216] : memref<8x32xf32, #tpu.memory_space<vmem>>, vector<8x8xf32>
    tpu.vector_store %arg12[%c0_215, %c8_216], %537 {strides = array<i32>} : memref<8x32xf32, #tpu.memory_space<vmem>>, vector<8x8xf32>,
    %539 = vector.extract_strided_slice %474 {offsets = [0, 16], sizes = [8, 8], strides = [1, 1]} : vector<8x32xf32> to vector<8x8xf32>
    %540 = vector.extract_strided_slice %475 {offsets = [0, 16], sizes = [16, 8], strides = [1, 1]} : vector<16x32xf32> to vector<16x8xf32>
    %541 = vector.extract_strided_slice %476 {offsets = [0, 16], sizes = [16, 8], strides = [1, 1]} : vector<16x32xf32> to vector<16x8xf32>
    %542 = vector.extract_strided_slice %477 {offsets = [0, 16], sizes = [4, 8], strides = [1, 1]} : vector<4x32xf32> to vector<4x8xf32>
    %543 = vector.extract_strided_slice %478 {offsets = [0, 16], sizes = [4, 8], strides = [1, 1]} : vector<4x32xf32> to vector<4x8xf32>
    %cst_217 = arith.constant dense<0.000000e+00> : vector<8x4xf32>
    %544 = tpu.matmul %539, %542, %cst_217 {dimension_numbers = #tpu.dot_dimension_numbers<[1], [1], [0], [0], [0, 0, 1, 0], [], []>} : vector<8x8xf32>, vector<4x8xf32>, vector<8x4xf32> -> vector<8x4xf32>
    %cst_218 = arith.constant dense<0.000000e+00> : vector<8x16xf32>
    %545 = tpu.matmul %539, %540, %cst_218 {dimension_numbers = #tpu.dot_dimension_numbers<[1], [1], [0], [0], [0, 0, 1, 0], [], []>} : vector<8x8xf32>, vector<16x8xf32>, vector<8x16xf32> -> vector<8x16xf32>
    %cst_219 = arith.constant dense<0xFF800000> : vector<8xf32>
    %546 = vector.multi_reduction <maximumf>, %544, %cst_219 [1] : vector<8x4xf32> to vector<8xf32>
    %547 = vector.shape_cast %546 : vector<8xf32> to vector<8x1xf32>
    %cst_220 = arith.constant dense<0xFF800000> : vector<8xf32>
    %548 = vector.multi_reduction <maximumf>, %545, %cst_220 [1] : vector<8x16xf32> to vector<8xf32>
    %549 = vector.shape_cast %548 : vector<8xf32> to vector<8x1xf32>
    %550 = arith.maximumf %547, %549 : vector<8x1xf32>
    %551 = vector.broadcast %550 : vector<8x1xf32> to vector<8x4xf32>
    %552 = arith.subf %544, %551 : vector<8x4xf32>
    %553 = math.exp %552 : vector<8x4xf32>
    %554 = vector.broadcast %550 : vector<8x1xf32> to vector<8x16xf32>
    %555 = arith.subf %545, %554 : vector<8x16xf32>
    %556 = math.exp %555 : vector<8x16xf32>
    %cst_221 = arith.constant dense<0.000000e+00> : vector<8xf32>
    %557 = vector.multi_reduction <add>, %553, %cst_221 [1] : vector<8x4xf32> to vector<8xf32>
    %558 = vector.shape_cast %557 : vector<8xf32> to vector<8x1xf32>
    %cst_222 = arith.constant dense<0.000000e+00> : vector<8xf32>
    %559 = vector.multi_reduction <add>, %556, %cst_222 [1] : vector<8x16xf32> to vector<8xf32>
    %560 = vector.shape_cast %559 : vector<8xf32> to vector<8x1xf32>
    %561 = arith.addf %558, %560 : vector<8x1xf32>
    %562 = tpu.reciprocal %561 {approx = true} : vector<8x1xf32> -> vector<8x1xf32>
    %cst_223 = arith.constant dense<0.000000e+00> : vector<8x8xf32>
    %563 = tpu.matmul %553, %543, %cst_223 {dimension_numbers = #tpu.dot_dimension_numbers<[1], [0], [0], [1], [0, 0, 1, 1], [], []>} : vector<8x4xf32>, vector<4x8xf32>, vector<8x8xf32> -> vector<8x8xf32>
    %cst_224 = arith.constant dense<0.000000e+00> : vector<8x8xf32>
    %564 = tpu.matmul %556, %541, %cst_224 {dimension_numbers = #tpu.dot_dimension_numbers<[1], [0], [0], [1], [0, 0, 1, 1], [], []>} : vector<8x16xf32>, vector<16x8xf32>, vector<8x8xf32> -> vector<8x8xf32>
    %565 = arith.addf %563, %564 : vector<8x8xf32>
    %566 = vector.broadcast %562 : vector<8x1xf32> to vector<8x8xf32>
    %567 = arith.mulf %565, %566 : vector<8x8xf32>
    %c0_225 = arith.constant 0 : index
    %c16_226 = arith.constant 16 : index
    %568 = vector.load %arg12[%c0_225, %c16_226] : memref<8x32xf32, #tpu.memory_space<vmem>>, vector<8x8xf32>
    tpu.vector_store %arg12[%c0_225, %c16_226], %567 {strides = array<i32>} : memref<8x32xf32, #tpu.memory_space<vmem>>, vector<8x8xf32>,
    %569 = vector.extract_strided_slice %474 {offsets = [0, 24], sizes = [8, 8], strides = [1, 1]} : vector<8x32xf32> to vector<8x8xf32>
    %570 = vector.extract_strided_slice %475 {offsets = [0, 24], sizes = [16, 8], strides = [1, 1]} : vector<16x32xf32> to vector<16x8xf32>
    %571 = vector.extract_strided_slice %476 {offsets = [0, 24], sizes = [16, 8], strides = [1, 1]} : vector<16x32xf32> to vector<16x8xf32>
    %572 = vector.extract_strided_slice %477 {offsets = [0, 24], sizes = [4, 8], strides = [1, 1]} : vector<4x32xf32> to vector<4x8xf32>
    %573 = vector.extract_strided_slice %478 {offsets = [0, 24], sizes = [4, 8], strides = [1, 1]} : vector<4x32xf32> to vector<4x8xf32>
    %cst_227 = arith.constant dense<0.000000e+00> : vector<8x4xf32>
    %574 = tpu.matmul %569, %572, %cst_227 {dimension_numbers = #tpu.dot_dimension_numbers<[1], [1], [0], [0], [0, 0, 1, 0], [], []>} : vector<8x8xf32>, vector<4x8xf32>, vector<8x4xf32> -> vector<8x4xf32>
    %cst_228 = arith.constant dense<0.000000e+00> : vector<8x16xf32>
    %575 = tpu.matmul %569, %570, %cst_228 {dimension_numbers = #tpu.dot_dimension_numbers<[1], [1], [0], [0], [0, 0, 1, 0], [], []>} : vector<8x8xf32>, vector<16x8xf32>, vector<8x16xf32> -> vector<8x16xf32>
    %cst_229 = arith.constant dense<0xFF800000> : vector<8xf32>
    %576 = vector.multi_reduction <maximumf>, %574, %cst_229 [1] : vector<8x4xf32> to vector<8xf32>
    %577 = vector.shape_cast %576 : vector<8xf32> to vector<8x1xf32>
    %cst_230 = arith.constant dense<0xFF800000> : vector<8xf32>
    %578 = vector.multi_reduction <maximumf>, %575, %cst_230 [1] : vector<8x16xf32> to vector<8xf32>
    %579 = vector.shape_cast %578 : vector<8xf32> to vector<8x1xf32>
    %580 = arith.maximumf %577, %579 : vector<8x1xf32>
    %581 = vector.broadcast %580 : vector<8x1xf32> to vector<8x4xf32>
    %582 = arith.subf %574, %581 : vector<8x4xf32>
    %583 = math.exp %582 : vector<8x4xf32>
    %584 = vector.broadcast %580 : vector<8x1xf32> to vector<8x16xf32>
    %585 = arith.subf %575, %584 : vector<8x16xf32>
    %586 = math.exp %585 : vector<8x16xf32>
    %cst_231 = arith.constant dense<0.000000e+00> : vector<8xf32>
    %587 = vector.multi_reduction <add>, %583, %cst_231 [1] : vector<8x4xf32> to vector<8xf32>
    %588 = vector.shape_cast %587 : vector<8xf32> to vector<8x1xf32>
    %cst_232 = arith.constant dense<0.000000e+00> : vector<8xf32>
    %589 = vector.multi_reduction <add>, %586, %cst_232 [1] : vector<8x16xf32> to vector<8xf32>
    %590 = vector.shape_cast %589 : vector<8xf32> to vector<8x1xf32>
    %591 = arith.addf %588, %590 : vector<8x1xf32>
    %592 = tpu.reciprocal %591 {approx = true} : vector<8x1xf32> -> vector<8x1xf32>
    %cst_233 = arith.constant dense<0.000000e+00> : vector<8x8xf32>
    %593 = tpu.matmul %583, %573, %cst_233 {dimension_numbers = #tpu.dot_dimension_numbers<[1], [0], [0], [1], [0, 0, 1, 1], [], []>} : vector<8x4xf32>, vector<4x8xf32>, vector<8x8xf32> -> vector<8x8xf32>
    %cst_234 = arith.constant dense<0.000000e+00> : vector<8x8xf32>
    %594 = tpu.matmul %586, %571, %cst_234 {dimension_numbers = #tpu.dot_dimension_numbers<[1], [0], [0], [1], [0, 0, 1, 1], [], []>} : vector<8x16xf32>, vector<16x8xf32>, vector<8x8xf32> -> vector<8x8xf32>
    %595 = arith.addf %593, %594 : vector<8x8xf32>
    %596 = vector.broadcast %592 : vector<8x1xf32> to vector<8x8xf32>
    %597 = arith.mulf %595, %596 : vector<8x8xf32>
    %c0_235 = arith.constant 0 : index
    %c24_236 = arith.constant 24 : index
    %598 = vector.load %arg12[%c0_235, %c24_236] : memref<8x32xf32, #tpu.memory_space<vmem>>, vector<8x8xf32>
    tpu.vector_store %arg12[%c0_235, %c24_236], %597 {strides = array<i32>} : memref<8x32xf32, #tpu.memory_space<vmem>>, vector<8x8xf32>,
    %c0_237 = arith.constant 0 : index
    %c0_238 = arith.constant 0 : index
    %599 = vector.load %arg12[%c0_237, %c0_238] : memref<8x32xf32, #tpu.memory_space<vmem>>, vector<8x32xf32>
    %600 = arith.truncf %599 : vector<8x32xf32> to vector<8x32xbf16>
    %c1_239 = arith.constant 1 : index
    %c32_240 = arith.constant 32 : index
    %c0_241 = arith.constant 0 : index
    %601 = vector.load %arg5[%c1_239, %c32_240, %c0_241] : memref<2x160x64xbf16, #tpu.memory_space<vmem>>, vector<1x32x32xbf16>
    %602 = vector.shape_cast %601 : vector<1x32x32xbf16> to vector<32x32xbf16>
    %cst_242 = arith.constant dense<0.000000e+00> : vector<8x32xf32>
    %603 = tpu.matmul %600, %602, %cst_242 {dimension_numbers = #tpu.dot_dimension_numbers<[1], [0], [0], [1], [0, 0, 1, 1], [], []>} : vector<8x32xbf16>, vector<32x32xbf16>, vector<8x32xf32> -> vector<8x32xf32>
    %604 = vector.broadcast %334 : vector<1x32xf32> to vector<8x32xf32>
    %605 = arith.addf %603, %604 : vector<8x32xf32>
    %606 = arith.addf %443, %605 : vector<8x32xf32>
    %c1_243 = arith.constant 1 : index
    %c0_244 = arith.constant 0 : index
    %607 = vector.load %arg8[%c1_243, %c0_244] : memref<16x128xf32, #tpu.memory_space<vmem>>, vector<1x32xf32>
    %c2_245 = arith.constant 2 : index
    %c0_246 = arith.constant 0 : index
    %608 = vector.load %arg8[%c2_245, %c0_246] : memref<16x128xf32, #tpu.memory_space<vmem>>, vector<1x32xf32>
    %c3_247 = arith.constant 3 : index
    %c0_248 = arith.constant 0 : index
    %609 = vector.load %arg8[%c3_247, %c0_248] : memref<16x128xf32, #tpu.memory_space<vmem>>, vector<1x64xf32>
    %c4_249 = arith.constant 4 : index
    %c0_250 = arith.constant 0 : index
    %610 = vector.load %arg8[%c4_249, %c0_250] : memref<16x128xf32, #tpu.memory_space<vmem>>, vector<1x64xf32>
    %c5_251 = arith.constant 5 : index
    %c0_252 = arith.constant 0 : index
    %611 = vector.load %arg8[%c5_251, %c0_252] : memref<16x128xf32, #tpu.memory_space<vmem>>, vector<1x64xf32>
    %c6_253 = arith.constant 6 : index
    %c0_254 = arith.constant 0 : index
    %612 = vector.load %arg8[%c6_253, %c0_254] : memref<16x128xf32, #tpu.memory_space<vmem>>, vector<1x32xf32>
    %c7_255 = arith.constant 7 : index
    %c0_256 = arith.constant 0 : index
    %613 = vector.load %arg8[%c7_255, %c0_256] : memref<16x128xf32, #tpu.memory_space<vmem>>, vector<1x32xf32>
    %c8_257 = arith.constant 8 : index
    %c0_258 = arith.constant 0 : index
    %614 = vector.load %arg8[%c8_257, %c0_258] : memref<16x128xf32, #tpu.memory_space<vmem>>, vector<1x32xf32>
    %c9 = arith.constant 9 : index
    %c0_259 = arith.constant 0 : index
    %615 = vector.load %arg8[%c9, %c0_259] : memref<16x128xf32, #tpu.memory_space<vmem>>, vector<1x128xf32>
    %cst_260 = arith.constant dense<0.000000e+00> : vector<8xf32>
    %616 = vector.multi_reduction <add>, %606, %cst_260 [1] : vector<8x32xf32> to vector<8xf32>
    %617 = vector.shape_cast %616 : vector<8xf32> to vector<8x1xf32>
    %cst_261 = arith.constant 3.200000e+01 : f32
    %618 = vector.broadcast %cst_261 : f32 to vector<8x1xf32>
    %619 = arith.divf %617, %618 : vector<8x1xf32>
    %620 = vector.broadcast %619 : vector<8x1xf32> to vector<8x32xf32>
    %621 = arith.subf %606, %620 : vector<8x32xf32>
    %622 = arith.mulf %621, %621 : vector<8x32xf32>
    %cst_262 = arith.constant dense<0.000000e+00> : vector<8xf32>
    %623 = vector.multi_reduction <add>, %622, %cst_262 [1] : vector<8x32xf32> to vector<8xf32>
    %624 = vector.shape_cast %623 : vector<8xf32> to vector<8x1xf32>
    %cst_263 = arith.constant 3.200000e+01 : f32
    %625 = vector.broadcast %cst_263 : f32 to vector<8x1xf32>
    %626 = arith.divf %624, %625 : vector<8x1xf32>
    %627 = vector.broadcast %619 : vector<8x1xf32> to vector<8x32xf32>
    %628 = arith.subf %606, %627 : vector<8x32xf32>
    %cst_264 = arith.constant 9.99999974E-6 : f32
    %629 = vector.broadcast %cst_264 : f32 to vector<8x1xf32>
    %630 = arith.addf %626, %629 : vector<8x1xf32>
    %631 = math.rsqrt %630 : vector<8x1xf32>
    %632 = vector.broadcast %631 : vector<8x1xf32> to vector<8x32xf32>
    %633 = arith.mulf %628, %632 : vector<8x32xf32>
    %634 = vector.broadcast %607 : vector<1x32xf32> to vector<8x32xf32>
    %635 = arith.mulf %633, %634 : vector<8x32xf32>
    %636 = vector.broadcast %608 : vector<1x32xf32> to vector<8x32xf32>
    %637 = arith.addf %635, %636 : vector<8x32xf32>
    %638 = arith.truncf %637 : vector<8x32xf32> to vector<8x32xbf16>
    %c0_265 = arith.constant 0 : index
    %c0_266 = arith.constant 0 : index
    %639 = vector.load %arg7[%c0_265, %c0_266] : memref<128x128xbf16, #tpu.memory_space<vmem>>, vector<32x64xbf16>
    %cst_267 = arith.constant dense<0.000000e+00> : vector<8x64xf32>
    %640 = tpu.matmul %638, %639, %cst_267 {dimension_numbers = #tpu.dot_dimension_numbers<[1], [0], [0], [1], [0, 0, 1, 1], [], []>} : vector<8x32xbf16>, vector<32x64xbf16>, vector<8x64xf32> -> vector<8x64xf32>
    %641 = vector.broadcast %609 : vector<1x64xf32> to vector<8x64xf32>
    %642 = arith.addf %640, %641 : vector<8x64xf32>
    %cst_268 = arith.constant 0.000000e+00 : f32
    %643 = vector.broadcast %cst_268 : f32 to vector<8x64xf32>
    %644 = arith.maximumf %642, %643 : vector<8x64xf32>
    %cst_269 = arith.constant dense<0.000000e+00> : vector<8xf32>
    %645 = vector.multi_reduction <add>, %644, %cst_269 [1] : vector<8x64xf32> to vector<8xf32>
    %646 = vector.shape_cast %645 : vector<8xf32> to vector<8x1xf32>
    %cst_270 = arith.constant 6.400000e+01 : f32
    %647 = vector.broadcast %cst_270 : f32 to vector<8x1xf32>
    %648 = arith.divf %646, %647 : vector<8x1xf32>
    %649 = vector.broadcast %648 : vector<8x1xf32> to vector<8x64xf32>
    %650 = arith.subf %644, %649 : vector<8x64xf32>
    %651 = arith.mulf %650, %650 : vector<8x64xf32>
    %cst_271 = arith.constant dense<0.000000e+00> : vector<8xf32>
    %652 = vector.multi_reduction <add>, %651, %cst_271 [1] : vector<8x64xf32> to vector<8xf32>
    %653 = vector.shape_cast %652 : vector<8xf32> to vector<8x1xf32>
    %cst_272 = arith.constant 6.400000e+01 : f32
    %654 = vector.broadcast %cst_272 : f32 to vector<8x1xf32>
    %655 = arith.divf %653, %654 : vector<8x1xf32>
    %656 = vector.broadcast %648 : vector<8x1xf32> to vector<8x64xf32>
    %657 = arith.subf %644, %656 : vector<8x64xf32>
    %cst_273 = arith.constant 9.99999974E-6 : f32
    %658 = vector.broadcast %cst_273 : f32 to vector<8x1xf32>
    %659 = arith.addf %655, %658 : vector<8x1xf32>
    %660 = math.rsqrt %659 : vector<8x1xf32>
    %661 = vector.broadcast %660 : vector<8x1xf32> to vector<8x64xf32>
    %662 = arith.mulf %657, %661 : vector<8x64xf32>
    %663 = vector.broadcast %610 : vector<1x64xf32> to vector<8x64xf32>
    %664 = arith.mulf %662, %663 : vector<8x64xf32>
    %665 = vector.broadcast %611 : vector<1x64xf32> to vector<8x64xf32>
    %666 = arith.addf %664, %665 : vector<8x64xf32>
    %667 = arith.truncf %666 : vector<8x64xf32> to vector<8x64xbf16>
    %c32_274 = arith.constant 32 : index
    %c0_275 = arith.constant 0 : index
    %668 = vector.load %arg7[%c32_274, %c0_275] : memref<128x128xbf16, #tpu.memory_space<vmem>>, vector<64x32xbf16>
    %cst_276 = arith.constant dense<0.000000e+00> : vector<8x32xf32>
    %669 = tpu.matmul %667, %668, %cst_276 {dimension_numbers = #tpu.dot_dimension_numbers<[1], [0], [0], [1], [0, 0, 1, 1], [], []>} : vector<8x64xbf16>, vector<64x32xbf16>, vector<8x32xf32> -> vector<8x32xf32>
    %670 = vector.broadcast %612 : vector<1x32xf32> to vector<8x32xf32>
    %671 = arith.addf %669, %670 : vector<8x32xf32>
    %cst_277 = arith.constant dense<0.000000e+00> : vector<8xf32>
    %672 = vector.multi_reduction <add>, %671, %cst_277 [1] : vector<8x32xf32> to vector<8xf32>
    %673 = vector.shape_cast %672 : vector<8xf32> to vector<8x1xf32>
    %cst_278 = arith.constant 3.200000e+01 : f32
    %674 = vector.broadcast %cst_278 : f32 to vector<8x1xf32>
    %675 = arith.divf %673, %674 : vector<8x1xf32>
    %676 = vector.broadcast %675 : vector<8x1xf32> to vector<8x32xf32>
    %677 = arith.subf %671, %676 : vector<8x32xf32>
    %678 = arith.mulf %677, %677 : vector<8x32xf32>
    %cst_279 = arith.constant dense<0.000000e+00> : vector<8xf32>
    %679 = vector.multi_reduction <add>, %678, %cst_279 [1] : vector<8x32xf32> to vector<8xf32>
    %680 = vector.shape_cast %679 : vector<8xf32> to vector<8x1xf32>
    %cst_280 = arith.constant 3.200000e+01 : f32
    %681 = vector.broadcast %cst_280 : f32 to vector<8x1xf32>
    %682 = arith.divf %680, %681 : vector<8x1xf32>
    %683 = vector.broadcast %675 : vector<8x1xf32> to vector<8x32xf32>
    %684 = arith.subf %671, %683 : vector<8x32xf32>
    %cst_281 = arith.constant 9.99999974E-6 : f32
    %685 = vector.broadcast %cst_281 : f32 to vector<8x1xf32>
    %686 = arith.addf %682, %685 : vector<8x1xf32>
    %687 = math.rsqrt %686 : vector<8x1xf32>
    %688 = vector.broadcast %687 : vector<8x1xf32> to vector<8x32xf32>
    %689 = arith.mulf %684, %688 : vector<8x32xf32>
    %690 = vector.broadcast %613 : vector<1x32xf32> to vector<8x32xf32>
    %691 = arith.mulf %689, %690 : vector<8x32xf32>
    %692 = vector.broadcast %614 : vector<1x32xf32> to vector<8x32xf32>
    %693 = arith.addf %691, %692 : vector<8x32xf32>
    %694 = arith.truncf %693 : vector<8x32xf32> to vector<8x32xbf16>
    %c96_282 = arith.constant 96 : index
    %c0_283 = arith.constant 0 : index
    %695 = vector.load %arg7[%c96_282, %c0_283] : memref<128x128xbf16, #tpu.memory_space<vmem>>, vector<32x128xbf16>
    %cst_284 = arith.constant dense<0.000000e+00> : vector<8x128xf32>
    %696 = tpu.matmul %694, %695, %cst_284 {dimension_numbers = #tpu.dot_dimension_numbers<[1], [0], [0], [1], [0, 0, 1, 1], [], []>} : vector<8x32xbf16>, vector<32x128xbf16>, vector<8x128xf32> -> vector<8x128xf32>
    %697 = vector.broadcast %615 : vector<1x128xf32> to vector<8x128xf32>
    %698 = arith.addf %696, %697 : vector<8x128xf32>
    %cst_285 = arith.constant dense<0xFF800000> : vector<8xf32>
    %699 = vector.multi_reduction <maximumf>, %698, %cst_285 [1] : vector<8x128xf32> to vector<8xf32>
    %700 = vector.shape_cast %699 : vector<8xf32> to vector<8x1xf32>
    %701 = tpu.iota {dimensions = array<i32: 1>} : vector<8x128xi32>
    %702 = vector.broadcast %700 : vector<8x1xf32> to vector<8x128xf32>
    %703 = arith.cmpf oeq, %698, %702 : vector<8x128xf32>
    %c128_i32 = arith.constant 128 : i32
    %704 = vector.broadcast %c128_i32 : i32 to vector<8x128xi32>
    %705 = arith.select %703, %701, %704 : vector<8x128xi1>, vector<8x128xi32>
    %cst_286 = arith.constant dense<2147483647> : vector<8xi32>
    %706 = vector.multi_reduction <minsi>, %705, %cst_286 [1] : vector<8x128xi32> to vector<8xi32>
    %707 = vector.shape_cast %706 : vector<8xi32> to vector<8x1xi32>
    %708 = vector.shape_cast %707 : vector<8x1xi32> to vector<8x1xi32>
    %709 = vector.broadcast %708 : vector<8x1xi32> to vector<8x128xi32>
    %c0_287 = arith.constant 0 : index
    %c0_288 = arith.constant 0 : index
    %710 = vector.load %arg11[%c0_287, %c0_288] : memref<8x128xi32, #tpu.memory_space<vmem>>, vector<8x128xi32>
    tpu.vector_store %arg11[%c0_287, %c0_288], %709 {strides = array<i32>} : memref<8x128xi32, #tpu.memory_space<vmem>>, vector<8x128xi32>,
    return
  }
}

</mosaic_0001>

<llo_original>
// kernel: paraformer_decoder_forward.1
$region0: #{paraformer_decoder_forward.1}
  #allocation0 [shape = 'u32[]', space=smem, size = 0x4, offset = 0x4, fixed_abs, tag = 'smem constant byte address 0x4 - core index']
  #allocation1 [shape = 'u32[144,128]{1,0:T(1,128)}', space=vmem, size = 0x12000, scoped, tag = 'internal scratch']
  #allocation2 [shape = 'f32[8,32]{1,0:T(8,128)}', space=vmem, size = 0x1000, scoped, tag = 'scratch operand']
  %s0 = inlined_call_operand.vmem [shape: f32[8,32], index: 0, kind: input, shape index: {}]
  %s1 = inlined_call_operand.vmem [shape: f32[16,32], index: 1, kind: input, shape index: {}]
  %s2 = inlined_call_operand.vmem [shape: f32[2,6,32], index: 2, kind: input, shape index: {}]
  %s3 = inlined_call_operand.vmem [shape: f32[4,128], index: 3, kind: input, shape index: {}]
  %s4 = inlined_call_operand.vmem [shape: bf16[32,128], index: 4, kind: input, shape index: {}]
  %s5 = inlined_call_operand.vmem [shape: bf16[2,160,64], index: 5, kind: input, shape index: {}]
  %s6 = inlined_call_operand.vmem [shape: f32[2,24,128], index: 6, kind: input, shape index: {}]
  %s7 = inlined_call_operand.vmem [shape: bf16[128,128], index: 7, kind: input, shape index: {}]
  %s8 = inlined_call_operand.vmem [shape: f32[16,128], index: 8, kind: input, shape index: {}]
  %s9 = inlined_call_operand.vmem [shape: f32[2,12,32], index: 9, kind: output, shape index: {0}]
  %s10 = inlined_call_operand.hbm [shape: f32[8,128], index: 10, kind: output, shape index: {1}]
  %s11 = inlined_call_operand.vmem [shape: s32[8,128], index: 11, kind: output, shape index: {2}]
  %12 = xla_tuple %s9, %s10, %s11
  %s13 = sld [smem:[#allocation0]]
  $region62: #{paraformer_decoder_forward.1} parent=0
    _
  %s15 = ssub.s32 1, %s13
  %s16 = scalar_select 0, %s15, %s13
  $region1: #{paraformer_decoder_forward.1} parent=0
    #allocation3 [shape = 'u8[4096]{0}', space=vmem, size = 0x1000, scoped, tag = 'output window, operand 1, single buffered']
    #allocation4 [shape = 's32[1]{0}', space=sflag, size = 0x4, scoped, tag = 'scoped memory for paraformer_decoder_forward.1']
    %17 = vsyncpa [#allocation4], 0
    // Predicated region
    $region2: #{paraformer_decoder_forward.1} parent=1 // pred_check
      _
    $region3: #{paraformer_decoder_forward.1} parent=1 // pred_check_branch
      %19 = sbr.rel (0) target = $region5
    $region4: #{paraformer_decoder_forward.1} parent=1 // pred_region
      _
    $region5: #{paraformer_decoder_forward.1} parent=1 // pred_fallthru
      _
    // Predicated region
    $region6: #{paraformer_decoder_forward.1} parent=1 // pred_check
      _
    $region7: #{paraformer_decoder_forward.1} parent=1 // pred_check_branch
      %21 = sbr.rel (0) target = $region9
    $region8: #{paraformer_decoder_forward.1} parent=1 // pred_region
      _
    $region9: #{paraformer_decoder_forward.1} parent=1 // pred_fallthru
      _
    // Predicated region
    $region10: #{paraformer_decoder_forward.1} parent=1 // pred_check
      _
    $region11: #{paraformer_decoder_forward.1} parent=1 // pred_check_branch
      %23 = sbr.rel (0) target = $region13
    $region12: #{paraformer_decoder_forward.1} parent=1 // pred_region
      _
    $region13: #{paraformer_decoder_forward.1} parent=1 // pred_fallthru
      _
    // Predicated region
    $region14: #{paraformer_decoder_forward.1} parent=1 // pred_check
      _
    $region15: #{paraformer_decoder_forward.1} parent=1 // pred_check_branch
      %25 = sbr.rel (0) target = $region17
    $region16: #{paraformer_decoder_forward.1} parent=1 // pred_region
      _
    $region17: #{paraformer_decoder_forward.1} parent=1 // pred_fallthru
      _
    // Predicated region
    $region18: #{paraformer_decoder_forward.1} parent=1 // pred_check
      _
    $region19: #{paraformer_decoder_forward.1} parent=1 // pred_check_branch
      %27 = sbr.rel (0) target = $region21
    $region20: #{paraformer_decoder_forward.1} parent=1 // pred_region
      _
    $region21: #{paraformer_decoder_forward.1} parent=1 // pred_fallthru
      _
    // Predicated region
    $region22: #{paraformer_decoder_forward.1} parent=1 // pred_check
      _
    $region23: #{paraformer_decoder_forward.1} parent=1 // pred_check_branch
      %29 = sbr.rel (0) target = $region25
    $region24: #{paraformer_decoder_forward.1} parent=1 // pred_region
      _
    $region25: #{paraformer_decoder_forward.1} parent=1 // pred_fallthru
      _
    // Predicated region
    $region26: #{paraformer_decoder_forward.1} parent=1 // pred_check
      _
    $region27: #{paraformer_decoder_forward.1} parent=1 // pred_check_branch
      %31 = sbr.rel (0) target = $region29
    $region28: #{paraformer_decoder_forward.1} parent=1 // pred_region
      _
    $region29: #{paraformer_decoder_forward.1} parent=1 // pred_fallthru
      _
    // Predicated region
    $region30: #{paraformer_decoder_forward.1} parent=1 // pred_check
      _
    $region31: #{paraformer_decoder_forward.1} parent=1 // pred_check_branch
      %33 = sbr.rel (0) target = $region33
    $region32: #{paraformer_decoder_forward.1} parent=1 // pred_region
      _
    $region33: #{paraformer_decoder_forward.1} parent=1 // pred_fallthru
      _
    // Predicated region
    $region34: #{paraformer_decoder_forward.1} parent=1 // pred_check
      _
    $region35: #{paraformer_decoder_forward.1} parent=1 // pred_check_branch
      %35 = sbr.rel (0) target = $region37
    $region36: #{paraformer_decoder_forward.1} parent=1 // pred_region
      _
    $region37: #{paraformer_decoder_forward.1} parent=1 // pred_fallthru
      _
    %v37 = vld [vmem:[%s0] sm:$0xff]
    %v38 = vld [vmem:[%s1] sm:$0xff]
    %v39 = vld [vmem:[%s1 + $0x8] sm:$0xff]
    %v40 = vpack.c.bf16 %v39, %v38
    %v41 = vld [vmem:[%s8] sm:$0x1]
    %v42 = vld [vmem:[%s4] sm:$0xf]
    %v43 = vld [vmem:[%s4 + $0x4] sm:$0xf]
    %v44 = vld [vmem:[%s4 + $0x8] sm:$0xf]
    %v45 = vld [vmem:[%s4 + $0xc] sm:$0xf]
    %v46 = vlaneseq
    %v47 = vshrl.u32 %v46, 7
    %v48 = vsub.s32 0, %v47
    %v49 = vrot.slane %v41, %v48
    %v54 = vunpack.c.l.b16 %v42
    %v55 = vunpack.c.l.b16 %v43
    %v56 = vunpack.c.l.b16 %v44
    %v57 = vunpack.c.l.b16 %v45
    %v58 = vpack.c.b16 %v55, %v54
    %v59 = vpack.c.b16 %v57, %v56
    %vm62 = vcmask 261120
    %v64 = vsel %vm62, %v40, 0
    %66 = vmatprep.subr.bf16.mxu0 0
    %67 = vmatpush1.bf16.msra.mxu0 %v58
    %68 = vmatprep.subr.bf16.mxu0 0
    %69 = vmatpush1.bf16.msra.mxu0 %v59
    %70 = vmatprep.subr.bf16.mxu0 0
    %71 = vmatpush1.bf16.msra.mxu0 0
    %72 = vmatprep.subr.bf16.mxu0 0
    %73 = vmatpush1.bf16.msra.mxu0 0
    %74 = vmatprep.subr.bf16.mxu0 0
    %75 = vmatpush1.bf16.msra.mxu0 0
    %76 = vmatprep.subr.bf16.mxu0 0
    %77 = vmatpush1.bf16.msra.mxu0 0
    %78 = vmatprep.subr.bf16.mxu0 0
    %79 = vmatpush1.bf16.msra.mxu0 0
    %80 = vmatprep.subr.bf16.mxu0 0
    %81 = vmatpush1.bf16.msra.mxu0 0
    %82 = vmatprep.subr.bf16.mxu0 0
    %83 = vmatpush1.bf16.msra.mxu0 0
    %84 = vmatprep.subr.bf16.mxu0 0
    %85 = vmatpush1.bf16.msra.mxu0 0
    %86 = vmatprep.subr.bf16.mxu0 0
    %87 = vmatpush1.bf16.msra.mxu0 0
    %88 = vmatprep.subr.bf16.mxu0 0
    %89 = vmatpush1.bf16.msra.mxu0 0
    %90 = vmatprep.subr.bf16.mxu0 0
    %91 = vmatpush1.bf16.msra.mxu0 0
    %92 = vmatprep.subr.bf16.mxu0 0
    %93 = vmatpush1.bf16.msra.mxu0 0
    %94 = vmatprep.subr.bf16.mxu0 0
    %95 = vmatpush1.bf16.msra.mxu0 0
    %96 = vmatprep.subr.bf16.mxu0 0
    %97 = vmatpush1.bf16.msra.mxu0 0
    %98 = vmatprep.mubr.bf16.mxu0 0
    %99 = vmatmul.mubr.bf16.gmra.mrb[0].mxu0 %v64
    %v100 = vpop.f32.mrb[0].mxu0
    %v101 = vadd.f32 %v49, %v100
    %v102 = vpop.f32.mrb[0].mxu0
    %v103 = vpop.f32.mrb[0].mxu0
    %v104 = vadd.f32 %v49, %v103
    %v105 = vpop.f32.mrb[0].mxu0
    %106 = vdwg.mxu0
    %107 = vst [vmem:[#allocation3] sm:$0xff] %v104
    %v108 = vld [vmem:[%s3] sm:$0xf]
    %v109 = vld [vmem:[%s6] sm:$0x1]
    %v110 = vld [vmem:[%s6 + $0x1] sm:$0x1]
    %v111 = vld [vmem:[%s6 + $0x2] sm:$0x1]
    %v112 = vld [vmem:[%s6 + $0x3] sm:$0x1]
    %v113 = vld [vmem:[%s6 + $0x4] sm:$0x1]
    %v114 = vld [vmem:[%s6 + $0x5] sm:$0x1]
    %v115 = vld [vmem:[%s6 + $0x6] sm:$0x1]
    %v116 = vld [vmem:[%s6 + $0x7] sm:$0x1]
    %v117 = vld [vmem:[%s6 + $0x8] sm:$0x1f]
    %v118 = vld [vmem:[%s6 + $0xd] sm:$0x1]
    %v119 = vld [vmem:[%s6 + $0xe] sm:$0x1]
    %v120 = vld [vmem:[%s6 + $0xf] sm:$0x1]
    %v121 = vld [vmem:[%s6 + $0x10] sm:$0x1]
    %v122 = vsel %vm62, %v37, 0.0
    %123 = vadd.xlane.f32.xlu0 %v122
    %v124 = vpop.xlane.xlu0 %123
    %v125 = vrcp.pop 32.0
    %v126 = vmul.f32 %v124, %v125
    %v127 = vsub.f32 %v37, %v126
    %v128 = vmul.f32 %v127, %v127
    %v129 = vsel %vm62, %v128, 0.0
    %130 = vadd.xlane.f32.xlu0 %v129
    %v131 = vpop.xlane.xlu0 %130
    %v132 = vmul.f32 %v131, %v125
    %v133 = vadd.f32 %v132, 1e-05
    %v134 = vrsqrt.pop %v133
    %v135 = vmul.f32 %v127, %v134
    %v136 = vlaneseq
    %v137 = vshrl.u32 %v136, 7
    %v138 = vsub.s32 0, %v137
    %v139 = vrot.slane %v109, %v138
    %v140 = vmul.f32 %v135, %v139
    %v141 = vlaneseq
    %v142 = vshrl.u32 %v141, 7
    %v143 = vsub.s32 0, %v142
    %v144 = vrot.slane %v110, %v143
    %v145 = vadd.f32 %v140, %v144
    %v146 = vpack.c.bf16 %v145, %v145
    %v147 = vld [vmem:[%s5 + $0x20] sm:$0xf]
    %v148 = vld [vmem:[%s5 + $0x24] sm:$0xf]
    %v149 = vld [vmem:[%s5 + $0x28] sm:$0xf]
    %v150 = vld [vmem:[%s5 + $0x2c] sm:$0xf]
    %v151 = vlaneseq
    %v152 = vshrl.u32 %v151, 7
    %v153 = vsub.s32 0, %v152
    %v154 = vrot.slane %v111, %v153
    %v159 = vunpack.c.l.b16 %v147
    %v160 = vunpack.c.l.b16 %v148
    %v161 = vunpack.c.l.b16 %v149
    %v162 = vunpack.c.l.b16 %v150
    %v163 = vpack.c.b16 %v160, %v159
    %v164 = vpack.c.b16 %v162, %v161
    %v168 = vsel %vm62, %v146, 0
    %170 = vmatprep.subr.bf16.mxu0 0
    %171 = vmatpush1.bf16.msra.mxu0 %v163
    %172 = vmatprep.subr.bf16.mxu0 0
    %173 = vmatpush1.bf16.msra.mxu0 %v164
    %174 = vmatprep.subr.bf16.mxu0 0
    %175 = vmatpush1.bf16.msra.mxu0 0
    %176 = vmatprep.subr.bf16.mxu0 0
    %177 = vmatpush1.bf16.msra.mxu0 0
    %178 = vmatprep.subr.bf16.mxu0 0
    %179 = vmatpush1.bf16.msra.mxu0 0
    %180 = vmatprep.subr.bf16.mxu0 0
    %181 = vmatpush1.bf16.msra.mxu0 0
    %182 = vmatprep.subr.bf16.mxu0 0
    %183 = vmatpush1.bf16.msra.mxu0 0
    %184 = vmatprep.subr.bf16.mxu0 0
    %185 = vmatpush1.bf16.msra.mxu0 0
    %186 = vmatprep.subr.bf16.mxu0 0
    %187 = vmatpush1.bf16.msra.mxu0 0
    %188 = vmatprep.subr.bf16.mxu0 0
    %189 = vmatpush1.bf16.msra.mxu0 0
    %190 = vmatprep.subr.bf16.mxu0 0
    %191 = vmatpush1.bf16.msra.mxu0 0
    %192 = vmatprep.subr.bf16.mxu0 0
    %193 = vmatpush1.bf16.msra.mxu0 0
    %194 = vmatprep.subr.bf16.mxu0 0
    %195 = vmatpush1.bf16.msra.mxu0 0
    %196 = vmatprep.subr.bf16.mxu0 0
    %197 = vmatpush1.bf16.msra.mxu0 0
    %198 = vmatprep.subr.bf16.mxu0 0
    %199 = vmatpush1.bf16.msra.mxu0 0
    %200 = vmatprep.subr.bf16.mxu0 0
    %201 = vmatpush1.bf16.msra.mxu0 0
    %202 = vmatprep.mubr.bf16.mxu0 0
    %203 = vmatmul.mubr.bf16.gmra.mrb[0].mxu0 %v168
    %v204 = vpop.f32.mrb[0].mxu0
    %v205 = vadd.f32 %v154, %v204
    %v206 = vpop.f32.mrb[0].mxu0
    %v207 = vpop.f32.mrb[0].mxu0
    %v208 = vpop.f32.mrb[0].mxu0
    %209 = vdwg.mxu0
    %v210 = vmax.f32 %v205, 0.0
    %vm211 = vcmask 523264
    %v212 = vsel %vm211, %v210, 0.0
    %213 = vadd.xlane.f32.xlu0 %v212
    %v214 = vpop.xlane.xlu0 %213
    %v215 = vrcp.pop 64.0
    %v216 = vmul.f32 %v214, %v215
    %v217 = vsub.f32 %v210, %v216
    %v218 = vmul.f32 %v217, %v217
    %v219 = vsel %vm211, %v218, 0.0
    %220 = vadd.xlane.f32.xlu0 %v219
    %v221 = vpop.xlane.xlu0 %220
    %v222 = vmul.f32 %v221, %v215
    %v223 = vadd.f32 %v222, 1e-05
    %v224 = vrsqrt.pop %v223
    %v225 = vmul.f32 %v217, %v224
    %v226 = vlaneseq
    %v227 = vshrl.u32 %v226, 7
    %v228 = vsub.s32 0, %v227
    %v229 = vrot.slane %v112, %v228
    %v230 = vmul.f32 %v225, %v229
    %v231 = vlaneseq
    %v232 = vshrl.u32 %v231, 7
    %v233 = vsub.s32 0, %v232
    %v234 = vrot.slane %v113, %v233
    %v235 = vadd.f32 %v230, %v234
    %v236 = vpack.c.bf16 %v235, %v235
    %v237 = vld [vmem:[%s5 + $0x30] sm:$0xf]
    %v238 = vld [vmem:[%s5 + $0x34] sm:$0xf]
    %v239 = vld [vmem:[%s5 + $0x38] sm:$0xf]
    %v240 = vld [vmem:[%s5 + $0x3c] sm:$0xf]
    %v241 = vld [vmem:[%s5 + $0x40] sm:$0xf]
    %v242 = vld [vmem:[%s5 + $0x44] sm:$0xf]
    %v243 = vld [vmem:[%s5 + $0x48] sm:$0xf]
    %v244 = vld [vmem:[%s5 + $0x4c] sm:$0xf]
    %v245 = vlaneseq
    %v246 = vshrl.u32 %v245, 7
    %v247 = vsub.s32 0, %v246
    %v248 = vrot.slane %v114, %v247
    %v257 = vunpack.c.l.b16 %v237
    %v258 = vunpack.c.l.b16 %v238
    %v259 = vunpack.c.l.b16 %v239
    %v260 = vunpack.c.l.b16 %v240
    %v261 = vunpack.c.l.b16 %v241
    %v262 = vunpack.c.l.b16 %v242
    %v263 = vunpack.c.l.b16 %v243
    %v264 = vunpack.c.l.b16 %v244
    %v265 = vpack.c.b16 %v258, %v257
    %v266 = vpack.c.b16 %v260, %v259
    %v267 = vpack.c.b16 %v262, %v261
    %v268 = vpack.c.b16 %v264, %v263
    %v274 = vsel %vm211, %v236, 0
    %276 = vmatprep.subr.bf16.mxu0 0
    %277 = vmatpush1.bf16.msra.mxu0 %v265
    %278 = vmatprep.subr.bf16.mxu0 0
    %279 = vmatpush1.bf16.msra.mxu0 %v266
    %280 = vmatprep.subr.bf16.mxu0 0
    %281 = vmatpush1.bf16.msra.mxu0 %v267
    %282 = vmatprep.subr.bf16.mxu0 0
    %283 = vmatpush1.bf16.msra.mxu0 %v268
    %284 = vmatprep.subr.bf16.mxu0 0
    %285 = vmatpush1.bf16.msra.mxu0 0
    %286 = vmatprep.subr.bf16.mxu0 0
    %287 = vmatpush1.bf16.msra.mxu0 0
    %288 = vmatprep.subr.bf16.mxu0 0
    %289 = vmatpush1.bf16.msra.mxu0 0
    %290 = vmatprep.subr.bf16.mxu0 0
    %291 = vmatpush1.bf16.msra.mxu0 0
    %292 = vmatprep.subr.bf16.mxu0 0
    %293 = vmatpush1.bf16.msra.mxu0 0
    %294 = vmatprep.subr.bf16.mxu0 0
    %295 = vmatpush1.bf16.msra.mxu0 0
    %296 = vmatprep.subr.bf16.mxu0 0
    %297 = vmatpush1.bf16.msra.mxu0 0
    %298 = vmatprep.subr.bf16.mxu0 0
    %299 = vmatpush1.bf16.msra.mxu0 0
    %300 = vmatprep.subr.bf16.mxu0 0
    %301 = vmatpush1.bf16.msra.mxu0 0
    %302 = vmatprep.subr.bf16.mxu0 0
    %303 = vmatpush1.bf16.msra.mxu0 0
    %304 = vmatprep.subr.bf16.mxu0 0
    %305 = vmatpush1.bf16.msra.mxu0 0
    %306 = vmatprep.subr.bf16.mxu0 0
    %307 = vmatpush1.bf16.msra.mxu0 0
    %308 = vmatprep.mubr.bf16.mxu0 0
    %309 = vmatmul.mubr.bf16.gmra.mrb[0].mxu0 %v274
    %v310 = vpop.f32.mrb[0].mxu0
    %v311 = vadd.f32 %v248, %v310
    %v312 = vpop.f32.mrb[0].mxu0
    %v313 = vpop.f32.mrb[0].mxu0
    %v314 = vpop.f32.mrb[0].mxu0
    %315 = vdwg.mxu0
    %v316 = vsel %vm62, %v311, 0.0
    %317 = vadd.xlane.f32.xlu0 %v316
    %v318 = vpop.xlane.xlu0 %317
    %v319 = vmul.f32 %v318, %v125
    %v320 = vsub.f32 %v311, %v319
    %v321 = vmul.f32 %v320, %v320
    %v322 = vsel %vm62, %v321, 0.0
    %323 = vadd.xlane.f32.xlu0 %v322
    %v324 = vpop.xlane.xlu0 %323
    %v325 = vmul.f32 %v324, %v125
    %v326 = vadd.f32 %v325, 1e-05
    %v327 = vrsqrt.pop %v326
    %v328 = vmul.f32 %v320, %v327
    %v329 = vlaneseq
    %v330 = vshrl.u32 %v329, 7
    %v331 = vsub.s32 0, %v330
    %v332 = vrot.slane %v115, %v331
    %v333 = vmul.f32 %v328, %v332
    %v334 = vlaneseq
    %v335 = vshrl.u32 %v334, 7
    %v336 = vsub.s32 0, %v335
    %v337 = vrot.slane %v116, %v336
    %v338 = vadd.f32 %v333, %v337
    %v339 = vld [vmem:[%s2 + $0x2] sm:$0xf]
    %v341 = vrot.slane %v338, 4
    %vm343 = vcmask 1043456
    %v344 = vsel %vm343, %v339, %v341
    %v345 = vlaneseq
    %v346 = vshrl.u32 %v345, 7
    %v347 = vsub.s32 0, %v346
    %v348 = vrot.slane %v117, %v347
    %v349 = vmul.f32 %v344, %v348
    %v350 = vlaneseq
    %v351 = vshrl.u32 %v350, 7
    %v352 = vsub.s32 1, %v351
    %v353 = vrot.slane %v117, %v352
    %v354 = vmul.f32 %v344, %v353
    %v355 = vmul.f32 %v341, %v353
    %vm358 = vcmask 1046528
    %v359 = vrot.slane %v354, 1
    %v360 = vrot.slane %v355, 1
    %v361 = vsel %vm358, %v359, %v360
    %v363 = vadd.f32 %v349, %v361
    %v364 = vlaneseq
    %v365 = vshrl.u32 %v364, 7
    %v366 = vsub.s32 2, %v365
    %v367 = vrot.slane %v117, %v366
    %v368 = vmul.f32 %v344, %v367
    %v369 = vmul.f32 %v341, %v367
    %vm372 = vcmask 1045504
    %v373 = vrot.slane %v368, 2
    %v374 = vrot.slane %v369, 2
    %v375 = vsel %vm372, %v373, %v374
    %v377 = vadd.f32 %v363, %v375
    %v378 = vlaneseq
    %v379 = vshrl.u32 %v378, 7
    %v380 = vsub.s32 3, %v379
    %v381 = vrot.slane %v117, %v380
    %v382 = vmul.f32 %v344, %v381
    %v383 = vmul.f32 %v341, %v381
    %vm386 = vcmask 1044480
    %v387 = vrot.slane %v382, 3
    %v388 = vrot.slane %v383, 3
    %v389 = vsel %vm386, %v387, %v388
    %v391 = vadd.f32 %v377, %v389
    %v392 = vlaneseq
    %v393 = vshrl.u32 %v392, 7
    %v394 = vsub.s32 4, %v393
    %v395 = vrot.slane %v117, %v394
    %v396 = vmul.f32 %v344, %v395
    %v397 = vmul.f32 %v341, %v395
    %v400 = vrot.slane %v396, 4
    %v401 = vrot.slane %v397, 4
    %v402 = vsel %vm343, %v400, %v401
    %v404 = vadd.f32 %v391, %v402
    %v405 = vadd.f32 %v404, %v338
    %v406 = vadd.f32 %v405, %v37
    %407 = vst.msk [vmem:[%s9] sm:$0xff] %vm62, %v344
    %vm408 = vcmask 257024
    %409 = vst.msk [vmem:[%s9 + $0x8] sm:$0xf] %vm408, %v341
    %v410 = vsel %vm62, %v406, 0.0
    %411 = vadd.xlane.f32.xlu0 %v410
    %v412 = vpop.xlane.xlu0 %411
    %v413 = vmul.f32 %v412, %v125
    %v414 = vsub.f32 %v406, %v413
    %v415 = vmul.f32 %v414, %v414
    %v416 = vsel %vm62, %v415, 0.0
    %417 = vadd.xlane.f32.xlu0 %v416
    %v418 = vpop.xlane.xlu0 %417
    %v419 = vmul.f32 %v418, %v125
    %v420 = vadd.f32 %v419, 1e-05
    %v421 = vrsqrt.pop %v420
    %v422 = vmul.f32 %v414, %v421
    %v423 = vlaneseq
    %v424 = vshrl.u32 %v423, 7
    %v425 = vsub.s32 0, %v424
    %v426 = vrot.slane %v118, %v425
    %v427 = vmul.f32 %v422, %v426
    %v428 = vlaneseq
    %v429 = vshrl.u32 %v428, 7
    %v430 = vsub.s32 0, %v429
    %v431 = vrot.slane %v119, %v430
    %v432 = vadd.f32 %v427, %v431
    %v433 = vpack.c.bf16 %v432, %v432
    %v434 = vld [vmem:[%s5] sm:$0xf]
    %v435 = vld [vmem:[%s5 + $0x4] sm:$0xf]
    %v436 = vld [vmem:[%s5 + $0x8] sm:$0xf]
    %v437 = vld [vmem:[%s5 + $0xc] sm:$0xf]
    %v438 = vlaneseq
    %v439 = vshrl.u32 %v438, 7
    %v440 = vsub.s32 0, %v439
    %v441 = vrot.slane %v120, %v440
    %v446 = vunpack.c.l.b16 %v434
    %v447 = vunpack.c.l.b16 %v435
    %v448 = vunpack.c.l.b16 %v436
    %v449 = vunpack.c.l.b16 %v437
    %v450 = vpack.c.b16 %v447, %v446
    %v451 = vpack.c.b16 %v449, %v448
    %v455 = vsel %vm62, %v433, 0
    %457 = vmatprep.subr.bf16.mxu0 0
    %458 = vmatpush1.bf16.msra.mxu0 %v450
    %459 = vmatprep.subr.bf16.mxu0 0
    %460 = vmatpush1.bf16.msra.mxu0 %v451
    %461 = vmatprep.subr.bf16.mxu0 0
    %462 = vmatpush1.bf16.msra.mxu0 0
    %463 = vmatprep.subr.bf16.mxu0 0
    %464 = vmatpush1.bf16.msra.mxu0 0
    %465 = vmatprep.subr.bf16.mxu0 0
    %466 = vmatpush1.bf16.msra.mxu0 0
    %467 = vmatprep.subr.bf16.mxu0 0
    %468 = vmatpush1.bf16.msra.mxu0 0
    %469 = vmatprep.subr.bf16.mxu0 0
    %470 = vmatpush1.bf16.msra.mxu0 0
    %471 = vmatprep.subr.bf16.mxu0 0
    %472 = vmatpush1.bf16.msra.mxu0 0
    %473 = vmatprep.subr.bf16.mxu0 0
    %474 = vmatpush1.bf16.msra.mxu0 0
    %475 = vmatprep.subr.bf16.mxu0 0
    %476 = vmatpush1.bf16.msra.mxu0 0
    %477 = vmatprep.subr.bf16.mxu0 0
    %478 = vmatpush1.bf16.msra.mxu0 0
    %479 = vmatprep.subr.bf16.mxu0 0
    %480 = vmatpush1.bf16.msra.mxu0 0
    %481 = vmatprep.subr.bf16.mxu0 0
    %482 = vmatpush1.bf16.msra.mxu0 0
    %483 = vmatprep.subr.bf16.mxu0 0
    %484 = vmatpush1.bf16.msra.mxu0 0
    %485 = vmatprep.subr.bf16.mxu0 0
    %486 = vmatpush1.bf16.msra.mxu0 0
    %487 = vmatprep.subr.bf16.mxu0 0
    %488 = vmatpush1.bf16.msra.mxu0 0
    %489 = vmatprep.mubr.bf16.mxu0 0
    %490 = vmatmul.mubr.bf16.gmra.mrb[0].mxu0 %v455
    %v491 = vpop.f32.mrb[0].mxu0
    %v492 = vadd.f32 %v441, %v491
    %v493 = vpop.f32.mrb[0].mxu0
    %v494 = vpop.f32.mrb[0].mxu0
    %v495 = vpop.f32.mrb[0].mxu0
    %496 = vdwg.mxu0
    %vm497 = vcmask 64512
    %v499 = vsel %vm497, %v492, 0
    %v502 = vsel %vm497, %v108, 0
    %504 = vmatprep.subr.mxu0 0.0
    %505 = vmatpush1.xpose.msra.mxu0 %v502
    %506 = vmatprep.subr.mxu0 0.0
    %507 = vmatpush1.xpose.msra.mxu0 0.0
    %508 = vmatprep.subr.mxu0 0.0
    %509 = vmatpush1.xpose.msra.mxu0 0.0
    %510 = vmatprep.subr.mxu0 0.0
    %511 = vmatpush1.xpose.msra.mxu0 0.0
    %512 = vmatprep.subr.mxu0 0.0
    %513 = vmatpush1.xpose.msra.mxu0 0.0
    %514 = vmatprep.subr.mxu0 0.0
    %515 = vmatpush1.xpose.msra.mxu0 0.0
    %516 = vmatprep.subr.mxu0 0.0
    %517 = vmatpush1.xpose.msra.mxu0 0.0
    %518 = vmatprep.subr.mxu0 0.0
    %519 = vmatpush1.xpose.msra.mxu0 0.0
    %520 = vmatprep.subr.mxu0 0.0
    %521 = vmatpush1.xpose.msra.mxu0 0.0
    %522 = vmatprep.subr.mxu0 0.0
    %523 = vmatpush1.xpose.msra.mxu0 0.0
    %524 = vmatprep.subr.mxu0 0.0
    %525 = vmatpush1.xpose.msra.mxu0 0.0
    %526 = vmatprep.subr.mxu0 0.0
    %527 = vmatpush1.xpose.msra.mxu0 0.0
    %528 = vmatprep.subr.mxu0 0.0
    %529 = vmatpush1.xpose.msra.mxu0 0.0
    %530 = vmatprep.subr.mxu0 0.0
    %531 = vmatpush1.xpose.msra.mxu0 0.0
    %532 = vmatprep.subr.mxu0 0.0
    %533 = vmatpush1.xpose.msra.mxu0 0.0
    %534 = vmatprep.subr.mxu0 0.0
    %535 = vmatpush1.xpose.msra.mxu0 0.0
    %536 = vmatprep.subr.mxu0 0.0
    %537 = vmatpush1.xpose.msra.mxu0 0.0
    %538 = vmatprep.subr.mxu0 0.0
    %539 = vmatpush1.xpose.msra.mxu0 0.0
    %540 = vmatprep.subr.mxu0 0.0
    %541 = vmatpush1.xpose.msra.mxu0 0.0
    %542 = vmatprep.subr.mxu0 0.0
    %543 = vmatpush1.xpose.msra.mxu0 0.0
    %544 = vmatprep.subr.mxu0 0.0
    %545 = vmatpush1.xpose.msra.mxu0 0.0
    %546 = vmatprep.subr.mxu0 0.0
    %547 = vmatpush1.xpose.msra.mxu0 0.0
    %548 = vmatprep.subr.mxu0 0.0
    %549 = vmatpush1.xpose.msra.mxu0 0.0
    %550 = vmatprep.subr.mxu0 0.0
    %551 = vmatpush1.xpose.msra.mxu0 0.0
    %552 = vmatprep.subr.mxu0 0.0
    %553 = vmatpush1.xpose.msra.mxu0 0.0
    %554 = vmatprep.subr.mxu0 0.0
    %555 = vmatpush1.xpose.msra.mxu0 0.0
    %556 = vmatprep.subr.mxu0 0.0
    %557 = vmatpush1.xpose.msra.mxu0 0.0
    %558 = vmatprep.subr.mxu0 0.0
    %559 = vmatpush1.xpose.msra.mxu0 0.0
    %560 = vmatprep.subr.mxu0 0.0
    %561 = vmatpush1.xpose.msra.mxu0 0.0
    %562 = vmatprep.subr.mxu0 0.0
    %563 = vmatpush1.xpose.msra.mxu0 0.0
    %564 = vmatprep.subr.mxu0 0.0
    %565 = vmatpush1.xpose.msra.mxu0 0.0
    %566 = vmatprep.subr.mxu0 0.0
    %567 = vmatpush1.xpose.msra.mxu0 0.0
    %568 = vmatprep.mubr.f32.mxu0 0.0
    %569 = vmatmul.mubr.f32.gmra.mrb[0].mxu0 %v499
    %v570 = vpop.f32.mrb[0].mxu0
    %v571 = vadd.f32 0.0, %v570
    %v572 = vpop.f32.mrb[0].mxu0
    %573 = vdwg.mxu0
    %v575 = vsel %vm497, %v101, 0
    %v578 = vsel %vm497, %v104, 0
    %580 = vmatprep.subr.mxu0 0.0
    %581 = vmatpush1.xpose.msra.mxu0 %v575
    %582 = vmatprep.subr.mxu0 0.0
    %583 = vmatpush1.xpose.msra.mxu0 %v578
    %584 = vmatprep.subr.mxu0 0.0
    %585 = vmatpush1.xpose.msra.mxu0 0.0
    %586 = vmatprep.subr.mxu0 0.0
    %587 = vmatpush1.xpose.msra.mxu0 0.0
    %588 = vmatprep.subr.mxu0 0.0
    %589 = vmatpush1.xpose.msra.mxu0 0.0
    %590 = vmatprep.subr.mxu0 0.0
    %591 = vmatpush1.xpose.msra.mxu0 0.0
    %592 = vmatprep.subr.mxu0 0.0
    %593 = vmatpush1.xpose.msra.mxu0 0.0
    %594 = vmatprep.subr.mxu0 0.0
    %595 = vmatpush1.xpose.msra.mxu0 0.0
    %596 = vmatprep.subr.mxu0 0.0
    %597 = vmatpush1.xpose.msra.mxu0 0.0
    %598 = vmatprep.subr.mxu0 0.0
    %599 = vmatpush1.xpose.msra.mxu0 0.0
    %600 = vmatprep.subr.mxu0 0.0
    %601 = vmatpush1.xpose.msra.mxu0 0.0
    %602 = vmatprep.subr.mxu0 0.0
    %603 = vmatpush1.xpose.msra.mxu0 0.0
    %604 = vmatprep.subr.mxu0 0.0
    %605 = vmatpush1.xpose.msra.mxu0 0.0
    %606 = vmatprep.subr.mxu0 0.0
    %607 = vmatpush1.xpose.msra.mxu0 0.0
    %608 = vmatprep.subr.mxu0 0.0
    %609 = vmatpush1.xpose.msra.mxu0 0.0
    %610 = vmatprep.subr.mxu0 0.0
    %611 = vmatpush1.xpose.msra.mxu0 0.0
    %612 = vmatprep.subr.mxu0 0.0
    %613 = vmatpush1.xpose.msra.mxu0 0.0
    %614 = vmatprep.subr.mxu0 0.0
    %615 = vmatpush1.xpose.msra.mxu0 0.0
    %616 = vmatprep.subr.mxu0 0.0
    %617 = vmatpush1.xpose.msra.mxu0 0.0
    %618 = vmatprep.subr.mxu0 0.0
    %619 = vmatpush1.xpose.msra.mxu0 0.0
    %620 = vmatprep.subr.mxu0 0.0
    %621 = vmatpush1.xpose.msra.mxu0 0.0
    %622 = vmatprep.subr.mxu0 0.0
    %623 = vmatpush1.xpose.msra.mxu0 0.0
    %624 = vmatprep.subr.mxu0 0.0
    %625 = vmatpush1.xpose.msra.mxu0 0.0
    %626 = vmatprep.subr.mxu0 0.0
    %627 = vmatpush1.xpose.msra.mxu0 0.0
    %628 = vmatprep.subr.mxu0 0.0
    %629 = vmatpush1.xpose.msra.mxu0 0.0
    %630 = vmatprep.subr.mxu0 0.0
    %631 = vmatpush1.xpose.msra.mxu0 0.0
    %632 = vmatprep.subr.mxu0 0.0
    %633 = vmatpush1.xpose.msra.mxu0 0.0
    %634 = vmatprep.subr.mxu0 0.0
    %635 = vmatpush1.xpose.msra.mxu0 0.0
    %636 = vmatprep.subr.mxu0 0.0
    %637 = vmatpush1.xpose.msra.mxu0 0.0
    %638 = vmatprep.subr.mxu0 0.0
    %639 = vmatpush1.xpose.msra.mxu0 0.0
    %640 = vmatprep.subr.mxu0 0.0
    %641 = vmatpush1.xpose.msra.mxu0 0.0
    %642 = vmatprep.subr.mxu0 0.0
    %643 = vmatpush1.xpose.msra.mxu0 0.0
    %644 = vmatprep.mubr.f32.mxu0 0.0
    %645 = vmatmul.mubr.f32.gmra.mrb[0].mxu0 %v499
    %v646 = vpop.f32.mrb[0].mxu0
    %v647 = vadd.f32 0.0, %v646
    %v648 = vpop.f32.mrb[0].mxu0
    %649 = vdwg.mxu0
    %vm650 = vcmask 31744
    %v651 = vsel %vm650, %v571, -inf
    %652 = vmax.xlane.f32.xlu0 %v651
    %v653 = vpop.xlane.xlu0 %652
    %vm654 = vcmask 130048
    %v655 = vsel %vm654, %v647, -inf
    %656 = vmax.xlane.f32.xlu0 %v655
    %v657 = vpop.xlane.xlu0 %656
    %v658 = vmax.f32 %v653, %v657
    %v659 = vsub.f32 %v571, %v658
    %v660 = vmul.f32 %v659, 1.442695
    %v661 = vpow.pop %v660
    %v662 = vsub.f32 %v647, %v658
    %v663 = vmul.f32 %v662, 1.442695
    %v664 = vpow.pop %v663
    %v665 = vsel %vm650, %v661, 0.0
    %666 = vadd.xlane.f32.xlu0 %v665
    %v667 = vpop.xlane.xlu0 %666
    %v668 = vsel %vm654, %v664, 0.0
    %669 = vadd.xlane.f32.xlu0 %v668
    %v670 = vpop.xlane.xlu0 %669
    %v671 = vadd.f32 %v667, %v670
    %v672 = vrcp.pop %v671
    %673 = vrot.lane.b32.xlu0 %v101, 96
    %v674 = vpop.permute.xlu0 %673
    %675 = vrot.lane.b32.xlu0 %v104, 96
    %v676 = vpop.permute.xlu0 %675
    %v680 = vsel %vm654, %v664, 0
    %682 = vmatprep.subr.mxu0 0.0
    %683 = vmatpush1.msra.mxu0 %v674
    %684 = vmatprep.subr.mxu0 0.0
    %685 = vmatpush1.msra.mxu0 %v676
    %686 = vmatprep.subr.mxu0 0.0
    %687 = vmatpush1.msra.mxu0 0.0
    %688 = vmatprep.subr.mxu0 0.0
    %689 = vmatpush1.msra.mxu0 0.0
    %690 = vmatprep.subr.mxu0 0.0
    %691 = vmatpush1.msra.mxu0 0.0
    %692 = vmatprep.subr.mxu0 0.0
    %693 = vmatpush1.msra.mxu0 0.0
    %694 = vmatprep.subr.mxu0 0.0
    %695 = vmatpush1.msra.mxu0 0.0
    %696 = vmatprep.subr.mxu0 0.0
    %697 = vmatpush1.msra.mxu0 0.0
    %698 = vmatprep.subr.mxu0 0.0
    %699 = vmatpush1.msra.mxu0 0.0
    %700 = vmatprep.subr.mxu0 0.0
    %701 = vmatpush1.msra.mxu0 0.0
    %702 = vmatprep.subr.mxu0 0.0
    %703 = vmatpush1.msra.mxu0 0.0
    %704 = vmatprep.subr.mxu0 0.0
    %705 = vmatpush1.msra.mxu0 0.0
    %706 = vmatprep.subr.mxu0 0.0
    %707 = vmatpush1.msra.mxu0 0.0
    %708 = vmatprep.subr.mxu0 0.0
    %709 = vmatpush1.msra.mxu0 0.0
    %710 = vmatprep.subr.mxu0 0.0
    %711 = vmatpush1.msra.mxu0 0.0
    %712 = vmatprep.subr.mxu0 0.0
    %713 = vmatpush1.msra.mxu0 0.0
    %714 = vmatprep.subr.mxu0 0.0
    %715 = vmatpush1.msra.mxu0 0.0
    %716 = vmatprep.subr.mxu0 0.0
    %717 = vmatpush1.msra.mxu0 0.0
    %718 = vmatprep.subr.mxu0 0.0
    %719 = vmatpush1.msra.mxu0 0.0
    %720 = vmatprep.subr.mxu0 0.0
    %721 = vmatpush1.msra.mxu0 0.0
    %722 = vmatprep.subr.mxu0 0.0
    %723 = vmatpush1.msra.mxu0 0.0
    %724 = vmatprep.subr.mxu0 0.0
    %725 = vmatpush1.msra.mxu0 0.0
    %726 = vmatprep.subr.mxu0 0.0
    %727 = vmatpush1.msra.mxu0 0.0
    %728 = vmatprep.subr.mxu0 0.0
    %729 = vmatpush1.msra.mxu0 0.0
    %730 = vmatprep.subr.mxu0 0.0
    %731 = vmatpush1.msra.mxu0 0.0
    %732 = vmatprep.subr.mxu0 0.0
    %733 = vmatpush1.msra.mxu0 0.0
    %734 = vmatprep.subr.mxu0 0.0
    %735 = vmatpush1.msra.mxu0 0.0
    %736 = vmatprep.subr.mxu0 0.0
    %737 = vmatpush1.msra.mxu0 0.0
    %738 = vmatprep.subr.mxu0 0.0
    %739 = vmatpush1.msra.mxu0 0.0
    %740 = vmatprep.subr.mxu0 0.0
    %741 = vmatpush1.msra.mxu0 0.0
    %742 = vmatprep.subr.mxu0 0.0
    %743 = vmatpush1.msra.mxu0 0.0
    %744 = vmatprep.subr.mxu0 0.0
    %745 = vmatpush1.msra.mxu0 0.0
    %746 = vmatprep.mubr.f32.mxu0 0.0
    %747 = vmatmul.mubr.f32.gmra.mrb[0].mxu0 %v680
    %v748 = vpop.f32.mrb[0].mxu0
    %v749 = vadd.f32 0.0, %v748
    %v750 = vpop.f32.mrb[0].mxu0
    %751 = vdwg.mxu0
    %752 = vrot.lane.b32.xlu0 %v108, 96
    %v753 = vpop.permute.xlu0 %752
    %v755 = vsel %vm650, %v661, 0
    %v757 = vsel %vm343, %v753, 0
    %759 = vmatprep.subr.mxu0 0.0
    %760 = vmatpush1.msra.mxu0 %v757
    %761 = vmatprep.subr.mxu0 0.0
    %762 = vmatpush1.msra.mxu0 0.0
    %763 = vmatprep.subr.mxu0 0.0
    %764 = vmatpush1.msra.mxu0 0.0
    %765 = vmatprep.subr.mxu0 0.0
    %766 = vmatpush1.msra.mxu0 0.0
    %767 = vmatprep.subr.mxu0 0.0
    %768 = vmatpush1.msra.mxu0 0.0
    %769 = vmatprep.subr.mxu0 0.0
    %770 = vmatpush1.msra.mxu0 0.0
    %771 = vmatprep.subr.mxu0 0.0
    %772 = vmatpush1.msra.mxu0 0.0
    %773 = vmatprep.subr.mxu0 0.0
    %774 = vmatpush1.msra.mxu0 0.0
    %775 = vmatprep.subr.mxu0 0.0
    %776 = vmatpush1.msra.mxu0 0.0
    %777 = vmatprep.subr.mxu0 0.0
    %778 = vmatpush1.msra.mxu0 0.0
    %779 = vmatprep.subr.mxu0 0.0
    %780 = vmatpush1.msra.mxu0 0.0
    %781 = vmatprep.subr.mxu0 0.0
    %782 = vmatpush1.msra.mxu0 0.0
    %783 = vmatprep.subr.mxu0 0.0
    %784 = vmatpush1.msra.mxu0 0.0
    %785 = vmatprep.subr.mxu0 0.0
    %786 = vmatpush1.msra.mxu0 0.0
    %787 = vmatprep.subr.mxu0 0.0
    %788 = vmatpush1.msra.mxu0 0.0
    %789 = vmatprep.subr.mxu0 0.0
    %790 = vmatpush1.msra.mxu0 0.0
    %791 = vmatprep.subr.mxu0 0.0
    %792 = vmatpush1.msra.mxu0 0.0
    %793 = vmatprep.subr.mxu0 0.0
    %794 = vmatpush1.msra.mxu0 0.0
    %795 = vmatprep.subr.mxu0 0.0
    %796 = vmatpush1.msra.mxu0 0.0
    %797 = vmatprep.subr.mxu0 0.0
    %798 = vmatpush1.msra.mxu0 0.0
    %799 = vmatprep.subr.mxu0 0.0
    %800 = vmatpush1.msra.mxu0 0.0
    %801 = vmatprep.subr.mxu0 0.0
    %802 = vmatpush1.msra.mxu0 0.0
    %803 = vmatprep.subr.mxu0 0.0
    %804 = vmatpush1.msra.mxu0 0.0
    %805 = vmatprep.subr.mxu0 0.0
    %806 = vmatpush1.msra.mxu0 0.0
    %807 = vmatprep.subr.mxu0 0.0
    %808 = vmatpush1.msra.mxu0 0.0
    %809 = vmatprep.subr.mxu0 0.0
    %810 = vmatpush1.msra.mxu0 0.0
    %811 = vmatprep.subr.mxu0 0.0
    %812 = vmatpush1.msra.mxu0 0.0
    %813 = vmatprep.subr.mxu0 0.0
    %814 = vmatpush1.msra.mxu0 0.0
    %815 = vmatprep.subr.mxu0 0.0
    %816 = vmatpush1.msra.mxu0 0.0
    %817 = vmatprep.subr.mxu0 0.0
    %818 = vmatpush1.msra.mxu0 0.0
    %819 = vmatprep.subr.mxu0 0.0
    %820 = vmatpush1.msra.mxu0 0.0
    %821 = vmatprep.subr.mxu0 0.0
    %822 = vmatpush1.msra.mxu0 0.0
    %823 = vmatprep.mubr.f32.mxu0 0.0
    %824 = vmatmul.mubr.f32.gmra.mrb[0].mxu0 %v755
    %v825 = vpop.f32.mrb[0].mxu0
    %v826 = vadd.f32 %v749, %v825
    %v827 = vpop.f32.mrb[0].mxu0
    %828 = vdwg.mxu0
    %v829 = vmul.f32 %v826, %v672
    %830 = vst.msk [vmem:[#allocation2] sm:$0xff] %vm497, %v829
    %831 = vrot.lane.b32.xlu0 %v492, 120
    %v832 = vpop.permute.xlu0 %831
    %833 = vrot.lane.b32.xlu0 %v108, 120
    %v834 = vpop.permute.xlu0 %833
    %v835 = vsel %vm497, %v832, 0
    %v837 = vsel %vm497, %v834, 0
    %839 = vmatprep.subr.mxu0 0.0
    %840 = vmatpush1.xpose.msra.mxu0 %v837
    %841 = vmatprep.subr.mxu0 0.0
    %842 = vmatpush1.xpose.msra.mxu0 0.0
    %843 = vmatprep.subr.mxu0 0.0
    %844 = vmatpush1.xpose.msra.mxu0 0.0
    %845 = vmatprep.subr.mxu0 0.0
    %846 = vmatpush1.xpose.msra.mxu0 0.0
    %847 = vmatprep.subr.mxu0 0.0
    %848 = vmatpush1.xpose.msra.mxu0 0.0
    %849 = vmatprep.subr.mxu0 0.0
    %850 = vmatpush1.xpose.msra.mxu0 0.0
    %851 = vmatprep.subr.mxu0 0.0
    %852 = vmatpush1.xpose.msra.mxu0 0.0
    %853 = vmatprep.subr.mxu0 0.0
    %854 = vmatpush1.xpose.msra.mxu0 0.0
    %855 = vmatprep.subr.mxu0 0.0
    %856 = vmatpush1.xpose.msra.mxu0 0.0
    %857 = vmatprep.subr.mxu0 0.0
    %858 = vmatpush1.xpose.msra.mxu0 0.0
    %859 = vmatprep.subr.mxu0 0.0
    %860 = vmatpush1.xpose.msra.mxu0 0.0
    %861 = vmatprep.subr.mxu0 0.0
    %862 = vmatpush1.xpose.msra.mxu0 0.0
    %863 = vmatprep.subr.mxu0 0.0
    %864 = vmatpush1.xpose.msra.mxu0 0.0
    %865 = vmatprep.subr.mxu0 0.0
    %866 = vmatpush1.xpose.msra.mxu0 0.0
    %867 = vmatprep.subr.mxu0 0.0
    %868 = vmatpush1.xpose.msra.mxu0 0.0
    %869 = vmatprep.subr.mxu0 0.0
    %870 = vmatpush1.xpose.msra.mxu0 0.0
    %871 = vmatprep.subr.mxu0 0.0
    %872 = vmatpush1.xpose.msra.mxu0 0.0
    %873 = vmatprep.subr.mxu0 0.0
    %874 = vmatpush1.xpose.msra.mxu0 0.0
    %875 = vmatprep.subr.mxu0 0.0
    %876 = vmatpush1.xpose.msra.mxu0 0.0
    %877 = vmatprep.subr.mxu0 0.0
    %878 = vmatpush1.xpose.msra.mxu0 0.0
    %879 = vmatprep.subr.mxu0 0.0
    %880 = vmatpush1.xpose.msra.mxu0 0.0
    %881 = vmatprep.subr.mxu0 0.0
    %882 = vmatpush1.xpose.msra.mxu0 0.0
    %883 = vmatprep.subr.mxu0 0.0
    %884 = vmatpush1.xpose.msra.mxu0 0.0
    %885 = vmatprep.subr.mxu0 0.0
    %886 = vmatpush1.xpose.msra.mxu0 0.0
    %887 = vmatprep.subr.mxu0 0.0
    %888 = vmatpush1.xpose.msra.mxu0 0.0
    %889 = vmatprep.subr.mxu0 0.0
    %890 = vmatpush1.xpose.msra.mxu0 0.0
    %891 = vmatprep.subr.mxu0 0.0
    %892 = vmatpush1.xpose.msra.mxu0 0.0
    %893 = vmatprep.subr.mxu0 0.0
    %894 = vmatpush1.xpose.msra.mxu0 0.0
    %895 = vmatprep.subr.mxu0 0.0
    %896 = vmatpush1.xpose.msra.mxu0 0.0
    %897 = vmatprep.subr.mxu0 0.0
    %898 = vmatpush1.xpose.msra.mxu0 0.0
    %899 = vmatprep.subr.mxu0 0.0
    %900 = vmatpush1.xpose.msra.mxu0 0.0
    %901 = vmatprep.subr.mxu0 0.0
    %902 = vmatpush1.xpose.msra.mxu0 0.0
    %903 = vmatprep.mubr.f32.mxu0 0.0
    %904 = vmatmul.mubr.f32.gmra.mrb[0].mxu0 %v835
    %v905 = vpop.f32.mrb[0].mxu0
    %v906 = vadd.f32 0.0, %v905
    %v907 = vpop.f32.mrb[0].mxu0
    %908 = vdwg.mxu0
    %909 = vrot.lane.b32.xlu0 %v101, 120
    %v910 = vpop.permute.xlu0 %909
    %911 = vrot.lane.b32.xlu0 %v104, 120
    %v912 = vpop.permute.xlu0 %911
    %v913 = vsel %vm497, %v910, 0
    %v915 = vsel %vm497, %v912, 0
    %917 = vmatprep.subr.mxu0 0.0
    %918 = vmatpush1.xpose.msra.mxu0 %v913
    %919 = vmatprep.subr.mxu0 0.0
    %920 = vmatpush1.xpose.msra.mxu0 %v915
    %921 = vmatprep.subr.mxu0 0.0
    %922 = vmatpush1.xpose.msra.mxu0 0.0
    %923 = vmatprep.subr.mxu0 0.0
    %924 = vmatpush1.xpose.msra.mxu0 0.0
    %925 = vmatprep.subr.mxu0 0.0
    %926 = vmatpush1.xpose.msra.mxu0 0.0
    %927 = vmatprep.subr.mxu0 0.0
    %928 = vmatpush1.xpose.msra.mxu0 0.0
    %929 = vmatprep.subr.mxu0 0.0
    %930 = vmatpush1.xpose.msra.mxu0 0.0
    %931 = vmatprep.subr.mxu0 0.0
    %932 = vmatpush1.xpose.msra.mxu0 0.0
    %933 = vmatprep.subr.mxu0 0.0
    %934 = vmatpush1.xpose.msra.mxu0 0.0
    %935 = vmatprep.subr.mxu0 0.0
    %936 = vmatpush1.xpose.msra.mxu0 0.0
    %937 = vmatprep.subr.mxu0 0.0
    %938 = vmatpush1.xpose.msra.mxu0 0.0
    %939 = vmatprep.subr.mxu0 0.0
    %940 = vmatpush1.xpose.msra.mxu0 0.0
    %941 = vmatprep.subr.mxu0 0.0
    %942 = vmatpush1.xpose.msra.mxu0 0.0
    %943 = vmatprep.subr.mxu0 0.0
    %944 = vmatpush1.xpose.msra.mxu0 0.0
    %945 = vmatprep.subr.mxu0 0.0
    %946 = vmatpush1.xpose.msra.mxu0 0.0
    %947 = vmatprep.subr.mxu0 0.0
    %948 = vmatpush1.xpose.msra.mxu0 0.0
    %949 = vmatprep.subr.mxu0 0.0
    %950 = vmatpush1.xpose.msra.mxu0 0.0
    %951 = vmatprep.subr.mxu0 0.0
    %952 = vmatpush1.xpose.msra.mxu0 0.0
    %953 = vmatprep.subr.mxu0 0.0
    %954 = vmatpush1.xpose.msra.mxu0 0.0
    %955 = vmatprep.subr.mxu0 0.0
    %956 = vmatpush1.xpose.msra.mxu0 0.0
    %957 = vmatprep.subr.mxu0 0.0
    %958 = vmatpush1.xpose.msra.mxu0 0.0
    %959 = vmatprep.subr.mxu0 0.0
    %960 = vmatpush1.xpose.msra.mxu0 0.0
    %961 = vmatprep.subr.mxu0 0.0
    %962 = vmatpush1.xpose.msra.mxu0 0.0
    %963 = vmatprep.subr.mxu0 0.0
    %964 = vmatpush1.xpose.msra.mxu0 0.0
    %965 = vmatprep.subr.mxu0 0.0
    %966 = vmatpush1.xpose.msra.mxu0 0.0
    %967 = vmatprep.subr.mxu0 0.0
    %968 = vmatpush1.xpose.msra.mxu0 0.0
    %969 = vmatprep.subr.mxu0 0.0
    %970 = vmatpush1.xpose.msra.mxu0 0.0
    %971 = vmatprep.subr.mxu0 0.0
    %972 = vmatpush1.xpose.msra.mxu0 0.0
    %973 = vmatprep.subr.mxu0 0.0
    %974 = vmatpush1.xpose.msra.mxu0 0.0
    %975 = vmatprep.subr.mxu0 0.0
    %976 = vmatpush1.xpose.msra.mxu0 0.0
    %977 = vmatprep.subr.mxu0 0.0
    %978 = vmatpush1.xpose.msra.mxu0 0.0
    %979 = vmatprep.subr.mxu0 0.0
    %980 = vmatpush1.xpose.msra.mxu0 0.0
    %981 = vmatprep.mubr.f32.mxu0 0.0
    %982 = vmatmul.mubr.f32.gmra.mrb[0].mxu0 %v835
    %v983 = vpop.f32.mrb[0].mxu0
    %v984 = vadd.f32 0.0, %v983
    %v985 = vpop.f32.mrb[0].mxu0
    %986 = vdwg.mxu0
    %v987 = vsel %vm650, %v906, -inf
    %988 = vmax.xlane.f32.xlu0 %v987
    %v989 = vpop.xlane.xlu0 %988
    %v990 = vsel %vm654, %v984, -inf
    %991 = vmax.xlane.f32.xlu0 %v990
    %v992 = vpop.xlane.xlu0 %991
    %v993 = vmax.f32 %v989, %v992
    %v994 = vsub.f32 %v906, %v993
    %v995 = vmul.f32 %v994, 1.442695
    %v996 = vpow.pop %v995
    %v997 = vsub.f32 %v984, %v993
    %v998 = vmul.f32 %v997, 1.442695
    %v999 = vpow.pop %v998
    %v1000 = vsel %vm650, %v996, 0.0
    %1001 = vadd.xlane.f32.xlu0 %v1000
    %v1002 = vpop.xlane.xlu0 %1001
    %v1003 = vsel %vm654, %v999, 0.0
    %1004 = vadd.xlane.f32.xlu0 %v1003
    %v1005 = vpop.xlane.xlu0 %1004
    %v1006 = vadd.f32 %v1002, %v1005
    %v1007 = vrcp.pop %v1006
    %1008 = vrot.lane.b32.xlu0 %v101, 88
    %v1009 = vpop.permute.xlu0 %1008
    %1010 = vrot.lane.b32.xlu0 %v104, 88
    %v1011 = vpop.permute.xlu0 %1010
    %v1015 = vsel %vm654, %v999, 0
    %1017 = vmatprep.subr.mxu0 0.0
    %1018 = vmatpush1.msra.mxu0 %v1009
    %1019 = vmatprep.subr.mxu0 0.0
    %1020 = vmatpush1.msra.mxu0 %v1011
    %1021 = vmatprep.subr.mxu0 0.0
    %1022 = vmatpush1.msra.mxu0 0.0
    %1023 = vmatprep.subr.mxu0 0.0
    %1024 = vmatpush1.msra.mxu0 0.0
    %1025 = vmatprep.subr.mxu0 0.0
    %1026 = vmatpush1.msra.mxu0 0.0
    %1027 = vmatprep.subr.mxu0 0.0
    %1028 = vmatpush1.msra.mxu0 0.0
    %1029 = vmatprep.subr.mxu0 0.0
    %1030 = vmatpush1.msra.mxu0 0.0
    %1031 = vmatprep.subr.mxu0 0.0
    %1032 = vmatpush1.msra.mxu0 0.0
    %1033 = vmatprep.subr.mxu0 0.0
    %1034 = vmatpush1.msra.mxu0 0.0
    %1035 = vmatprep.subr.mxu0 0.0
    %1036 = vmatpush1.msra.mxu0 0.0
    %1037 = vmatprep.subr.mxu0 0.0
    %1038 = vmatpush1.msra.mxu0 0.0
    %1039 = vmatprep.subr.mxu0 0.0
    %1040 = vmatpush1.msra.mxu0 0.0
    %1041 = vmatprep.subr.mxu0 0.0
    %1042 = vmatpush1.msra.mxu0 0.0
    %1043 = vmatprep.subr.mxu0 0.0
    %1044 = vmatpush1.msra.mxu0 0.0
    %1045 = vmatprep.subr.mxu0 0.0
    %1046 = vmatpush1.msra.mxu0 0.0
    %1047 = vmatprep.subr.mxu0 0.0
    %1048 = vmatpush1.msra.mxu0 0.0
    %1049 = vmatprep.subr.mxu0 0.0
    %1050 = vmatpush1.msra.mxu0 0.0
    %1051 = vmatprep.subr.mxu0 0.0
    %1052 = vmatpush1.msra.mxu0 0.0
    %1053 = vmatprep.subr.mxu0 0.0
    %1054 = vmatpush1.msra.mxu0 0.0
    %1055 = vmatprep.subr.mxu0 0.0
    %1056 = vmatpush1.msra.mxu0 0.0
    %1057 = vmatprep.subr.mxu0 0.0
    %1058 = vmatpush1.msra.mxu0 0.0
    %1059 = vmatprep.subr.mxu0 0.0
    %1060 = vmatpush1.msra.mxu0 0.0
    %1061 = vmatprep.subr.mxu0 0.0
    %1062 = vmatpush1.msra.mxu0 0.0
    %1063 = vmatprep.subr.mxu0 0.0
    %1064 = vmatpush1.msra.mxu0 0.0
    %1065 = vmatprep.subr.mxu0 0.0
    %1066 = vmatpush1.msra.mxu0 0.0
    %1067 = vmatprep.subr.mxu0 0.0
    %1068 = vmatpush1.msra.mxu0 0.0
    %1069 = vmatprep.subr.mxu0 0.0
    %1070 = vmatpush1.msra.mxu0 0.0
    %1071 = vmatprep.subr.mxu0 0.0
    %1072 = vmatpush1.msra.mxu0 0.0
    %1073 = vmatprep.subr.mxu0 0.0
    %1074 = vmatpush1.msra.mxu0 0.0
    %1075 = vmatprep.subr.mxu0 0.0
    %1076 = vmatpush1.msra.mxu0 0.0
    %1077 = vmatprep.subr.mxu0 0.0
    %1078 = vmatpush1.msra.mxu0 0.0
    %1079 = vmatprep.subr.mxu0 0.0
    %1080 = vmatpush1.msra.mxu0 0.0
    %1081 = vmatprep.mubr.f32.mxu0 0.0
    %1082 = vmatmul.mubr.f32.gmra.mrb[0].mxu0 %v1015
    %v1083 = vpop.f32.mrb[0].mxu0
    %v1084 = vadd.f32 0.0, %v1083
    %v1085 = vpop.f32.mrb[0].mxu0
    %1086 = vdwg.mxu0
    %1087 = vrot.lane.b32.xlu0 %v108, 88
    %v1088 = vpop.permute.xlu0 %1087
    %v1090 = vsel %vm650, %v996, 0
    %v1092 = vsel %vm343, %v1088, 0
    %1094 = vmatprep.subr.mxu0 0.0
    %1095 = vmatpush1.msra.mxu0 %v1092
    %1096 = vmatprep.subr.mxu0 0.0
    %1097 = vmatpush1.msra.mxu0 0.0
    %1098 = vmatprep.subr.mxu0 0.0
    %1099 = vmatpush1.msra.mxu0 0.0
    %1100 = vmatprep.subr.mxu0 0.0
    %1101 = vmatpush1.msra.mxu0 0.0
    %1102 = vmatprep.subr.mxu0 0.0
    %1103 = vmatpush1.msra.mxu0 0.0
    %1104 = vmatprep.subr.mxu0 0.0
    %1105 = vmatpush1.msra.mxu0 0.0
    %1106 = vmatprep.subr.mxu0 0.0
    %1107 = vmatpush1.msra.mxu0 0.0
    %1108 = vmatprep.subr.mxu0 0.0
    %1109 = vmatpush1.msra.mxu0 0.0
    %1110 = vmatprep.subr.mxu0 0.0
    %1111 = vmatpush1.msra.mxu0 0.0
    %1112 = vmatprep.subr.mxu0 0.0
    %1113 = vmatpush1.msra.mxu0 0.0
    %1114 = vmatprep.subr.mxu0 0.0
    %1115 = vmatpush1.msra.mxu0 0.0
    %1116 = vmatprep.subr.mxu0 0.0
    %1117 = vmatpush1.msra.mxu0 0.0
    %1118 = vmatprep.subr.mxu0 0.0
    %1119 = vmatpush1.msra.mxu0 0.0
    %1120 = vmatprep.subr.mxu0 0.0
    %1121 = vmatpush1.msra.mxu0 0.0
    %1122 = vmatprep.subr.mxu0 0.0
    %1123 = vmatpush1.msra.mxu0 0.0
    %1124 = vmatprep.subr.mxu0 0.0
    %1125 = vmatpush1.msra.mxu0 0.0
    %1126 = vmatprep.subr.mxu0 0.0
    %1127 = vmatpush1.msra.mxu0 0.0
    %1128 = vmatprep.subr.mxu0 0.0
    %1129 = vmatpush1.msra.mxu0 0.0
    %1130 = vmatprep.subr.mxu0 0.0
    %1131 = vmatpush1.msra.mxu0 0.0
    %1132 = vmatprep.subr.mxu0 0.0
    %1133 = vmatpush1.msra.mxu0 0.0
    %1134 = vmatprep.subr.mxu0 0.0
    %1135 = vmatpush1.msra.mxu0 0.0
    %1136 = vmatprep.subr.mxu0 0.0
    %1137 = vmatpush1.msra.mxu0 0.0
    %1138 = vmatprep.subr.mxu0 0.0
    %1139 = vmatpush1.msra.mxu0 0.0
    %1140 = vmatprep.subr.mxu0 0.0
    %1141 = vmatpush1.msra.mxu0 0.0
    %1142 = vmatprep.subr.mxu0 0.0
    %1143 = vmatpush1.msra.mxu0 0.0
    %1144 = vmatprep.subr.mxu0 0.0
    %1145 = vmatpush1.msra.mxu0 0.0
    %1146 = vmatprep.subr.mxu0 0.0
    %1147 = vmatpush1.msra.mxu0 0.0
    %1148 = vmatprep.subr.mxu0 0.0
    %1149 = vmatpush1.msra.mxu0 0.0
    %1150 = vmatprep.subr.mxu0 0.0
    %1151 = vmatpush1.msra.mxu0 0.0
    %1152 = vmatprep.subr.mxu0 0.0
    %1153 = vmatpush1.msra.mxu0 0.0
    %1154 = vmatprep.subr.mxu0 0.0
    %1155 = vmatpush1.msra.mxu0 0.0
    %1156 = vmatprep.subr.mxu0 0.0
    %1157 = vmatpush1.msra.mxu0 0.0
    %1158 = vmatprep.mubr.f32.mxu0 0.0
    %1159 = vmatmul.mubr.f32.gmra.mrb[0].mxu0 %v1090
    %v1160 = vpop.f32.mrb[0].mxu0
    %v1161 = vadd.f32 %v1084, %v1160
    %v1162 = vpop.f32.mrb[0].mxu0
    %1163 = vdwg.mxu0
    %v1164 = vmul.f32 %v1161, %v1007
    %1166 = vrot.lane.b32.xlu0 %v1164, 8
    %v1167 = vpop.permute.xlu0 %1166
    %vm1169 = vcmask 130112
    %1170 = vst.msk [vmem:[#allocation2] sm:$0xff] %vm1169, %v1167
    %1171 = vrot.lane.b32.xlu0 %v492, 112
    %v1172 = vpop.permute.xlu0 %1171
    %1173 = vrot.lane.b32.xlu0 %v108, 112
    %v1174 = vpop.permute.xlu0 %1173
    %v1175 = vsel %vm497, %v1172, 0
    %v1177 = vsel %vm497, %v1174, 0
    %1179 = vmatprep.subr.mxu0 0.0
    %1180 = vmatpush1.xpose.msra.mxu0 %v1177
    %1181 = vmatprep.subr.mxu0 0.0
    %1182 = vmatpush1.xpose.msra.mxu0 0.0
    %1183 = vmatprep.subr.mxu0 0.0
    %1184 = vmatpush1.xpose.msra.mxu0 0.0
    %1185 = vmatprep.subr.mxu0 0.0
    %1186 = vmatpush1.xpose.msra.mxu0 0.0
    %1187 = vmatprep.subr.mxu0 0.0
    %1188 = vmatpush1.xpose.msra.mxu0 0.0
    %1189 = vmatprep.subr.mxu0 0.0
    %1190 = vmatpush1.xpose.msra.mxu0 0.0
    %1191 = vmatprep.subr.mxu0 0.0
    %1192 = vmatpush1.xpose.msra.mxu0 0.0
    %1193 = vmatprep.subr.mxu0 0.0
    %1194 = vmatpush1.xpose.msra.mxu0 0.0
    %1195 = vmatprep.subr.mxu0 0.0
    %1196 = vmatpush1.xpose.msra.mxu0 0.0
    %1197 = vmatprep.subr.mxu0 0.0
    %1198 = vmatpush1.xpose.msra.mxu0 0.0
    %1199 = vmatprep.subr.mxu0 0.0
    %1200 = vmatpush1.xpose.msra.mxu0 0.0
    %1201 = vmatprep.subr.mxu0 0.0
    %1202 = vmatpush1.xpose.msra.mxu0 0.0
    %1203 = vmatprep.subr.mxu0 0.0
    %1204 = vmatpush1.xpose.msra.mxu0 0.0
    %1205 = vmatprep.subr.mxu0 0.0
    %1206 = vmatpush1.xpose.msra.mxu0 0.0
    %1207 = vmatprep.subr.mxu0 0.0
    %1208 = vmatpush1.xpose.msra.mxu0 0.0
    %1209 = vmatprep.subr.mxu0 0.0
    %1210 = vmatpush1.xpose.msra.mxu0 0.0
    %1211 = vmatprep.subr.mxu0 0.0
    %1212 = vmatpush1.xpose.msra.mxu0 0.0
    %1213 = vmatprep.subr.mxu0 0.0
    %1214 = vmatpush1.xpose.msra.mxu0 0.0
    %1215 = vmatprep.subr.mxu0 0.0
    %1216 = vmatpush1.xpose.msra.mxu0 0.0
    %1217 = vmatprep.subr.mxu0 0.0
    %1218 = vmatpush1.xpose.msra.mxu0 0.0
    %1219 = vmatprep.subr.mxu0 0.0
    %1220 = vmatpush1.xpose.msra.mxu0 0.0
    %1221 = vmatprep.subr.mxu0 0.0
    %1222 = vmatpush1.xpose.msra.mxu0 0.0
    %1223 = vmatprep.subr.mxu0 0.0
    %1224 = vmatpush1.xpose.msra.mxu0 0.0
    %1225 = vmatprep.subr.mxu0 0.0
    %1226 = vmatpush1.xpose.msra.mxu0 0.0
    %1227 = vmatprep.subr.mxu0 0.0
    %1228 = vmatpush1.xpose.msra.mxu0 0.0
    %1229 = vmatprep.subr.mxu0 0.0
    %1230 = vmatpush1.xpose.msra.mxu0 0.0
    %1231 = vmatprep.subr.mxu0 0.0
    %1232 = vmatpush1.xpose.msra.mxu0 0.0
    %1233 = vmatprep.subr.mxu0 0.0
    %1234 = vmatpush1.xpose.msra.mxu0 0.0
    %1235 = vmatprep.subr.mxu0 0.0
    %1236 = vmatpush1.xpose.msra.mxu0 0.0
    %1237 = vmatprep.subr.mxu0 0.0
    %1238 = vmatpush1.xpose.msra.mxu0 0.0
    %1239 = vmatprep.subr.mxu0 0.0
    %1240 = vmatpush1.xpose.msra.mxu0 0.0
    %1241 = vmatprep.subr.mxu0 0.0
    %1242 = vmatpush1.xpose.msra.mxu0 0.0
    %1243 = vmatprep.mubr.f32.mxu0 0.0
    %1244 = vmatmul.mubr.f32.gmra.mrb[0].mxu0 %v1175
    %v1245 = vpop.f32.mrb[0].mxu0
    %v1246 = vadd.f32 0.0, %v1245
    %v1247 = vpop.f32.mrb[0].mxu0
    %1248 = vdwg.mxu0
    %1249 = vrot.lane.b32.xlu0 %v101, 112
    %v1250 = vpop.permute.xlu0 %1249
    %1251 = vrot.lane.b32.xlu0 %v104, 112
    %v1252 = vpop.permute.xlu0 %1251
    %v1253 = vsel %vm497, %v1250, 0
    %v1255 = vsel %vm497, %v1252, 0
    %1257 = vmatprep.subr.mxu0 0.0
    %1258 = vmatpush1.xpose.msra.mxu0 %v1253
    %1259 = vmatprep.subr.mxu0 0.0
    %1260 = vmatpush1.xpose.msra.mxu0 %v1255
    %1261 = vmatprep.subr.mxu0 0.0
    %1262 = vmatpush1.xpose.msra.mxu0 0.0
    %1263 = vmatprep.subr.mxu0 0.0
    %1264 = vmatpush1.xpose.msra.mxu0 0.0
    %1265 = vmatprep.subr.mxu0 0.0
    %1266 = vmatpush1.xpose.msra.mxu0 0.0
    %1267 = vmatprep.subr.mxu0 0.0
    %1268 = vmatpush1.xpose.msra.mxu0 0.0
    %1269 = vmatprep.subr.mxu0 0.0
    %1270 = vmatpush1.xpose.msra.mxu0 0.0
    %1271 = vmatprep.subr.mxu0 0.0
    %1272 = vmatpush1.xpose.msra.mxu0 0.0
    %1273 = vmatprep.subr.mxu0 0.0
    %1274 = vmatpush1.xpose.msra.mxu0 0.0
    %1275 = vmatprep.subr.mxu0 0.0
    %1276 = vmatpush1.xpose.msra.mxu0 0.0
    %1277 = vmatprep.subr.mxu0 0.0
    %1278 = vmatpush1.xpose.msra.mxu0 0.0
    %1279 = vmatprep.subr.mxu0 0.0
    %1280 = vmatpush1.xpose.msra.mxu0 0.0
    %1281 = vmatprep.subr.mxu0 0.0
    %1282 = vmatpush1.xpose.msra.mxu0 0.0
    %1283 = vmatprep.subr.mxu0 0.0
    %1284 = vmatpush1.xpose.msra.mxu0 0.0
    %1285 = vmatprep.subr.mxu0 0.0
    %1286 = vmatpush1.xpose.msra.mxu0 0.0
    %1287 = vmatprep.subr.mxu0 0.0
    %1288 = vmatpush1.xpose.msra.mxu0 0.0
    %1289 = vmatprep.subr.mxu0 0.0
    %1290 = vmatpush1.xpose.msra.mxu0 0.0
    %1291 = vmatprep.subr.mxu0 0.0
    %1292 = vmatpush1.xpose.msra.mxu0 0.0
    %1293 = vmatprep.subr.mxu0 0.0
    %1294 = vmatpush1.xpose.msra.mxu0 0.0
    %1295 = vmatprep.subr.mxu0 0.0
    %1296 = vmatpush1.xpose.msra.mxu0 0.0
    %1297 = vmatprep.subr.mxu0 0.0
    %1298 = vmatpush1.xpose.msra.mxu0 0.0
    %1299 = vmatprep.subr.mxu0 0.0
    %1300 = vmatpush1.xpose.msra.mxu0 0.0
    %1301 = vmatprep.subr.mxu0 0.0
    %1302 = vmatpush1.xpose.msra.mxu0 0.0
    %1303 = vmatprep.subr.mxu0 0.0
    %1304 = vmatpush1.xpose.msra.mxu0 0.0
    %1305 = vmatprep.subr.mxu0 0.0
    %1306 = vmatpush1.xpose.msra.mxu0 0.0
    %1307 = vmatprep.subr.mxu0 0.0
    %1308 = vmatpush1.xpose.msra.mxu0 0.0
    %1309 = vmatprep.subr.mxu0 0.0
    %1310 = vmatpush1.xpose.msra.mxu0 0.0
    %1311 = vmatprep.subr.mxu0 0.0
    %1312 = vmatpush1.xpose.msra.mxu0 0.0
    %1313 = vmatprep.subr.mxu0 0.0
    %1314 = vmatpush1.xpose.msra.mxu0 0.0
    %1315 = vmatprep.subr.mxu0 0.0
    %1316 = vmatpush1.xpose.msra.mxu0 0.0
    %1317 = vmatprep.subr.mxu0 0.0
    %1318 = vmatpush1.xpose.msra.mxu0 0.0
    %1319 = vmatprep.subr.mxu0 0.0
    %1320 = vmatpush1.xpose.msra.mxu0 0.0
    %1321 = vmatprep.mubr.f32.mxu0 0.0
    %1322 = vmatmul.mubr.f32.gmra.mrb[0].mxu0 %v1175
    %v1323 = vpop.f32.mrb[0].mxu0
    %v1324 = vadd.f32 0.0, %v1323
    %v1325 = vpop.f32.mrb[0].mxu0
    %1326 = vdwg.mxu0
    %v1327 = vsel %vm650, %v1246, -inf
    %1328 = vmax.xlane.f32.xlu0 %v1327
    %v1329 = vpop.xlane.xlu0 %1328
    %v1330 = vsel %vm654, %v1324, -inf
    %1331 = vmax.xlane.f32.xlu0 %v1330
    %v1332 = vpop.xlane.xlu0 %1331
    %v1333 = vmax.f32 %v1329, %v1332
    %v1334 = vsub.f32 %v1246, %v1333
    %v1335 = vmul.f32 %v1334, 1.442695
    %v1336 = vpow.pop %v1335
    %v1337 = vsub.f32 %v1324, %v1333
    %v1338 = vmul.f32 %v1337, 1.442695
    %v1339 = vpow.pop %v1338
    %v1340 = vsel %vm650, %v1336, 0.0
    %1341 = vadd.xlane.f32.xlu0 %v1340
    %v1342 = vpop.xlane.xlu0 %1341
    %v1343 = vsel %vm654, %v1339, 0.0
    %1344 = vadd.xlane.f32.xlu0 %v1343
    %v1345 = vpop.xlane.xlu0 %1344
    %v1346 = vadd.f32 %v1342, %v1345
    %v1347 = vrcp.pop %v1346
    %1348 = vrot.lane.b32.xlu0 %v101, 80
    %v1349 = vpop.permute.xlu0 %1348
    %1350 = vrot.lane.b32.xlu0 %v104, 80
    %v1351 = vpop.permute.xlu0 %1350
    %v1355 = vsel %vm654, %v1339, 0
    %1357 = vmatprep.subr.mxu0 0.0
    %1358 = vmatpush1.msra.mxu0 %v1349
    %1359 = vmatprep.subr.mxu0 0.0
    %1360 = vmatpush1.msra.mxu0 %v1351
    %1361 = vmatprep.subr.mxu0 0.0
    %1362 = vmatpush1.msra.mxu0 0.0
    %1363 = vmatprep.subr.mxu0 0.0
    %1364 = vmatpush1.msra.mxu0 0.0
    %1365 = vmatprep.subr.mxu0 0.0
    %1366 = vmatpush1.msra.mxu0 0.0
    %1367 = vmatprep.subr.mxu0 0.0
    %1368 = vmatpush1.msra.mxu0 0.0
    %1369 = vmatprep.subr.mxu0 0.0
    %1370 = vmatpush1.msra.mxu0 0.0
    %1371 = vmatprep.subr.mxu0 0.0
    %1372 = vmatpush1.msra.mxu0 0.0
    %1373 = vmatprep.subr.mxu0 0.0
    %1374 = vmatpush1.msra.mxu0 0.0
    %1375 = vmatprep.subr.mxu0 0.0
    %1376 = vmatpush1.msra.mxu0 0.0
    %1377 = vmatprep.subr.mxu0 0.0
    %1378 = vmatpush1.msra.mxu0 0.0
    %1379 = vmatprep.subr.mxu0 0.0
    %1380 = vmatpush1.msra.mxu0 0.0
    %1381 = vmatprep.subr.mxu0 0.0
    %1382 = vmatpush1.msra.mxu0 0.0
    %1383 = vmatprep.subr.mxu0 0.0
    %1384 = vmatpush1.msra.mxu0 0.0
    %1385 = vmatprep.subr.mxu0 0.0
    %1386 = vmatpush1.msra.mxu0 0.0
    %1387 = vmatprep.subr.mxu0 0.0
    %1388 = vmatpush1.msra.mxu0 0.0
    %1389 = vmatprep.subr.mxu0 0.0
    %1390 = vmatpush1.msra.mxu0 0.0
    %1391 = vmatprep.subr.mxu0 0.0
    %1392 = vmatpush1.msra.mxu0 0.0
    %1393 = vmatprep.subr.mxu0 0.0
    %1394 = vmatpush1.msra.mxu0 0.0
    %1395 = vmatprep.subr.mxu0 0.0
    %1396 = vmatpush1.msra.mxu0 0.0
    %1397 = vmatprep.subr.mxu0 0.0
    %1398 = vmatpush1.msra.mxu0 0.0
    %1399 = vmatprep.subr.mxu0 0.0
    %1400 = vmatpush1.msra.mxu0 0.0
    %1401 = vmatprep.subr.mxu0 0.0
    %1402 = vmatpush1.msra.mxu0 0.0
    %1403 = vmatprep.subr.mxu0 0.0
    %1404 = vmatpush1.msra.mxu0 0.0
    %1405 = vmatprep.subr.mxu0 0.0
    %1406 = vmatpush1.msra.mxu0 0.0
    %1407 = vmatprep.subr.mxu0 0.0
    %1408 = vmatpush1.msra.mxu0 0.0
    %1409 = vmatprep.subr.mxu0 0.0
    %1410 = vmatpush1.msra.mxu0 0.0
    %1411 = vmatprep.subr.mxu0 0.0
    %1412 = vmatpush1.msra.mxu0 0.0
    %1413 = vmatprep.subr.mxu0 0.0
    %1414 = vmatpush1.msra.mxu0 0.0
    %1415 = vmatprep.subr.mxu0 0.0
    %1416 = vmatpush1.msra.mxu0 0.0
    %1417 = vmatprep.subr.mxu0 0.0
    %1418 = vmatpush1.msra.mxu0 0.0
    %1419 = vmatprep.subr.mxu0 0.0
    %1420 = vmatpush1.msra.mxu0 0.0
    %1421 = vmatprep.mubr.f32.mxu0 0.0
    %1422 = vmatmul.mubr.f32.gmra.mrb[0].mxu0 %v1355
    %v1423 = vpop.f32.mrb[0].mxu0
    %v1424 = vadd.f32 0.0, %v1423
    %v1425 = vpop.f32.mrb[0].mxu0
    %1426 = vdwg.mxu0
    %1427 = vrot.lane.b32.xlu0 %v108, 80
    %v1428 = vpop.permute.xlu0 %1427
    %v1430 = vsel %vm650, %v1336, 0
    %v1432 = vsel %vm343, %v1428, 0
    %1434 = vmatprep.subr.mxu0 0.0
    %1435 = vmatpush1.msra.mxu0 %v1432
    %1436 = vmatprep.subr.mxu0 0.0
    %1437 = vmatpush1.msra.mxu0 0.0
    %1438 = vmatprep.subr.mxu0 0.0
    %1439 = vmatpush1.msra.mxu0 0.0
    %1440 = vmatprep.subr.mxu0 0.0
    %1441 = vmatpush1.msra.mxu0 0.0
    %1442 = vmatprep.subr.mxu0 0.0
    %1443 = vmatpush1.msra.mxu0 0.0
    %1444 = vmatprep.subr.mxu0 0.0
    %1445 = vmatpush1.msra.mxu0 0.0
    %1446 = vmatprep.subr.mxu0 0.0
    %1447 = vmatpush1.msra.mxu0 0.0
    %1448 = vmatprep.subr.mxu0 0.0
    %1449 = vmatpush1.msra.mxu0 0.0
    %1450 = vmatprep.subr.mxu0 0.0
    %1451 = vmatpush1.msra.mxu0 0.0
    %1452 = vmatprep.subr.mxu0 0.0
    %1453 = vmatpush1.msra.mxu0 0.0
    %1454 = vmatprep.subr.mxu0 0.0
    %1455 = vmatpush1.msra.mxu0 0.0
    %1456 = vmatprep.subr.mxu0 0.0
    %1457 = vmatpush1.msra.mxu0 0.0
    %1458 = vmatprep.subr.mxu0 0.0
    %1459 = vmatpush1.msra.mxu0 0.0
    %1460 = vmatprep.subr.mxu0 0.0
    %1461 = vmatpush1.msra.mxu0 0.0
    %1462 = vmatprep.subr.mxu0 0.0
    %1463 = vmatpush1.msra.mxu0 0.0
    %1464 = vmatprep.subr.mxu0 0.0
    %1465 = vmatpush1.msra.mxu0 0.0
    %1466 = vmatprep.subr.mxu0 0.0
    %1467 = vmatpush1.msra.mxu0 0.0
    %1468 = vmatprep.subr.mxu0 0.0
    %1469 = vmatpush1.msra.mxu0 0.0
    %1470 = vmatprep.subr.mxu0 0.0
    %1471 = vmatpush1.msra.mxu0 0.0
    %1472 = vmatprep.subr.mxu0 0.0
    %1473 = vmatpush1.msra.mxu0 0.0
    %1474 = vmatprep.subr.mxu0 0.0
    %1475 = vmatpush1.msra.mxu0 0.0
    %1476 = vmatprep.subr.mxu0 0.0
    %1477 = vmatpush1.msra.mxu0 0.0
    %1478 = vmatprep.subr.mxu0 0.0
    %1479 = vmatpush1.msra.mxu0 0.0
    %1480 = vmatprep.subr.mxu0 0.0
    %1481 = vmatpush1.msra.mxu0 0.0
    %1482 = vmatprep.subr.mxu0 0.0
    %1483 = vmatpush1.msra.mxu0 0.0
    %1484 = vmatprep.subr.mxu0 0.0
    %1485 = vmatpush1.msra.mxu0 0.0
    %1486 = vmatprep.subr.mxu0 0.0
    %1487 = vmatpush1.msra.mxu0 0.0
    %1488 = vmatprep.subr.mxu0 0.0
    %1489 = vmatpush1.msra.mxu0 0.0
    %1490 = vmatprep.subr.mxu0 0.0
    %1491 = vmatpush1.msra.mxu0 0.0
    %1492 = vmatprep.subr.mxu0 0.0
    %1493 = vmatpush1.msra.mxu0 0.0
    %1494 = vmatprep.subr.mxu0 0.0
    %1495 = vmatpush1.msra.mxu0 0.0
    %1496 = vmatprep.subr.mxu0 0.0
    %1497 = vmatpush1.msra.mxu0 0.0
    %1498 = vmatprep.mubr.f32.mxu0 0.0
    %1499 = vmatmul.mubr.f32.gmra.mrb[0].mxu0 %v1430
    %v1500 = vpop.f32.mrb[0].mxu0
    %v1501 = vadd.f32 %v1424, %v1500
    %v1502 = vpop.f32.mrb[0].mxu0
    %1503 = vdwg.mxu0
    %v1504 = vmul.f32 %v1501, %v1347
    %1506 = vrot.lane.b32.xlu0 %v1504, 16
    %v1507 = vpop.permute.xlu0 %1506
    %vm1509 = vcmask 195712
    %1510 = vst.msk [vmem:[#allocation2] sm:$0xff] %vm1509, %v1507
    %1511 = vrot.lane.b32.xlu0 %v492, 104
    %v1512 = vpop.permute.xlu0 %1511
    %1513 = vrot.lane.b32.xlu0 %v108, 104
    %v1514 = vpop.permute.xlu0 %1513
    %v1515 = vsel %vm497, %v1512, 0
    %v1517 = vsel %vm497, %v1514, 0
    %1519 = vmatprep.subr.mxu0 0.0
    %1520 = vmatpush1.xpose.msra.mxu0 %v1517
    %1521 = vmatprep.subr.mxu0 0.0
    %1522 = vmatpush1.xpose.msra.mxu0 0.0
    %1523 = vmatprep.subr.mxu0 0.0
    %1524 = vmatpush1.xpose.msra.mxu0 0.0
    %1525 = vmatprep.subr.mxu0 0.0
    %1526 = vmatpush1.xpose.msra.mxu0 0.0
    %1527 = vmatprep.subr.mxu0 0.0
    %1528 = vmatpush1.xpose.msra.mxu0 0.0
    %1529 = vmatprep.subr.mxu0 0.0
    %1530 = vmatpush1.xpose.msra.mxu0 0.0
    %1531 = vmatprep.subr.mxu0 0.0
    %1532 = vmatpush1.xpose.msra.mxu0 0.0
    %1533 = vmatprep.subr.mxu0 0.0
    %1534 = vmatpush1.xpose.msra.mxu0 0.0
    %1535 = vmatprep.subr.mxu0 0.0
    %1536 = vmatpush1.xpose.msra.mxu0 0.0
    %1537 = vmatprep.subr.mxu0 0.0
    %1538 = vmatpush1.xpose.msra.mxu0 0.0
    %1539 = vmatprep.subr.mxu0 0.0
    %1540 = vmatpush1.xpose.msra.mxu0 0.0
    %1541 = vmatprep.subr.mxu0 0.0
    %1542 = vmatpush1.xpose.msra.mxu0 0.0
    %1543 = vmatprep.subr.mxu0 0.0
    %1544 = vmatpush1.xpose.msra.mxu0 0.0
    %1545 = vmatprep.subr.mxu0 0.0
    %1546 = vmatpush1.xpose.msra.mxu0 0.0
    %1547 = vmatprep.subr.mxu0 0.0
    %1548 = vmatpush1.xpose.msra.mxu0 0.0
    %1549 = vmatprep.subr.mxu0 0.0
    %1550 = vmatpush1.xpose.msra.mxu0 0.0
    %1551 = vmatprep.subr.mxu0 0.0
    %1552 = vmatpush1.xpose.msra.mxu0 0.0
    %1553 = vmatprep.subr.mxu0 0.0
    %1554 = vmatpush1.xpose.msra.mxu0 0.0
    %1555 = vmatprep.subr.mxu0 0.0
    %1556 = vmatpush1.xpose.msra.mxu0 0.0
    %1557 = vmatprep.subr.mxu0 0.0
    %1558 = vmatpush1.xpose.msra.mxu0 0.0
    %1559 = vmatprep.subr.mxu0 0.0
    %1560 = vmatpush1.xpose.msra.mxu0 0.0
    %1561 = vmatprep.subr.mxu0 0.0
    %1562 = vmatpush1.xpose.msra.mxu0 0.0
    %1563 = vmatprep.subr.mxu0 0.0
    %1564 = vmatpush1.xpose.msra.mxu0 0.0
    %1565 = vmatprep.subr.mxu0 0.0
    %1566 = vmatpush1.xpose.msra.mxu0 0.0
    %1567 = vmatprep.subr.mxu0 0.0
    %1568 = vmatpush1.xpose.msra.mxu0 0.0
    %1569 = vmatprep.subr.mxu0 0.0
    %1570 = vmatpush1.xpose.msra.mxu0 0.0
    %1571 = vmatprep.subr.mxu0 0.0
    %1572 = vmatpush1.xpose.msra.mxu0 0.0
    %1573 = vmatprep.subr.mxu0 0.0
    %1574 = vmatpush1.xpose.msra.mxu0 0.0
    %1575 = vmatprep.subr.mxu0 0.0
    %1576 = vmatpush1.xpose.msra.mxu0 0.0
    %1577 = vmatprep.subr.mxu0 0.0
    %1578 = vmatpush1.xpose.msra.mxu0 0.0
    %1579 = vmatprep.subr.mxu0 0.0
    %1580 = vmatpush1.xpose.msra.mxu0 0.0
    %1581 = vmatprep.subr.mxu0 0.0
    %1582 = vmatpush1.xpose.msra.mxu0 0.0
    %1583 = vmatprep.mubr.f32.mxu0 0.0
    %1584 = vmatmul.mubr.f32.gmra.mrb[0].mxu0 %v1515
    %v1585 = vpop.f32.mrb[0].mxu0
    %v1586 = vadd.f32 0.0, %v1585
    %v1587 = vpop.f32.mrb[0].mxu0
    %1588 = vdwg.mxu0
    %1589 = vrot.lane.b32.xlu0 %v101, 104
    %v1590 = vpop.permute.xlu0 %1589
    %1591 = vrot.lane.b32.xlu0 %v104, 104
    %v1592 = vpop.permute.xlu0 %1591
    %v1593 = vsel %vm497, %v1590, 0
    %v1595 = vsel %vm497, %v1592, 0
    %1597 = vmatprep.subr.mxu0 0.0
    %1598 = vmatpush1.xpose.msra.mxu0 %v1593
    %1599 = vmatprep.subr.mxu0 0.0
    %1600 = vmatpush1.xpose.msra.mxu0 %v1595
    %1601 = vmatprep.subr.mxu0 0.0
    %1602 = vmatpush1.xpose.msra.mxu0 0.0
    %1603 = vmatprep.subr.mxu0 0.0
    %1604 = vmatpush1.xpose.msra.mxu0 0.0
    %1605 = vmatprep.subr.mxu0 0.0
    %1606 = vmatpush1.xpose.msra.mxu0 0.0
    %1607 = vmatprep.subr.mxu0 0.0
    %1608 = vmatpush1.xpose.msra.mxu0 0.0
    %1609 = vmatprep.subr.mxu0 0.0
    %1610 = vmatpush1.xpose.msra.mxu0 0.0
    %1611 = vmatprep.subr.mxu0 0.0
    %1612 = vmatpush1.xpose.msra.mxu0 0.0
    %1613 = vmatprep.subr.mxu0 0.0
    %1614 = vmatpush1.xpose.msra.mxu0 0.0
    %1615 = vmatprep.subr.mxu0 0.0
    %1616 = vmatpush1.xpose.msra.mxu0 0.0
    %1617 = vmatprep.subr.mxu0 0.0
    %1618 = vmatpush1.xpose.msra.mxu0 0.0
    %1619 = vmatprep.subr.mxu0 0.0
    %1620 = vmatpush1.xpose.msra.mxu0 0.0
    %1621 = vmatprep.subr.mxu0 0.0
    %1622 = vmatpush1.xpose.msra.mxu0 0.0
    %1623 = vmatprep.subr.mxu0 0.0
    %1624 = vmatpush1.xpose.msra.mxu0 0.0
    %1625 = vmatprep.subr.mxu0 0.0
    %1626 = vmatpush1.xpose.msra.mxu0 0.0
    %1627 = vmatprep.subr.mxu0 0.0
    %1628 = vmatpush1.xpose.msra.mxu0 0.0
    %1629 = vmatprep.subr.mxu0 0.0
    %1630 = vmatpush1.xpose.msra.mxu0 0.0
    %1631 = vmatprep.subr.mxu0 0.0
    %1632 = vmatpush1.xpose.msra.mxu0 0.0
    %1633 = vmatprep.subr.mxu0 0.0
    %1634 = vmatpush1.xpose.msra.mxu0 0.0
    %1635 = vmatprep.subr.mxu0 0.0
    %1636 = vmatpush1.xpose.msra.mxu0 0.0
    %1637 = vmatprep.subr.mxu0 0.0
    %1638 = vmatpush1.xpose.msra.mxu0 0.0
    %1639 = vmatprep.subr.mxu0 0.0
    %1640 = vmatpush1.xpose.msra.mxu0 0.0
    %1641 = vmatprep.subr.mxu0 0.0
    %1642 = vmatpush1.xpose.msra.mxu0 0.0
    %1643 = vmatprep.subr.mxu0 0.0
    %1644 = vmatpush1.xpose.msra.mxu0 0.0
    %1645 = vmatprep.subr.mxu0 0.0
    %1646 = vmatpush1.xpose.msra.mxu0 0.0
    %1647 = vmatprep.subr.mxu0 0.0
    %1648 = vmatpush1.xpose.msra.mxu0 0.0
    %1649 = vmatprep.subr.mxu0 0.0
    %1650 = vmatpush1.xpose.msra.mxu0 0.0
    %1651 = vmatprep.subr.mxu0 0.0
    %1652 = vmatpush1.xpose.msra.mxu0 0.0
    %1653 = vmatprep.subr.mxu0 0.0
    %1654 = vmatpush1.xpose.msra.mxu0 0.0
    %1655 = vmatprep.subr.mxu0 0.0
    %1656 = vmatpush1.xpose.msra.mxu0 0.0
    %1657 = vmatprep.subr.mxu0 0.0
    %1658 = vmatpush1.xpose.msra.mxu0 0.0
    %1659 = vmatprep.subr.mxu0 0.0
    %1660 = vmatpush1.xpose.msra.mxu0 0.0
    %1661 = vmatprep.mubr.f32.mxu0 0.0
    %1662 = vmatmul.mubr.f32.gmra.mrb[0].mxu0 %v1515
    %v1663 = vpop.f32.mrb[0].mxu0
    %v1664 = vadd.f32 0.0, %v1663
    %v1665 = vpop.f32.mrb[0].mxu0
    %1666 = vdwg.mxu0
    %v1667 = vsel %vm650, %v1586, -inf
    %1668 = vmax.xlane.f32.xlu0 %v1667
    %v1669 = vpop.xlane.xlu0 %1668
    %v1670 = vsel %vm654, %v1664, -inf
    %1671 = vmax.xlane.f32.xlu0 %v1670
    %v1672 = vpop.xlane.xlu0 %1671
    %v1673 = vmax.f32 %v1669, %v1672
    %v1674 = vsub.f32 %v1586, %v1673
    %v1675 = vmul.f32 %v1674, 1.442695
    %v1676 = vpow.pop %v1675
    %v1677 = vsub.f32 %v1664, %v1673
    %v1678 = vmul.f32 %v1677, 1.442695
    %v1679 = vpow.pop %v1678
    %v1680 = vsel %vm650, %v1676, 0.0
    %1681 = vadd.xlane.f32.xlu0 %v1680
    %v1682 = vpop.xlane.xlu0 %1681
    %v1683 = vsel %vm654, %v1679, 0.0
    %1684 = vadd.xlane.f32.xlu0 %v1683
    %v1685 = vpop.xlane.xlu0 %1684
    %v1686 = vadd.f32 %v1682, %v1685
    %v1687 = vrcp.pop %v1686
    %1688 = vrot.lane.b32.xlu0 %v101, 72
    %v1689 = vpop.permute.xlu0 %1688
    %1690 = vrot.lane.b32.xlu0 %v104, 72
    %v1691 = vpop.permute.xlu0 %1690
    %v1695 = vsel %vm654, %v1679, 0
    %1697 = vmatprep.subr.mxu0 0.0
    %1698 = vmatpush1.msra.mxu0 %v1689
    %1699 = vmatprep.subr.mxu0 0.0
    %1700 = vmatpush1.msra.mxu0 %v1691
    %1701 = vmatprep.subr.mxu0 0.0
    %1702 = vmatpush1.msra.mxu0 0.0
    %1703 = vmatprep.subr.mxu0 0.0
    %1704 = vmatpush1.msra.mxu0 0.0
    %1705 = vmatprep.subr.mxu0 0.0
    %1706 = vmatpush1.msra.mxu0 0.0
    %1707 = vmatprep.subr.mxu0 0.0
    %1708 = vmatpush1.msra.mxu0 0.0
    %1709 = vmatprep.subr.mxu0 0.0
    %1710 = vmatpush1.msra.mxu0 0.0
    %1711 = vmatprep.subr.mxu0 0.0
    %1712 = vmatpush1.msra.mxu0 0.0
    %1713 = vmatprep.subr.mxu0 0.0
    %1714 = vmatpush1.msra.mxu0 0.0
    %1715 = vmatprep.subr.mxu0 0.0
    %1716 = vmatpush1.msra.mxu0 0.0
    %1717 = vmatprep.subr.mxu0 0.0
    %1718 = vmatpush1.msra.mxu0 0.0
    %1719 = vmatprep.subr.mxu0 0.0
    %1720 = vmatpush1.msra.mxu0 0.0
    %1721 = vmatprep.subr.mxu0 0.0
    %1722 = vmatpush1.msra.mxu0 0.0
    %1723 = vmatprep.subr.mxu0 0.0
    %1724 = vmatpush1.msra.mxu0 0.0
    %1725 = vmatprep.subr.mxu0 0.0
    %1726 = vmatpush1.msra.mxu0 0.0
    %1727 = vmatprep.subr.mxu0 0.0
    %1728 = vmatpush1.msra.mxu0 0.0
    %1729 = vmatprep.subr.mxu0 0.0
    %1730 = vmatpush1.msra.mxu0 0.0
    %1731 = vmatprep.subr.mxu0 0.0
    %1732 = vmatpush1.msra.mxu0 0.0
    %1733 = vmatprep.subr.mxu0 0.0
    %1734 = vmatpush1.msra.mxu0 0.0
    %1735 = vmatprep.subr.mxu0 0.0
    %1736 = vmatpush1.msra.mxu0 0.0
    %1737 = vmatprep.subr.mxu0 0.0
    %1738 = vmatpush1.msra.mxu0 0.0
    %1739 = vmatprep.subr.mxu0 0.0
    %1740 = vmatpush1.msra.mxu0 0.0
    %1741 = vmatprep.subr.mxu0 0.0
    %1742 = vmatpush1.msra.mxu0 0.0
    %1743 = vmatprep.subr.mxu0 0.0
    %1744 = vmatpush1.msra.mxu0 0.0
    %1745 = vmatprep.subr.mxu0 0.0
    %1746 = vmatpush1.msra.mxu0 0.0
    %1747 = vmatprep.subr.mxu0 0.0
    %1748 = vmatpush1.msra.mxu0 0.0
    %1749 = vmatprep.subr.mxu0 0.0
    %1750 = vmatpush1.msra.mxu0 0.0
    %1751 = vmatprep.subr.mxu0 0.0
    %1752 = vmatpush1.msra.mxu0 0.0
    %1753 = vmatprep.subr.mxu0 0.0
    %1754 = vmatpush1.msra.mxu0 0.0
    %1755 = vmatprep.subr.mxu0 0.0
    %1756 = vmatpush1.msra.mxu0 0.0
    %1757 = vmatprep.subr.mxu0 0.0
    %1758 = vmatpush1.msra.mxu0 0.0
    %1759 = vmatprep.subr.mxu0 0.0
    %1760 = vmatpush1.msra.mxu0 0.0
    %1761 = vmatprep.mubr.f32.mxu0 0.0
    %1762 = vmatmul.mubr.f32.gmra.mrb[0].mxu0 %v1695
    %v1763 = vpop.f32.mrb[0].mxu0
    %v1764 = vadd.f32 0.0, %v1763
    %v1765 = vpop.f32.mrb[0].mxu0
    %1766 = vdwg.mxu0
    %1767 = vrot.lane.b32.xlu0 %v108, 72
    %v1768 = vpop.permute.xlu0 %1767
    %v1770 = vsel %vm650, %v1676, 0
    %v1772 = vsel %vm343, %v1768, 0
    %1774 = vmatprep.subr.mxu0 0.0
    %1775 = vmatpush1.msra.mxu0 %v1772
    %1776 = vmatprep.subr.mxu0 0.0
    %1777 = vmatpush1.msra.mxu0 0.0
    %1778 = vmatprep.subr.mxu0 0.0
    %1779 = vmatpush1.msra.mxu0 0.0
    %1780 = vmatprep.subr.mxu0 0.0
    %1781 = vmatpush1.msra.mxu0 0.0
    %1782 = vmatprep.subr.mxu0 0.0
    %1783 = vmatpush1.msra.mxu0 0.0
    %1784 = vmatprep.subr.mxu0 0.0
    %1785 = vmatpush1.msra.mxu0 0.0
    %1786 = vmatprep.subr.mxu0 0.0
    %1787 = vmatpush1.msra.mxu0 0.0
    %1788 = vmatprep.subr.mxu0 0.0
    %1789 = vmatpush1.msra.mxu0 0.0
    %1790 = vmatprep.subr.mxu0 0.0
    %1791 = vmatpush1.msra.mxu0 0.0
    %1792 = vmatprep.subr.mxu0 0.0
    %1793 = vmatpush1.msra.mxu0 0.0
    %1794 = vmatprep.subr.mxu0 0.0
    %1795 = vmatpush1.msra.mxu0 0.0
    %1796 = vmatprep.subr.mxu0 0.0
    %1797 = vmatpush1.msra.mxu0 0.0
    %1798 = vmatprep.subr.mxu0 0.0
    %1799 = vmatpush1.msra.mxu0 0.0
    %1800 = vmatprep.subr.mxu0 0.0
    %1801 = vmatpush1.msra.mxu0 0.0
    %1802 = vmatprep.subr.mxu0 0.0
    %1803 = vmatpush1.msra.mxu0 0.0
    %1804 = vmatprep.subr.mxu0 0.0
    %1805 = vmatpush1.msra.mxu0 0.0
    %1806 = vmatprep.subr.mxu0 0.0
    %1807 = vmatpush1.msra.mxu0 0.0
    %1808 = vmatprep.subr.mxu0 0.0
    %1809 = vmatpush1.msra.mxu0 0.0
    %1810 = vmatprep.subr.mxu0 0.0
    %1811 = vmatpush1.msra.mxu0 0.0
    %1812 = vmatprep.subr.mxu0 0.0
    %1813 = vmatpush1.msra.mxu0 0.0
    %1814 = vmatprep.subr.mxu0 0.0
    %1815 = vmatpush1.msra.mxu0 0.0
    %1816 = vmatprep.subr.mxu0 0.0
    %1817 = vmatpush1.msra.mxu0 0.0
    %1818 = vmatprep.subr.mxu0 0.0
    %1819 = vmatpush1.msra.mxu0 0.0
    %1820 = vmatprep.subr.mxu0 0.0
    %1821 = vmatpush1.msra.mxu0 0.0
    %1822 = vmatprep.subr.mxu0 0.0
    %1823 = vmatpush1.msra.mxu0 0.0
    %1824 = vmatprep.subr.mxu0 0.0
    %1825 = vmatpush1.msra.mxu0 0.0
    %1826 = vmatprep.subr.mxu0 0.0
    %1827 = vmatpush1.msra.mxu0 0.0
    %1828 = vmatprep.subr.mxu0 0.0
    %1829 = vmatpush1.msra.mxu0 0.0
    %1830 = vmatprep.subr.mxu0 0.0
    %1831 = vmatpush1.msra.mxu0 0.0
    %1832 = vmatprep.subr.mxu0 0.0
    %1833 = vmatpush1.msra.mxu0 0.0
    %1834 = vmatprep.subr.mxu0 0.0
    %1835 = vmatpush1.msra.mxu0 0.0
    %1836 = vmatprep.subr.mxu0 0.0
    %1837 = vmatpush1.msra.mxu0 0.0
    %1838 = vmatprep.mubr.f32.mxu0 0.0
    %1839 = vmatmul.mubr.f32.gmra.mrb[0].mxu0 %v1770
    %v1840 = vpop.f32.mrb[0].mxu0
    %v1841 = vadd.f32 %v1764, %v1840
    %v1842 = vpop.f32.mrb[0].mxu0
    %1843 = vdwg.mxu0
    %v1844 = vmul.f32 %v1841, %v1687
    %1846 = vrot.lane.b32.xlu0 %v1844, 24
    %v1847 = vpop.permute.xlu0 %1846
    %vm1849 = vcmask 261312
    %1850 = vst.msk [vmem:[#allocation2] sm:$0xff] %vm1849, %v1847
    %v1851 = vld [vmem:[#allocation2] sm:$0xff]
    %v1852 = vpack.c.bf16 %v1851, %v1851
    %v1853 = vld [vmem:[%s5 + $0x10] sm:$0xf]
    %v1854 = vld [vmem:[%s5 + $0x14] sm:$0xf]
    %v1855 = vld [vmem:[%s5 + $0x18] sm:$0xf]
    %v1856 = vld [vmem:[%s5 + $0x1c] sm:$0xf]
    %v1857 = vlaneseq
    %v1858 = vshrl.u32 %v1857, 7
    %v1859 = vsub.s32 0, %v1858
    %v1860 = vrot.slane %v121, %v1859
    %v1865 = vunpack.c.l.b16 %v1853
    %v1866 = vunpack.c.l.b16 %v1854
    %v1867 = vunpack.c.l.b16 %v1855
    %v1868 = vunpack.c.l.b16 %v1856
    %v1869 = vpack.c.b16 %v1866, %v1865
    %v1870 = vpack.c.b16 %v1868, %v1867
    %v1874 = vsel %vm62, %v1852, 0
    %1876 = vmatprep.subr.bf16.mxu0 0
    %1877 = vmatpush1.bf16.msra.mxu0 %v1869
    %1878 = vmatprep.subr.bf16.mxu0 0
    %1879 = vmatpush1.bf16.msra.mxu0 %v1870
    %1880 = vmatprep.subr.bf16.mxu0 0
    %1881 = vmatpush1.bf16.msra.mxu0 0
    %1882 = vmatprep.subr.bf16.mxu0 0
    %1883 = vmatpush1.bf16.msra.mxu0 0
    %1884 = vmatprep.subr.bf16.mxu0 0
    %1885 = vmatpush1.bf16.msra.mxu0 0
    %1886 = vmatprep.subr.bf16.mxu0 0
    %1887 = vmatpush1.bf16.msra.mxu0 0
    %1888 = vmatprep.subr.bf16.mxu0 0
    %1889 = vmatpush1.bf16.msra.mxu0 0
    %1890 = vmatprep.subr.bf16.mxu0 0
    %1891 = vmatpush1.bf16.msra.mxu0 0
    %1892 = vmatprep.subr.bf16.mxu0 0
    %1893 = vmatpush1.bf16.msra.mxu0 0
    %1894 = vmatprep.subr.bf16.mxu0 0
    %1895 = vmatpush1.bf16.msra.mxu0 0
    %1896 = vmatprep.subr.bf16.mxu0 0
    %1897 = vmatpush1.bf16.msra.mxu0 0
    %1898 = vmatprep.subr.bf16.mxu0 0
    %1899 = vmatpush1.bf16.msra.mxu0 0
    %1900 = vmatprep.subr.bf16.mxu0 0
    %1901 = vmatpush1.bf16.msra.mxu0 0
    %1902 = vmatprep.subr.bf16.mxu0 0
    %1903 = vmatpush1.bf16.msra.mxu0 0
    %1904 = vmatprep.subr.bf16.mxu0 0
    %1905 = vmatpush1.bf16.msra.mxu0 0
    %1906 = vmatprep.subr.bf16.mxu0 0
    %1907 = vmatpush1.bf16.msra.mxu0 0
    %1908 = vmatprep.mubr.bf16.mxu0 0
    %1909 = vmatmul.mubr.bf16.gmra.mrb[0].mxu0 %v1874
    %v1910 = vpop.f32.mrb[0].mxu0
    %v1911 = vadd.f32 %v1860, %v1910
    %v1912 = vpop.f32.mrb[0].mxu0
    %v1913 = vpop.f32.mrb[0].mxu0
    %v1914 = vpop.f32.mrb[0].mxu0
    %1915 = vdwg.mxu0
    %v1916 = vadd.f32 %v406, %v1911
    %s1917 = scalar_lea.vmem %s6, 24
    %v1918 = vld [vmem:[%s1917] sm:$0x1]
    %v1919 = vld [vmem:[%s1917 + $0x1] sm:$0x1]
    %v1920 = vld [vmem:[%s1917 + $0x2] sm:$0x1]
    %v1921 = vld [vmem:[%s1917 + $0x3] sm:$0x1]
    %v1922 = vld [vmem:[%s1917 + $0x4] sm:$0x1]
    %v1923 = vld [vmem:[%s1917 + $0x5] sm:$0x1]
    %v1924 = vld [vmem:[%s1917 + $0x6] sm:$0x1]
    %v1925 = vld [vmem:[%s1917 + $0x7] sm:$0x1]
    %v1926 = vld [vmem:[%s1917 + $0x8] sm:$0x1f]
    %v1927 = vld [vmem:[%s1917 + $0xd] sm:$0x1]
    %v1928 = vld [vmem:[%s1917 + $0xe] sm:$0x1]
    %v1929 = vld [vmem:[%s1917 + $0xf] sm:$0x1]
    %v1930 = vld [vmem:[%s1917 + $0x10] sm:$0x1]
    %v1931 = vsel %vm62, %v1916, 0.0
    %1932 = vadd.xlane.f32.xlu0 %v1931
    %v1933 = vpop.xlane.xlu0 %1932
    %v1934 = vmul.f32 %v1933, %v125
    %v1935 = vsub.f32 %v1916, %v1934
    %v1936 = vmul.f32 %v1935, %v1935
    %v1937 = vsel %vm62, %v1936, 0.0
    %1938 = vadd.xlane.f32.xlu0 %v1937
    %v1939 = vpop.xlane.xlu0 %1938
    %v1940 = vmul.f32 %v1939, %v125
    %v1941 = vadd.f32 %v1940, 1e-05
    %v1942 = vrsqrt.pop %v1941
    %v1943 = vmul.f32 %v1935, %v1942
    %v1944 = vlaneseq
    %v1945 = vshrl.u32 %v1944, 7
    %v1946 = vsub.s32 0, %v1945
    %v1947 = vrot.slane %v1918, %v1946
    %v1948 = vmul.f32 %v1943, %v1947
    %v1949 = vlaneseq
    %v1950 = vshrl.u32 %v1949, 7
    %v1951 = vsub.s32 0, %v1950
    %v1952 = vrot.slane %v1919, %v1951
    %v1953 = vadd.f32 %v1948, %v1952
    %v1954 = vpack.c.bf16 %v1953, %v1953
    %s1955 = scalar_lea.vmem %s5, 80
    %v1956 = vld [vmem:[%s1955 + $0x20] sm:$0xf]
    %v1957 = vld [vmem:[%s1955 + $0x24] sm:$0xf]
    %v1958 = vld [vmem:[%s1955 + $0x28] sm:$0xf]
    %v1959 = vld [vmem:[%s1955 + $0x2c] sm:$0xf]
    %v1960 = vlaneseq
    %v1961 = vshrl.u32 %v1960, 7
    %v1962 = vsub.s32 0, %v1961
    %v1963 = vrot.slane %v1920, %v1962
    %v1968 = vunpack.c.l.b16 %v1956
    %v1969 = vunpack.c.l.b16 %v1957
    %v1970 = vunpack.c.l.b16 %v1958
    %v1971 = vunpack.c.l.b16 %v1959
    %v1972 = vpack.c.b16 %v1969, %v1968
    %v1973 = vpack.c.b16 %v1971, %v1970
    %v1977 = vsel %vm62, %v1954, 0
    %1979 = vmatprep.subr.bf16.mxu0 0
    %1980 = vmatpush1.bf16.msra.mxu0 %v1972
    %1981 = vmatprep.subr.bf16.mxu0 0
    %1982 = vmatpush1.bf16.msra.mxu0 %v1973
    %1983 = vmatprep.subr.bf16.mxu0 0
    %1984 = vmatpush1.bf16.msra.mxu0 0
    %1985 = vmatprep.subr.bf16.mxu0 0
    %1986 = vmatpush1.bf16.msra.mxu0 0
    %1987 = vmatprep.subr.bf16.mxu0 0
    %1988 = vmatpush1.bf16.msra.mxu0 0
    %1989 = vmatprep.subr.bf16.mxu0 0
    %1990 = vmatpush1.bf16.msra.mxu0 0
    %1991 = vmatprep.subr.bf16.mxu0 0
    %1992 = vmatpush1.bf16.msra.mxu0 0
    %1993 = vmatprep.subr.bf16.mxu0 0
    %1994 = vmatpush1.bf16.msra.mxu0 0
    %1995 = vmatprep.subr.bf16.mxu0 0
    %1996 = vmatpush1.bf16.msra.mxu0 0
    %1997 = vmatprep.subr.bf16.mxu0 0
    %1998 = vmatpush1.bf16.msra.mxu0 0
    %1999 = vmatprep.subr.bf16.mxu0 0
    %2000 = vmatpush1.bf16.msra.mxu0 0
    %2001 = vmatprep.subr.bf16.mxu0 0
    %2002 = vmatpush1.bf16.msra.mxu0 0
    %2003 = vmatprep.subr.bf16.mxu0 0
    %2004 = vmatpush1.bf16.msra.mxu0 0
    %2005 = vmatprep.subr.bf16.mxu0 0
    %2006 = vmatpush1.bf16.msra.mxu0 0
    %2007 = vmatprep.subr.bf16.mxu0 0
    %2008 = vmatpush1.bf16.msra.mxu0 0
    %2009 = vmatprep.subr.bf16.mxu0 0
    %2010 = vmatpush1.bf16.msra.mxu0 0
    %2011 = vmatprep.mubr.bf16.mxu0 0
    %2012 = vmatmul.mubr.bf16.gmra.mrb[0].mxu0 %v1977
    %v2013 = vpop.f32.mrb[0].mxu0
    %v2014 = vadd.f32 %v1963, %v2013
    %v2015 = vpop.f32.mrb[0].mxu0
    %v2016 = vpop.f32.mrb[0].mxu0
    %v2017 = vpop.f32.mrb[0].mxu0
    %2018 = vdwg.mxu0
    %v2019 = vmax.f32 %v2014, 0.0
    %v2020 = vsel %vm211, %v2019, 0.0
    %2021 = vadd.xlane.f32.xlu0 %v2020
    %v2022 = vpop.xlane.xlu0 %2021
    %v2023 = vmul.f32 %v2022, %v215
    %v2024 = vsub.f32 %v2019, %v2023
    %v2025 = vmul.f32 %v2024, %v2024
    %v2026 = vsel %vm211, %v2025, 0.0
    %2027 = vadd.xlane.f32.xlu0 %v2026
    %v2028 = vpop.xlane.xlu0 %2027
    %v2029 = vmul.f32 %v2028, %v215
    %v2030 = vadd.f32 %v2029, 1e-05
    %v2031 = vrsqrt.pop %v2030
    %v2032 = vmul.f32 %v2024, %v2031
    %v2033 = vlaneseq
    %v2034 = vshrl.u32 %v2033, 7
    %v2035 = vsub.s32 0, %v2034
    %v2036 = vrot.slane %v1921, %v2035
    %v2037 = vmul.f32 %v2032, %v2036
    %v2038 = vlaneseq
    %v2039 = vshrl.u32 %v2038, 7
    %v2040 = vsub.s32 0, %v2039
    %v2041 = vrot.slane %v1922, %v2040
    %v2042 = vadd.f32 %v2037, %v2041
    %v2043 = vpack.c.bf16 %v2042, %v2042
    %v2044 = vld [vmem:[%s1955 + $0x30] sm:$0xf]
    %v2045 = vld [vmem:[%s1955 + $0x34] sm:$0xf]
    %v2046 = vld [vmem:[%s1955 + $0x38] sm:$0xf]
    %v2047 = vld [vmem:[%s1955 + $0x3c] sm:$0xf]
    %v2048 = vld [vmem:[%s1955 + $0x40] sm:$0xf]
    %v2049 = vld [vmem:[%s1955 + $0x44] sm:$0xf]
    %v2050 = vld [vmem:[%s1955 + $0x48] sm:$0xf]
    %v2051 = vld [vmem:[%s1955 + $0x4c] sm:$0xf]
    %v2052 = vlaneseq
    %v2053 = vshrl.u32 %v2052, 7
    %v2054 = vsub.s32 0, %v2053
    %v2055 = vrot.slane %v1923, %v2054
    %v2064 = vunpack.c.l.b16 %v2044
    %v2065 = vunpack.c.l.b16 %v2045
    %v2066 = vunpack.c.l.b16 %v2046
    %v2067 = vunpack.c.l.b16 %v2047
    %v2068 = vunpack.c.l.b16 %v2048
    %v2069 = vunpack.c.l.b16 %v2049
    %v2070 = vunpack.c.l.b16 %v2050
    %v2071 = vunpack.c.l.b16 %v2051
    %v2072 = vpack.c.b16 %v2065, %v2064
    %v2073 = vpack.c.b16 %v2067, %v2066
    %v2074 = vpack.c.b16 %v2069, %v2068
    %v2075 = vpack.c.b16 %v2071, %v2070
    %v2081 = vsel %vm211, %v2043, 0
    %2083 = vmatprep.subr.bf16.mxu0 0
    %2084 = vmatpush1.bf16.msra.mxu0 %v2072
    %2085 = vmatprep.subr.bf16.mxu0 0
    %2086 = vmatpush1.bf16.msra.mxu0 %v2073
    %2087 = vmatprep.subr.bf16.mxu0 0
    %2088 = vmatpush1.bf16.msra.mxu0 %v2074
    %2089 = vmatprep.subr.bf16.mxu0 0
    %2090 = vmatpush1.bf16.msra.mxu0 %v2075
    %2091 = vmatprep.subr.bf16.mxu0 0
    %2092 = vmatpush1.bf16.msra.mxu0 0
    %2093 = vmatprep.subr.bf16.mxu0 0
    %2094 = vmatpush1.bf16.msra.mxu0 0
    %2095 = vmatprep.subr.bf16.mxu0 0
    %2096 = vmatpush1.bf16.msra.mxu0 0
    %2097 = vmatprep.subr.bf16.mxu0 0
    %2098 = vmatpush1.bf16.msra.mxu0 0
    %2099 = vmatprep.subr.bf16.mxu0 0
    %2100 = vmatpush1.bf16.msra.mxu0 0
    %2101 = vmatprep.subr.bf16.mxu0 0
    %2102 = vmatpush1.bf16.msra.mxu0 0
    %2103 = vmatprep.subr.bf16.mxu0 0
    %2104 = vmatpush1.bf16.msra.mxu0 0
    %2105 = vmatprep.subr.bf16.mxu0 0
    %2106 = vmatpush1.bf16.msra.mxu0 0
    %2107 = vmatprep.subr.bf16.mxu0 0
    %2108 = vmatpush1.bf16.msra.mxu0 0
    %2109 = vmatprep.subr.bf16.mxu0 0
    %2110 = vmatpush1.bf16.msra.mxu0 0
    %2111 = vmatprep.subr.bf16.mxu0 0
    %2112 = vmatpush1.bf16.msra.mxu0 0
    %2113 = vmatprep.subr.bf16.mxu0 0
    %2114 = vmatpush1.bf16.msra.mxu0 0
    %2115 = vmatprep.mubr.bf16.mxu0 0
    %2116 = vmatmul.mubr.bf16.gmra.mrb[0].mxu0 %v2081
    %v2117 = vpop.f32.mrb[0].mxu0
    %v2118 = vadd.f32 %v2055, %v2117
    %v2119 = vpop.f32.mrb[0].mxu0
    %v2120 = vpop.f32.mrb[0].mxu0
    %v2121 = vpop.f32.mrb[0].mxu0
    %2122 = vdwg.mxu0
    %v2123 = vsel %vm62, %v2118, 0.0
    %2124 = vadd.xlane.f32.xlu0 %v2123
    %v2125 = vpop.xlane.xlu0 %2124
    %v2126 = vmul.f32 %v2125, %v125
    %v2127 = vsub.f32 %v2118, %v2126
    %v2128 = vmul.f32 %v2127, %v2127
    %v2129 = vsel %vm62, %v2128, 0.0
    %2130 = vadd.xlane.f32.xlu0 %v2129
    %v2131 = vpop.xlane.xlu0 %2130
    %v2132 = vmul.f32 %v2131, %v125
    %v2133 = vadd.f32 %v2132, 1e-05
    %v2134 = vrsqrt.pop %v2133
    %v2135 = vmul.f32 %v2127, %v2134
    %v2136 = vlaneseq
    %v2137 = vshrl.u32 %v2136, 7
    %v2138 = vsub.s32 0, %v2137
    %v2139 = vrot.slane %v1924, %v2138
    %v2140 = vmul.f32 %v2135, %v2139
    %v2141 = vlaneseq
    %v2142 = vshrl.u32 %v2141, 7
    %v2143 = vsub.s32 0, %v2142
    %v2144 = vrot.slane %v1925, %v2143
    %v2145 = vadd.f32 %v2140, %v2144
    %s2146 = scalar_lea.vmem %s2, 8
    %v2147 = vld [vmem:[%s2146 + $0x2] sm:$0xf]
    %v2149 = vrot.slane %v2145, 4
    %v2151 = vsel %vm343, %v2147, %v2149
    %v2152 = vlaneseq
    %v2153 = vshrl.u32 %v2152, 7
    %v2154 = vsub.s32 0, %v2153
    %v2155 = vrot.slane %v1926, %v2154
    %v2156 = vmul.f32 %v2151, %v2155
    %v2157 = vlaneseq
    %v2158 = vshrl.u32 %v2157, 7
    %v2159 = vsub.s32 1, %v2158
    %v2160 = vrot.slane %v1926, %v2159
    %v2161 = vmul.f32 %v2151, %v2160
    %v2162 = vmul.f32 %v2149, %v2160
    %v2165 = vrot.slane %v2161, 1
    %v2166 = vrot.slane %v2162, 1
    %v2167 = vsel %vm358, %v2165, %v2166
    %v2169 = vadd.f32 %v2156, %v2167
    %v2170 = vlaneseq
    %v2171 = vshrl.u32 %v2170, 7
    %v2172 = vsub.s32 2, %v2171
    %v2173 = vrot.slane %v1926, %v2172
    %v2174 = vmul.f32 %v2151, %v2173
    %v2175 = vmul.f32 %v2149, %v2173
    %v2178 = vrot.slane %v2174, 2
    %v2179 = vrot.slane %v2175, 2
    %v2180 = vsel %vm372, %v2178, %v2179
    %v2182 = vadd.f32 %v2169, %v2180
    %v2183 = vlaneseq
    %v2184 = vshrl.u32 %v2183, 7
    %v2185 = vsub.s32 3, %v2184
    %v2186 = vrot.slane %v1926, %v2185
    %v2187 = vmul.f32 %v2151, %v2186
    %v2188 = vmul.f32 %v2149, %v2186
    %v2191 = vrot.slane %v2187, 3
    %v2192 = vrot.slane %v2188, 3
    %v2193 = vsel %vm386, %v2191, %v2192
    %v2195 = vadd.f32 %v2182, %v2193
    %v2196 = vlaneseq
    %v2197 = vshrl.u32 %v2196, 7
    %v2198 = vsub.s32 4, %v2197
    %v2199 = vrot.slane %v1926, %v2198
    %v2200 = vmul.f32 %v2151, %v2199
    %v2201 = vmul.f32 %v2149, %v2199
    %v2204 = vrot.slane %v2200, 4
    %v2205 = vrot.slane %v2201, 4
    %v2206 = vsel %vm343, %v2204, %v2205
    %v2208 = vadd.f32 %v2195, %v2206
    %v2209 = vadd.f32 %v2208, %v2145
    %v2210 = vadd.f32 %v2209, %v1916
    %s2211 = scalar_lea.vmem %s9, 16
    %2212 = vst.msk [vmem:[%s2211] sm:$0xff] %vm62, %v2151
    %2213 = vst.msk [vmem:[%s2211 + $0x8] sm:$0xf] %vm408, %v2149
    %v2214 = vsel %vm62, %v2210, 0.0
    %2215 = vadd.xlane.f32.xlu0 %v2214
    %v2216 = vpop.xlane.xlu0 %2215
    %v2217 = vmul.f32 %v2216, %v125
    %v2218 = vsub.f32 %v2210, %v2217
    %v2219 = vmul.f32 %v2218, %v2218
    %v2220 = vsel %vm62, %v2219, 0.0
    %2221 = vadd.xlane.f32.xlu0 %v2220
    %v2222 = vpop.xlane.xlu0 %2221
    %v2223 = vmul.f32 %v2222, %v125
    %v2224 = vadd.f32 %v2223, 1e-05
    %v2225 = vrsqrt.pop %v2224
    %v2226 = vmul.f32 %v2218, %v2225
    %v2227 = vlaneseq
    %v2228 = vshrl.u32 %v2227, 7
    %v2229 = vsub.s32 0, %v2228
    %v2230 = vrot.slane %v1927, %v2229
    %v2231 = vmul.f32 %v2226, %v2230
    %v2232 = vlaneseq
    %v2233 = vshrl.u32 %v2232, 7
    %v2234 = vsub.s32 0, %v2233
    %v2235 = vrot.slane %v1928, %v2234
    %v2236 = vadd.f32 %v2231, %v2235
    %v2237 = vpack.c.bf16 %v2236, %v2236
    %v2238 = vld [vmem:[%s1955] sm:$0xf]
    %v2239 = vld [vmem:[%s1955 + $0x4] sm:$0xf]
    %v2240 = vld [vmem:[%s1955 + $0x8] sm:$0xf]
    %v2241 = vld [vmem:[%s1955 + $0xc] sm:$0xf]
    %v2242 = vlaneseq
    %v2243 = vshrl.u32 %v2242, 7
    %v2244 = vsub.s32 0, %v2243
    %v2245 = vrot.slane %v1929, %v2244
    %v2250 = vunpack.c.l.b16 %v2238
    %v2251 = vunpack.c.l.b16 %v2239
    %v2252 = vunpack.c.l.b16 %v2240
    %v2253 = vunpack.c.l.b16 %v2241
    %v2254 = vpack.c.b16 %v2251, %v2250
    %v2255 = vpack.c.b16 %v2253, %v2252
    %v2259 = vsel %vm62, %v2237, 0
    %2261 = vmatprep.subr.bf16.mxu0 0
    %2262 = vmatpush1.bf16.msra.mxu0 %v2254
    %2263 = vmatprep.subr.bf16.mxu0 0
    %2264 = vmatpush1.bf16.msra.mxu0 %v2255
    %2265 = vmatprep.subr.bf16.mxu0 0
    %2266 = vmatpush1.bf16.msra.mxu0 0
    %2267 = vmatprep.subr.bf16.mxu0 0
    %2268 = vmatpush1.bf16.msra.mxu0 0
    %2269 = vmatprep.subr.bf16.mxu0 0
    %2270 = vmatpush1.bf16.msra.mxu0 0
    %2271 = vmatprep.subr.bf16.mxu0 0
    %2272 = vmatpush1.bf16.msra.mxu0 0
    %2273 = vmatprep.subr.bf16.mxu0 0
    %2274 = vmatpush1.bf16.msra.mxu0 0
    %2275 = vmatprep.subr.bf16.mxu0 0
    %2276 = vmatpush1.bf16.msra.mxu0 0
    %2277 = vmatprep.subr.bf16.mxu0 0
    %2278 = vmatpush1.bf16.msra.mxu0 0
    %2279 = vmatprep.subr.bf16.mxu0 0
    %2280 = vmatpush1.bf16.msra.mxu0 0
    %2281 = vmatprep.subr.bf16.mxu0 0
    %2282 = vmatpush1.bf16.msra.mxu0 0
    %2283 = vmatprep.subr.bf16.mxu0 0
    %2284 = vmatpush1.bf16.msra.mxu0 0
    %2285 = vmatprep.subr.bf16.mxu0 0
    %2286 = vmatpush1.bf16.msra.mxu0 0
    %2287 = vmatprep.subr.bf16.mxu0 0
    %2288 = vmatpush1.bf16.msra.mxu0 0
    %2289 = vmatprep.subr.bf16.mxu0 0
    %2290 = vmatpush1.bf16.msra.mxu0 0
    %2291 = vmatprep.subr.bf16.mxu0 0
    %2292 = vmatpush1.bf16.msra.mxu0 0
    %2293 = vmatprep.mubr.bf16.mxu0 0
    %2294 = vmatmul.mubr.bf16.gmra.mrb[0].mxu0 %v2259
    %v2295 = vpop.f32.mrb[0].mxu0
    %v2296 = vadd.f32 %v2245, %v2295
    %v2297 = vpop.f32.mrb[0].mxu0
    %v2298 = vpop.f32.mrb[0].mxu0
    %v2299 = vpop.f32.mrb[0].mxu0
    %2300 = vdwg.mxu0
    %2301 = vrot.lane.b32.xlu0 %v108, 64
    %v2302 = vpop.permute.xlu0 %2301
    %v2304 = vsel %vm497, %v2296, 0
    %v2306 = vsel %vm497, %v2302, 0
    %2308 = vmatprep.subr.mxu0 0.0
    %2309 = vmatpush1.xpose.msra.mxu0 %v2306
    %2310 = vmatprep.subr.mxu0 0.0
    %2311 = vmatpush1.xpose.msra.mxu0 0.0
    %2312 = vmatprep.subr.mxu0 0.0
    %2313 = vmatpush1.xpose.msra.mxu0 0.0
    %2314 = vmatprep.subr.mxu0 0.0
    %2315 = vmatpush1.xpose.msra.mxu0 0.0
    %2316 = vmatprep.subr.mxu0 0.0
    %2317 = vmatpush1.xpose.msra.mxu0 0.0
    %2318 = vmatprep.subr.mxu0 0.0
    %2319 = vmatpush1.xpose.msra.mxu0 0.0
    %2320 = vmatprep.subr.mxu0 0.0
    %2321 = vmatpush1.xpose.msra.mxu0 0.0
    %2322 = vmatprep.subr.mxu0 0.0
    %2323 = vmatpush1.xpose.msra.mxu0 0.0
    %2324 = vmatprep.subr.mxu0 0.0
    %2325 = vmatpush1.xpose.msra.mxu0 0.0
    %2326 = vmatprep.subr.mxu0 0.0
    %2327 = vmatpush1.xpose.msra.mxu0 0.0
    %2328 = vmatprep.subr.mxu0 0.0
    %2329 = vmatpush1.xpose.msra.mxu0 0.0
    %2330 = vmatprep.subr.mxu0 0.0
    %2331 = vmatpush1.xpose.msra.mxu0 0.0
    %2332 = vmatprep.subr.mxu0 0.0
    %2333 = vmatpush1.xpose.msra.mxu0 0.0
    %2334 = vmatprep.subr.mxu0 0.0
    %2335 = vmatpush1.xpose.msra.mxu0 0.0
    %2336 = vmatprep.subr.mxu0 0.0
    %2337 = vmatpush1.xpose.msra.mxu0 0.0
    %2338 = vmatprep.subr.mxu0 0.0
    %2339 = vmatpush1.xpose.msra.mxu0 0.0
    %2340 = vmatprep.subr.mxu0 0.0
    %2341 = vmatpush1.xpose.msra.mxu0 0.0
    %2342 = vmatprep.subr.mxu0 0.0
    %2343 = vmatpush1.xpose.msra.mxu0 0.0
    %2344 = vmatprep.subr.mxu0 0.0
    %2345 = vmatpush1.xpose.msra.mxu0 0.0
    %2346 = vmatprep.subr.mxu0 0.0
    %2347 = vmatpush1.xpose.msra.mxu0 0.0
    %2348 = vmatprep.subr.mxu0 0.0
    %2349 = vmatpush1.xpose.msra.mxu0 0.0
    %2350 = vmatprep.subr.mxu0 0.0
    %2351 = vmatpush1.xpose.msra.mxu0 0.0
    %2352 = vmatprep.subr.mxu0 0.0
    %2353 = vmatpush1.xpose.msra.mxu0 0.0
    %2354 = vmatprep.subr.mxu0 0.0
    %2355 = vmatpush1.xpose.msra.mxu0 0.0
    %2356 = vmatprep.subr.mxu0 0.0
    %2357 = vmatpush1.xpose.msra.mxu0 0.0
    %2358 = vmatprep.subr.mxu0 0.0
    %2359 = vmatpush1.xpose.msra.mxu0 0.0
    %2360 = vmatprep.subr.mxu0 0.0
    %2361 = vmatpush1.xpose.msra.mxu0 0.0
    %2362 = vmatprep.subr.mxu0 0.0
    %2363 = vmatpush1.xpose.msra.mxu0 0.0
    %2364 = vmatprep.subr.mxu0 0.0
    %2365 = vmatpush1.xpose.msra.mxu0 0.0
    %2366 = vmatprep.subr.mxu0 0.0
    %2367 = vmatpush1.xpose.msra.mxu0 0.0
    %2368 = vmatprep.subr.mxu0 0.0
    %2369 = vmatpush1.xpose.msra.mxu0 0.0
    %2370 = vmatprep.subr.mxu0 0.0
    %2371 = vmatpush1.xpose.msra.mxu0 0.0
    %2372 = vmatprep.mubr.f32.mxu0 0.0
    %2373 = vmatmul.mubr.f32.gmra.mrb[0].mxu0 %v2304
    %v2374 = vpop.f32.mrb[0].mxu0
    %v2375 = vadd.f32 0.0, %v2374
    %v2376 = vpop.f32.mrb[0].mxu0
    %2377 = vdwg.mxu0
    %2378 = vrot.lane.b32.xlu0 %v101, 64
    %v2379 = vpop.permute.xlu0 %2378
    %2380 = vrot.lane.b32.xlu0 %v104, 64
    %v2381 = vpop.permute.xlu0 %2380
    %v2382 = vsel %vm497, %v2379, 0
    %v2384 = vsel %vm497, %v2381, 0
    %2386 = vmatprep.subr.mxu0 0.0
    %2387 = vmatpush1.xpose.msra.mxu0 %v2382
    %2388 = vmatprep.subr.mxu0 0.0
    %2389 = vmatpush1.xpose.msra.mxu0 %v2384
    %2390 = vmatprep.subr.mxu0 0.0
    %2391 = vmatpush1.xpose.msra.mxu0 0.0
    %2392 = vmatprep.subr.mxu0 0.0
    %2393 = vmatpush1.xpose.msra.mxu0 0.0
    %2394 = vmatprep.subr.mxu0 0.0
    %2395 = vmatpush1.xpose.msra.mxu0 0.0
    %2396 = vmatprep.subr.mxu0 0.0
    %2397 = vmatpush1.xpose.msra.mxu0 0.0
    %2398 = vmatprep.subr.mxu0 0.0
    %2399 = vmatpush1.xpose.msra.mxu0 0.0
    %2400 = vmatprep.subr.mxu0 0.0
    %2401 = vmatpush1.xpose.msra.mxu0 0.0
    %2402 = vmatprep.subr.mxu0 0.0
    %2403 = vmatpush1.xpose.msra.mxu0 0.0
    %2404 = vmatprep.subr.mxu0 0.0
    %2405 = vmatpush1.xpose.msra.mxu0 0.0
    %2406 = vmatprep.subr.mxu0 0.0
    %2407 = vmatpush1.xpose.msra.mxu0 0.0
    %2408 = vmatprep.subr.mxu0 0.0
    %2409 = vmatpush1.xpose.msra.mxu0 0.0
    %2410 = vmatprep.subr.mxu0 0.0
    %2411 = vmatpush1.xpose.msra.mxu0 0.0
    %2412 = vmatprep.subr.mxu0 0.0
    %2413 = vmatpush1.xpose.msra.mxu0 0.0
    %2414 = vmatprep.subr.mxu0 0.0
    %2415 = vmatpush1.xpose.msra.mxu0 0.0
    %2416 = vmatprep.subr.mxu0 0.0
    %2417 = vmatpush1.xpose.msra.mxu0 0.0
    %2418 = vmatprep.subr.mxu0 0.0
    %2419 = vmatpush1.xpose.msra.mxu0 0.0
    %2420 = vmatprep.subr.mxu0 0.0
    %2421 = vmatpush1.xpose.msra.mxu0 0.0
    %2422 = vmatprep.subr.mxu0 0.0
    %2423 = vmatpush1.xpose.msra.mxu0 0.0
    %2424 = vmatprep.subr.mxu0 0.0
    %2425 = vmatpush1.xpose.msra.mxu0 0.0
    %2426 = vmatprep.subr.mxu0 0.0
    %2427 = vmatpush1.xpose.msra.mxu0 0.0
    %2428 = vmatprep.subr.mxu0 0.0
    %2429 = vmatpush1.xpose.msra.mxu0 0.0
    %2430 = vmatprep.subr.mxu0 0.0
    %2431 = vmatpush1.xpose.msra.mxu0 0.0
    %2432 = vmatprep.subr.mxu0 0.0
    %2433 = vmatpush1.xpose.msra.mxu0 0.0
    %2434 = vmatprep.subr.mxu0 0.0
    %2435 = vmatpush1.xpose.msra.mxu0 0.0
    %2436 = vmatprep.subr.mxu0 0.0
    %2437 = vmatpush1.xpose.msra.mxu0 0.0
    %2438 = vmatprep.subr.mxu0 0.0
    %2439 = vmatpush1.xpose.msra.mxu0 0.0
    %2440 = vmatprep.subr.mxu0 0.0
    %2441 = vmatpush1.xpose.msra.mxu0 0.0
    %2442 = vmatprep.subr.mxu0 0.0
    %2443 = vmatpush1.xpose.msra.mxu0 0.0
    %2444 = vmatprep.subr.mxu0 0.0
    %2445 = vmatpush1.xpose.msra.mxu0 0.0
    %2446 = vmatprep.subr.mxu0 0.0
    %2447 = vmatpush1.xpose.msra.mxu0 0.0
    %2448 = vmatprep.subr.mxu0 0.0
    %2449 = vmatpush1.xpose.msra.mxu0 0.0
    %2450 = vmatprep.mubr.f32.mxu0 0.0
    %2451 = vmatmul.mubr.f32.gmra.mrb[0].mxu0 %v2304
    %v2452 = vpop.f32.mrb[0].mxu0
    %v2453 = vadd.f32 0.0, %v2452
    %v2454 = vpop.f32.mrb[0].mxu0
    %2455 = vdwg.mxu0
    %v2456 = vsel %vm650, %v2375, -inf
    %2457 = vmax.xlane.f32.xlu0 %v2456
    %v2458 = vpop.xlane.xlu0 %2457
    %v2459 = vsel %vm654, %v2453, -inf
    %2460 = vmax.xlane.f32.xlu0 %v2459
    %v2461 = vpop.xlane.xlu0 %2460
    %v2462 = vmax.f32 %v2458, %v2461
    %v2463 = vsub.f32 %v2375, %v2462
    %v2464 = vmul.f32 %v2463, 1.442695
    %v2465 = vpow.pop %v2464
    %v2466 = vsub.f32 %v2453, %v2462
    %v2467 = vmul.f32 %v2466, 1.442695
    %v2468 = vpow.pop %v2467
    %v2469 = vsel %vm650, %v2465, 0.0
    %2470 = vadd.xlane.f32.xlu0 %v2469
    %v2471 = vpop.xlane.xlu0 %2470
    %v2472 = vsel %vm654, %v2468, 0.0
    %2473 = vadd.xlane.f32.xlu0 %v2472
    %v2474 = vpop.xlane.xlu0 %2473
    %v2475 = vadd.f32 %v2471, %v2474
    %v2476 = vrcp.pop %v2475
    %2477 = vrot.lane.b32.xlu0 %v101, 32
    %v2478 = vpop.permute.xlu0 %2477
    %2479 = vrot.lane.b32.xlu0 %v104, 32
    %v2480 = vpop.permute.xlu0 %2479
    %v2484 = vsel %vm654, %v2468, 0
    %2486 = vmatprep.subr.mxu0 0.0
    %2487 = vmatpush1.msra.mxu0 %v2478
    %2488 = vmatprep.subr.mxu0 0.0
    %2489 = vmatpush1.msra.mxu0 %v2480
    %2490 = vmatprep.subr.mxu0 0.0
    %2491 = vmatpush1.msra.mxu0 0.0
    %2492 = vmatprep.subr.mxu0 0.0
    %2493 = vmatpush1.msra.mxu0 0.0
    %2494 = vmatprep.subr.mxu0 0.0
    %2495 = vmatpush1.msra.mxu0 0.0
    %2496 = vmatprep.subr.mxu0 0.0
    %2497 = vmatpush1.msra.mxu0 0.0
    %2498 = vmatprep.subr.mxu0 0.0
    %2499 = vmatpush1.msra.mxu0 0.0
    %2500 = vmatprep.subr.mxu0 0.0
    %2501 = vmatpush1.msra.mxu0 0.0
    %2502 = vmatprep.subr.mxu0 0.0
    %2503 = vmatpush1.msra.mxu0 0.0
    %2504 = vmatprep.subr.mxu0 0.0
    %2505 = vmatpush1.msra.mxu0 0.0
    %2506 = vmatprep.subr.mxu0 0.0
    %2507 = vmatpush1.msra.mxu0 0.0
    %2508 = vmatprep.subr.mxu0 0.0
    %2509 = vmatpush1.msra.mxu0 0.0
    %2510 = vmatprep.subr.mxu0 0.0
    %2511 = vmatpush1.msra.mxu0 0.0
    %2512 = vmatprep.subr.mxu0 0.0
    %2513 = vmatpush1.msra.mxu0 0.0
    %2514 = vmatprep.subr.mxu0 0.0
    %2515 = vmatpush1.msra.mxu0 0.0
    %2516 = vmatprep.subr.mxu0 0.0
    %2517 = vmatpush1.msra.mxu0 0.0
    %2518 = vmatprep.subr.mxu0 0.0
    %2519 = vmatpush1.msra.mxu0 0.0
    %2520 = vmatprep.subr.mxu0 0.0
    %2521 = vmatpush1.msra.mxu0 0.0
    %2522 = vmatprep.subr.mxu0 0.0
    %2523 = vmatpush1.msra.mxu0 0.0
    %2524 = vmatprep.subr.mxu0 0.0
    %2525 = vmatpush1.msra.mxu0 0.0
    %2526 = vmatprep.subr.mxu0 0.0
    %2527 = vmatpush1.msra.mxu0 0.0
    %2528 = vmatprep.subr.mxu0 0.0
    %2529 = vmatpush1.msra.mxu0 0.0
    %2530 = vmatprep.subr.mxu0 0.0
    %2531 = vmatpush1.msra.mxu0 0.0
    %2532 = vmatprep.subr.mxu0 0.0
    %2533 = vmatpush1.msra.mxu0 0.0
    %2534 = vmatprep.subr.mxu0 0.0
    %2535 = vmatpush1.msra.mxu0 0.0
    %2536 = vmatprep.subr.mxu0 0.0
    %2537 = vmatpush1.msra.mxu0 0.0
    %2538 = vmatprep.subr.mxu0 0.0
    %2539 = vmatpush1.msra.mxu0 0.0
    %2540 = vmatprep.subr.mxu0 0.0
    %2541 = vmatpush1.msra.mxu0 0.0
    %2542 = vmatprep.subr.mxu0 0.0
    %2543 = vmatpush1.msra.mxu0 0.0
    %2544 = vmatprep.subr.mxu0 0.0
    %2545 = vmatpush1.msra.mxu0 0.0
    %2546 = vmatprep.subr.mxu0 0.0
    %2547 = vmatpush1.msra.mxu0 0.0
    %2548 = vmatprep.subr.mxu0 0.0
    %2549 = vmatpush1.msra.mxu0 0.0
    %2550 = vmatprep.mubr.f32.mxu0 0.0
    %2551 = vmatmul.mubr.f32.gmra.mrb[0].mxu0 %v2484
    %v2552 = vpop.f32.mrb[0].mxu0
    %v2553 = vadd.f32 0.0, %v2552
    %v2554 = vpop.f32.mrb[0].mxu0
    %2555 = vdwg.mxu0
    %2556 = vrot.lane.b32.xlu0 %v108, 32
    %v2557 = vpop.permute.xlu0 %2556
    %v2559 = vsel %vm650, %v2465, 0
    %v2561 = vsel %vm343, %v2557, 0
    %2563 = vmatprep.subr.mxu0 0.0
    %2564 = vmatpush1.msra.mxu0 %v2561
    %2565 = vmatprep.subr.mxu0 0.0
    %2566 = vmatpush1.msra.mxu0 0.0
    %2567 = vmatprep.subr.mxu0 0.0
    %2568 = vmatpush1.msra.mxu0 0.0
    %2569 = vmatprep.subr.mxu0 0.0
    %2570 = vmatpush1.msra.mxu0 0.0
    %2571 = vmatprep.subr.mxu0 0.0
    %2572 = vmatpush1.msra.mxu0 0.0
    %2573 = vmatprep.subr.mxu0 0.0
    %2574 = vmatpush1.msra.mxu0 0.0
    %2575 = vmatprep.subr.mxu0 0.0
    %2576 = vmatpush1.msra.mxu0 0.0
    %2577 = vmatprep.subr.mxu0 0.0
    %2578 = vmatpush1.msra.mxu0 0.0
    %2579 = vmatprep.subr.mxu0 0.0
    %2580 = vmatpush1.msra.mxu0 0.0
    %2581 = vmatprep.subr.mxu0 0.0
    %2582 = vmatpush1.msra.mxu0 0.0
    %2583 = vmatprep.subr.mxu0 0.0
    %2584 = vmatpush1.msra.mxu0 0.0
    %2585 = vmatprep.subr.mxu0 0.0
    %2586 = vmatpush1.msra.mxu0 0.0
    %2587 = vmatprep.subr.mxu0 0.0
    %2588 = vmatpush1.msra.mxu0 0.0
    %2589 = vmatprep.subr.mxu0 0.0
    %2590 = vmatpush1.msra.mxu0 0.0
    %2591 = vmatprep.subr.mxu0 0.0
    %2592 = vmatpush1.msra.mxu0 0.0
    %2593 = vmatprep.subr.mxu0 0.0
    %2594 = vmatpush1.msra.mxu0 0.0
    %2595 = vmatprep.subr.mxu0 0.0
    %2596 = vmatpush1.msra.mxu0 0.0
    %2597 = vmatprep.subr.mxu0 0.0
    %2598 = vmatpush1.msra.mxu0 0.0
    %2599 = vmatprep.subr.mxu0 0.0
    %2600 = vmatpush1.msra.mxu0 0.0
    %2601 = vmatprep.subr.mxu0 0.0
    %2602 = vmatpush1.msra.mxu0 0.0
    %2603 = vmatprep.subr.mxu0 0.0
    %2604 = vmatpush1.msra.mxu0 0.0
    %2605 = vmatprep.subr.mxu0 0.0
    %2606 = vmatpush1.msra.mxu0 0.0
    %2607 = vmatprep.subr.mxu0 0.0
    %2608 = vmatpush1.msra.mxu0 0.0
    %2609 = vmatprep.subr.mxu0 0.0
    %2610 = vmatpush1.msra.mxu0 0.0
    %2611 = vmatprep.subr.mxu0 0.0
    %2612 = vmatpush1.msra.mxu0 0.0
    %2613 = vmatprep.subr.mxu0 0.0
    %2614 = vmatpush1.msra.mxu0 0.0
    %2615 = vmatprep.subr.mxu0 0.0
    %2616 = vmatpush1.msra.mxu0 0.0
    %2617 = vmatprep.subr.mxu0 0.0
    %2618 = vmatpush1.msra.mxu0 0.0
    %2619 = vmatprep.subr.mxu0 0.0
    %2620 = vmatpush1.msra.mxu0 0.0
    %2621 = vmatprep.subr.mxu0 0.0
    %2622 = vmatpush1.msra.mxu0 0.0
    %2623 = vmatprep.subr.mxu0 0.0
    %2624 = vmatpush1.msra.mxu0 0.0
    %2625 = vmatprep.subr.mxu0 0.0
    %2626 = vmatpush1.msra.mxu0 0.0
    %2627 = vmatprep.mubr.f32.mxu0 0.0
    %2628 = vmatmul.mubr.f32.gmra.mrb[0].mxu0 %v2559
    %v2629 = vpop.f32.mrb[0].mxu0
    %v2630 = vadd.f32 %v2553, %v2629
    %v2631 = vpop.f32.mrb[0].mxu0
    %2632 = vdwg.mxu0
    %v2633 = vmul.f32 %v2630, %v2476
    %2634 = vst.msk [vmem:[#allocation2] sm:$0xff] %vm497, %v2633
    %2635 = vrot.lane.b32.xlu0 %v2296, 120
    %v2636 = vpop.permute.xlu0 %2635
    %2637 = vrot.lane.b32.xlu0 %v108, 56
    %v2638 = vpop.permute.xlu0 %2637
    %v2639 = vsel %vm497, %v2636, 0
    %v2641 = vsel %vm497, %v2638, 0
    %2643 = vmatprep.subr.mxu0 0.0
    %2644 = vmatpush1.xpose.msra.mxu0 %v2641
    %2645 = vmatprep.subr.mxu0 0.0
    %2646 = vmatpush1.xpose.msra.mxu0 0.0
    %2647 = vmatprep.subr.mxu0 0.0
    %2648 = vmatpush1.xpose.msra.mxu0 0.0
    %2649 = vmatprep.subr.mxu0 0.0
    %2650 = vmatpush1.xpose.msra.mxu0 0.0
    %2651 = vmatprep.subr.mxu0 0.0
    %2652 = vmatpush1.xpose.msra.mxu0 0.0
    %2653 = vmatprep.subr.mxu0 0.0
    %2654 = vmatpush1.xpose.msra.mxu0 0.0
    %2655 = vmatprep.subr.mxu0 0.0
    %2656 = vmatpush1.xpose.msra.mxu0 0.0
    %2657 = vmatprep.subr.mxu0 0.0
    %2658 = vmatpush1.xpose.msra.mxu0 0.0
    %2659 = vmatprep.subr.mxu0 0.0
    %2660 = vmatpush1.xpose.msra.mxu0 0.0
    %2661 = vmatprep.subr.mxu0 0.0
    %2662 = vmatpush1.xpose.msra.mxu0 0.0
    %2663 = vmatprep.subr.mxu0 0.0
    %2664 = vmatpush1.xpose.msra.mxu0 0.0
    %2665 = vmatprep.subr.mxu0 0.0
    %2666 = vmatpush1.xpose.msra.mxu0 0.0
    %2667 = vmatprep.subr.mxu0 0.0
    %2668 = vmatpush1.xpose.msra.mxu0 0.0
    %2669 = vmatprep.subr.mxu0 0.0
    %2670 = vmatpush1.xpose.msra.mxu0 0.0
    %2671 = vmatprep.subr.mxu0 0.0
    %2672 = vmatpush1.xpose.msra.mxu0 0.0
    %2673 = vmatprep.subr.mxu0 0.0
    %2674 = vmatpush1.xpose.msra.mxu0 0.0
    %2675 = vmatprep.subr.mxu0 0.0
    %2676 = vmatpush1.xpose.msra.mxu0 0.0
    %2677 = vmatprep.subr.mxu0 0.0
    %2678 = vmatpush1.xpose.msra.mxu0 0.0
    %2679 = vmatprep.subr.mxu0 0.0
    %2680 = vmatpush1.xpose.msra.mxu0 0.0
    %2681 = vmatprep.subr.mxu0 0.0
    %2682 = vmatpush1.xpose.msra.mxu0 0.0
    %2683 = vmatprep.subr.mxu0 0.0
    %2684 = vmatpush1.xpose.msra.mxu0 0.0
    %2685 = vmatprep.subr.mxu0 0.0
    %2686 = vmatpush1.xpose.msra.mxu0 0.0
    %2687 = vmatprep.subr.mxu0 0.0
    %2688 = vmatpush1.xpose.msra.mxu0 0.0
    %2689 = vmatprep.subr.mxu0 0.0
    %2690 = vmatpush1.xpose.msra.mxu0 0.0
    %2691 = vmatprep.subr.mxu0 0.0
    %2692 = vmatpush1.xpose.msra.mxu0 0.0
    %2693 = vmatprep.subr.mxu0 0.0
    %2694 = vmatpush1.xpose.msra.mxu0 0.0
    %2695 = vmatprep.subr.mxu0 0.0
    %2696 = vmatpush1.xpose.msra.mxu0 0.0
    %2697 = vmatprep.subr.mxu0 0.0
    %2698 = vmatpush1.xpose.msra.mxu0 0.0
    %2699 = vmatprep.subr.mxu0 0.0
    %2700 = vmatpush1.xpose.msra.mxu0 0.0
    %2701 = vmatprep.subr.mxu0 0.0
    %2702 = vmatpush1.xpose.msra.mxu0 0.0
    %2703 = vmatprep.subr.mxu0 0.0
    %2704 = vmatpush1.xpose.msra.mxu0 0.0
    %2705 = vmatprep.subr.mxu0 0.0
    %2706 = vmatpush1.xpose.msra.mxu0 0.0
    %2707 = vmatprep.mubr.f32.mxu0 0.0
    %2708 = vmatmul.mubr.f32.gmra.mrb[0].mxu0 %v2639
    %v2709 = vpop.f32.mrb[0].mxu0
    %v2710 = vadd.f32 0.0, %v2709
    %v2711 = vpop.f32.mrb[0].mxu0
    %2712 = vdwg.mxu0
    %2713 = vrot.lane.b32.xlu0 %v101, 56
    %v2714 = vpop.permute.xlu0 %2713
    %2715 = vrot.lane.b32.xlu0 %v104, 56
    %v2716 = vpop.permute.xlu0 %2715
    %v2717 = vsel %vm497, %v2714, 0
    %v2719 = vsel %vm497, %v2716, 0
    %2721 = vmatprep.subr.mxu0 0.0
    %2722 = vmatpush1.xpose.msra.mxu0 %v2717
    %2723 = vmatprep.subr.mxu0 0.0
    %2724 = vmatpush1.xpose.msra.mxu0 %v2719
    %2725 = vmatprep.subr.mxu0 0.0
    %2726 = vmatpush1.xpose.msra.mxu0 0.0
    %2727 = vmatprep.subr.mxu0 0.0
    %2728 = vmatpush1.xpose.msra.mxu0 0.0
    %2729 = vmatprep.subr.mxu0 0.0
    %2730 = vmatpush1.xpose.msra.mxu0 0.0
    %2731 = vmatprep.subr.mxu0 0.0
    %2732 = vmatpush1.xpose.msra.mxu0 0.0
    %2733 = vmatprep.subr.mxu0 0.0
    %2734 = vmatpush1.xpose.msra.mxu0 0.0
    %2735 = vmatprep.subr.mxu0 0.0
    %2736 = vmatpush1.xpose.msra.mxu0 0.0
    %2737 = vmatprep.subr.mxu0 0.0
    %2738 = vmatpush1.xpose.msra.mxu0 0.0
    %2739 = vmatprep.subr.mxu0 0.0
    %2740 = vmatpush1.xpose.msra.mxu0 0.0
    %2741 = vmatprep.subr.mxu0 0.0
    %2742 = vmatpush1.xpose.msra.mxu0 0.0
    %2743 = vmatprep.subr.mxu0 0.0
    %2744 = vmatpush1.xpose.msra.mxu0 0.0
    %2745 = vmatprep.subr.mxu0 0.0
    %2746 = vmatpush1.xpose.msra.mxu0 0.0
    %2747 = vmatprep.subr.mxu0 0.0
    %2748 = vmatpush1.xpose.msra.mxu0 0.0
    %2749 = vmatprep.subr.mxu0 0.0
    %2750 = vmatpush1.xpose.msra.mxu0 0.0
    %2751 = vmatprep.subr.mxu0 0.0
    %2752 = vmatpush1.xpose.msra.mxu0 0.0
    %2753 = vmatprep.subr.mxu0 0.0
    %2754 = vmatpush1.xpose.msra.mxu0 0.0
    %2755 = vmatprep.subr.mxu0 0.0
    %2756 = vmatpush1.xpose.msra.mxu0 0.0
    %2757 = vmatprep.subr.mxu0 0.0
    %2758 = vmatpush1.xpose.msra.mxu0 0.0
    %2759 = vmatprep.subr.mxu0 0.0
    %2760 = vmatpush1.xpose.msra.mxu0 0.0
    %2761 = vmatprep.subr.mxu0 0.0
    %2762 = vmatpush1.xpose.msra.mxu0 0.0
    %2763 = vmatprep.subr.mxu0 0.0
    %2764 = vmatpush1.xpose.msra.mxu0 0.0
    %2765 = vmatprep.subr.mxu0 0.0
    %2766 = vmatpush1.xpose.msra.mxu0 0.0
    %2767 = vmatprep.subr.mxu0 0.0
    %2768 = vmatpush1.xpose.msra.mxu0 0.0
    %2769 = vmatprep.subr.mxu0 0.0
    %2770 = vmatpush1.xpose.msra.mxu0 0.0
    %2771 = vmatprep.subr.mxu0 0.0
    %2772 = vmatpush1.xpose.msra.mxu0 0.0
    %2773 = vmatprep.subr.mxu0 0.0
    %2774 = vmatpush1.xpose.msra.mxu0 0.0
    %2775 = vmatprep.subr.mxu0 0.0
    %2776 = vmatpush1.xpose.msra.mxu0 0.0
    %2777 = vmatprep.subr.mxu0 0.0
    %2778 = vmatpush1.xpose.msra.mxu0 0.0
    %2779 = vmatprep.subr.mxu0 0.0
    %2780 = vmatpush1.xpose.msra.mxu0 0.0
    %2781 = vmatprep.subr.mxu0 0.0
    %2782 = vmatpush1.xpose.msra.mxu0 0.0
    %2783 = vmatprep.subr.mxu0 0.0
    %2784 = vmatpush1.xpose.msra.mxu0 0.0
    %2785 = vmatprep.mubr.f32.mxu0 0.0
    %2786 = vmatmul.mubr.f32.gmra.mrb[0].mxu0 %v2639
    %v2787 = vpop.f32.mrb[0].mxu0
    %v2788 = vadd.f32 0.0, %v2787
    %v2789 = vpop.f32.mrb[0].mxu0
    %2790 = vdwg.mxu0
    %v2791 = vsel %vm650, %v2710, -inf
    %2792 = vmax.xlane.f32.xlu0 %v2791
    %v2793 = vpop.xlane.xlu0 %2792
    %v2794 = vsel %vm654, %v2788, -inf
    %2795 = vmax.xlane.f32.xlu0 %v2794
    %v2796 = vpop.xlane.xlu0 %2795
    %v2797 = vmax.f32 %v2793, %v2796
    %v2798 = vsub.f32 %v2710, %v2797
    %v2799 = vmul.f32 %v2798, 1.442695
    %v2800 = vpow.pop %v2799
    %v2801 = vsub.f32 %v2788, %v2797
    %v2802 = vmul.f32 %v2801, 1.442695
    %v2803 = vpow.pop %v2802
    %v2804 = vsel %vm650, %v2800, 0.0
    %2805 = vadd.xlane.f32.xlu0 %v2804
    %v2806 = vpop.xlane.xlu0 %2805
    %v2807 = vsel %vm654, %v2803, 0.0
    %2808 = vadd.xlane.f32.xlu0 %v2807
    %v2809 = vpop.xlane.xlu0 %2808
    %v2810 = vadd.f32 %v2806, %v2809
    %v2811 = vrcp.pop %v2810
    %2812 = vrot.lane.b32.xlu0 %v101, 24
    %v2813 = vpop.permute.xlu0 %2812
    %2814 = vrot.lane.b32.xlu0 %v104, 24
    %v2815 = vpop.permute.xlu0 %2814
    %v2819 = vsel %vm654, %v2803, 0
    %2821 = vmatprep.subr.mxu0 0.0
    %2822 = vmatpush1.msra.mxu0 %v2813
    %2823 = vmatprep.subr.mxu0 0.0
    %2824 = vmatpush1.msra.mxu0 %v2815
    %2825 = vmatprep.subr.mxu0 0.0
    %2826 = vmatpush1.msra.mxu0 0.0
    %2827 = vmatprep.subr.mxu0 0.0
    %2828 = vmatpush1.msra.mxu0 0.0
    %2829 = vmatprep.subr.mxu0 0.0
    %2830 = vmatpush1.msra.mxu0 0.0
    %2831 = vmatprep.subr.mxu0 0.0
    %2832 = vmatpush1.msra.mxu0 0.0
    %2833 = vmatprep.subr.mxu0 0.0
    %2834 = vmatpush1.msra.mxu0 0.0
    %2835 = vmatprep.subr.mxu0 0.0
    %2836 = vmatpush1.msra.mxu0 0.0
    %2837 = vmatprep.subr.mxu0 0.0
    %2838 = vmatpush1.msra.mxu0 0.0
    %2839 = vmatprep.subr.mxu0 0.0
    %2840 = vmatpush1.msra.mxu0 0.0
    %2841 = vmatprep.subr.mxu0 0.0
    %2842 = vmatpush1.msra.mxu0 0.0
    %2843 = vmatprep.subr.mxu0 0.0
    %2844 = vmatpush1.msra.mxu0 0.0
    %2845 = vmatprep.subr.mxu0 0.0
    %2846 = vmatpush1.msra.mxu0 0.0
    %2847 = vmatprep.subr.mxu0 0.0
    %2848 = vmatpush1.msra.mxu0 0.0
    %2849 = vmatprep.subr.mxu0 0.0
    %2850 = vmatpush1.msra.mxu0 0.0
    %2851 = vmatprep.subr.mxu0 0.0
    %2852 = vmatpush1.msra.mxu0 0.0
    %2853 = vmatprep.subr.mxu0 0.0
    %2854 = vmatpush1.msra.mxu0 0.0
    %2855 = vmatprep.subr.mxu0 0.0
    %2856 = vmatpush1.msra.mxu0 0.0
    %2857 = vmatprep.subr.mxu0 0.0
    %2858 = vmatpush1.msra.mxu0 0.0
    %2859 = vmatprep.subr.mxu0 0.0
    %2860 = vmatpush1.msra.mxu0 0.0
    %2861 = vmatprep.subr.mxu0 0.0
    %2862 = vmatpush1.msra.mxu0 0.0
    %2863 = vmatprep.subr.mxu0 0.0
    %2864 = vmatpush1.msra.mxu0 0.0
    %2865 = vmatprep.subr.mxu0 0.0
    %2866 = vmatpush1.msra.mxu0 0.0
    %2867 = vmatprep.subr.mxu0 0.0
    %2868 = vmatpush1.msra.mxu0 0.0
    %2869 = vmatprep.subr.mxu0 0.0
    %2870 = vmatpush1.msra.mxu0 0.0
    %2871 = vmatprep.subr.mxu0 0.0
    %2872 = vmatpush1.msra.mxu0 0.0
    %2873 = vmatprep.subr.mxu0 0.0
    %2874 = vmatpush1.msra.mxu0 0.0
    %2875 = vmatprep.subr.mxu0 0.0
    %2876 = vmatpush1.msra.mxu0 0.0
    %2877 = vmatprep.subr.mxu0 0.0
    %2878 = vmatpush1.msra.mxu0 0.0
    %2879 = vmatprep.subr.mxu0 0.0
    %2880 = vmatpush1.msra.mxu0 0.0
    %2881 = vmatprep.subr.mxu0 0.0
    %2882 = vmatpush1.msra.mxu0 0.0
    %2883 = vmatprep.subr.mxu0 0.0
    %2884 = vmatpush1.msra.mxu0 0.0
    %2885 = vmatprep.mubr.f32.mxu0 0.0
    %2886 = vmatmul.mubr.f32.gmra.mrb[0].mxu0 %v2819
    %v2887 = vpop.f32.mrb[0].mxu0
    %v2888 = vadd.f32 0.0, %v2887
    %v2889 = vpop.f32.mrb[0].mxu0
    %2890 = vdwg.mxu0
    %2891 = vrot.lane.b32.xlu0 %v108, 24
    %v2892 = vpop.permute.xlu0 %2891
    %v2894 = vsel %vm650, %v2800, 0
    %v2896 = vsel %vm343, %v2892, 0
    %2898 = vmatprep.subr.mxu0 0.0
    %2899 = vmatpush1.msra.mxu0 %v2896
    %2900 = vmatprep.subr.mxu0 0.0
    %2901 = vmatpush1.msra.mxu0 0.0
    %2902 = vmatprep.subr.mxu0 0.0
    %2903 = vmatpush1.msra.mxu0 0.0
    %2904 = vmatprep.subr.mxu0 0.0
    %2905 = vmatpush1.msra.mxu0 0.0
    %2906 = vmatprep.subr.mxu0 0.0
    %2907 = vmatpush1.msra.mxu0 0.0
    %2908 = vmatprep.subr.mxu0 0.0
    %2909 = vmatpush1.msra.mxu0 0.0
    %2910 = vmatprep.subr.mxu0 0.0
    %2911 = vmatpush1.msra.mxu0 0.0
    %2912 = vmatprep.subr.mxu0 0.0
    %2913 = vmatpush1.msra.mxu0 0.0
    %2914 = vmatprep.subr.mxu0 0.0
    %2915 = vmatpush1.msra.mxu0 0.0
    %2916 = vmatprep.subr.mxu0 0.0
    %2917 = vmatpush1.msra.mxu0 0.0
    %2918 = vmatprep.subr.mxu0 0.0
    %2919 = vmatpush1.msra.mxu0 0.0
    %2920 = vmatprep.subr.mxu0 0.0
    %2921 = vmatpush1.msra.mxu0 0.0
    %2922 = vmatprep.subr.mxu0 0.0
    %2923 = vmatpush1.msra.mxu0 0.0
    %2924 = vmatprep.subr.mxu0 0.0
    %2925 = vmatpush1.msra.mxu0 0.0
    %2926 = vmatprep.subr.mxu0 0.0
    %2927 = vmatpush1.msra.mxu0 0.0
    %2928 = vmatprep.subr.mxu0 0.0
    %2929 = vmatpush1.msra.mxu0 0.0
    %2930 = vmatprep.subr.mxu0 0.0
    %2931 = vmatpush1.msra.mxu0 0.0
    %2932 = vmatprep.subr.mxu0 0.0
    %2933 = vmatpush1.msra.mxu0 0.0
    %2934 = vmatprep.subr.mxu0 0.0
    %2935 = vmatpush1.msra.mxu0 0.0
    %2936 = vmatprep.subr.mxu0 0.0
    %2937 = vmatpush1.msra.mxu0 0.0
    %2938 = vmatprep.subr.mxu0 0.0
    %2939 = vmatpush1.msra.mxu0 0.0
    %2940 = vmatprep.subr.mxu0 0.0
    %2941 = vmatpush1.msra.mxu0 0.0
    %2942 = vmatprep.subr.mxu0 0.0
    %2943 = vmatpush1.msra.mxu0 0.0
    %2944 = vmatprep.subr.mxu0 0.0
    %2945 = vmatpush1.msra.mxu0 0.0
    %2946 = vmatprep.subr.mxu0 0.0
    %2947 = vmatpush1.msra.mxu0 0.0
    %2948 = vmatprep.subr.mxu0 0.0
    %2949 = vmatpush1.msra.mxu0 0.0
    %2950 = vmatprep.subr.mxu0 0.0
    %2951 = vmatpush1.msra.mxu0 0.0
    %2952 = vmatprep.subr.mxu0 0.0
    %2953 = vmatpush1.msra.mxu0 0.0
    %2954 = vmatprep.subr.mxu0 0.0
    %2955 = vmatpush1.msra.mxu0 0.0
    %2956 = vmatprep.subr.mxu0 0.0
    %2957 = vmatpush1.msra.mxu0 0.0
    %2958 = vmatprep.subr.mxu0 0.0
    %2959 = vmatpush1.msra.mxu0 0.0
    %2960 = vmatprep.subr.mxu0 0.0
    %2961 = vmatpush1.msra.mxu0 0.0
    %2962 = vmatprep.mubr.f32.mxu0 0.0
    %2963 = vmatmul.mubr.f32.gmra.mrb[0].mxu0 %v2894
    %v2964 = vpop.f32.mrb[0].mxu0
    %v2965 = vadd.f32 %v2888, %v2964
    %v2966 = vpop.f32.mrb[0].mxu0
    %2967 = vdwg.mxu0
    %v2968 = vmul.f32 %v2965, %v2811
    %2970 = vrot.lane.b32.xlu0 %v2968, 8
    %v2971 = vpop.permute.xlu0 %2970
    %2973 = vst.msk [vmem:[#allocation2] sm:$0xff] %vm1169, %v2971
    %2974 = vrot.lane.b32.xlu0 %v2296, 112
    %v2975 = vpop.permute.xlu0 %2974
    %2976 = vrot.lane.b32.xlu0 %v108, 48
    %v2977 = vpop.permute.xlu0 %2976
    %v2978 = vsel %vm497, %v2975, 0
    %v2980 = vsel %vm497, %v2977, 0
    %2982 = vmatprep.subr.mxu0 0.0
    %2983 = vmatpush1.xpose.msra.mxu0 %v2980
    %2984 = vmatprep.subr.mxu0 0.0
    %2985 = vmatpush1.xpose.msra.mxu0 0.0
    %2986 = vmatprep.subr.mxu0 0.0
    %2987 = vmatpush1.xpose.msra.mxu0 0.0
    %2988 = vmatprep.subr.mxu0 0.0
    %2989 = vmatpush1.xpose.msra.mxu0 0.0
    %2990 = vmatprep.subr.mxu0 0.0
    %2991 = vmatpush1.xpose.msra.mxu0 0.0
    %2992 = vmatprep.subr.mxu0 0.0
    %2993 = vmatpush1.xpose.msra.mxu0 0.0
    %2994 = vmatprep.subr.mxu0 0.0
    %2995 = vmatpush1.xpose.msra.mxu0 0.0
    %2996 = vmatprep.subr.mxu0 0.0
    %2997 = vmatpush1.xpose.msra.mxu0 0.0
    %2998 = vmatprep.subr.mxu0 0.0
    %2999 = vmatpush1.xpose.msra.mxu0 0.0
    %3000 = vmatprep.subr.mxu0 0.0
    %3001 = vmatpush1.xpose.msra.mxu0 0.0
    %3002 = vmatprep.subr.mxu0 0.0
    %3003 = vmatpush1.xpose.msra.mxu0 0.0
    %3004 = vmatprep.subr.mxu0 0.0
    %3005 = vmatpush1.xpose.msra.mxu0 0.0
    %3006 = vmatprep.subr.mxu0 0.0
    %3007 = vmatpush1.xpose.msra.mxu0 0.0
    %3008 = vmatprep.subr.mxu0 0.0
    %3009 = vmatpush1.xpose.msra.mxu0 0.0
    %3010 = vmatprep.subr.mxu0 0.0
    %3011 = vmatpush1.xpose.msra.mxu0 0.0
    %3012 = vmatprep.subr.mxu0 0.0
    %3013 = vmatpush1.xpose.msra.mxu0 0.0
    %3014 = vmatprep.subr.mxu0 0.0
    %3015 = vmatpush1.xpose.msra.mxu0 0.0
    %3016 = vmatprep.subr.mxu0 0.0
    %3017 = vmatpush1.xpose.msra.mxu0 0.0
    %3018 = vmatprep.subr.mxu0 0.0
    %3019 = vmatpush1.xpose.msra.mxu0 0.0
    %3020 = vmatprep.subr.mxu0 0.0
    %3021 = vmatpush1.xpose.msra.mxu0 0.0
    %3022 = vmatprep.subr.mxu0 0.0
    %3023 = vmatpush1.xpose.msra.mxu0 0.0
    %3024 = vmatprep.subr.mxu0 0.0
    %3025 = vmatpush1.xpose.msra.mxu0 0.0
    %3026 = vmatprep.subr.mxu0 0.0
    %3027 = vmatpush1.xpose.msra.mxu0 0.0
    %3028 = vmatprep.subr.mxu0 0.0
    %3029 = vmatpush1.xpose.msra.mxu0 0.0
    %3030 = vmatprep.subr.mxu0 0.0
    %3031 = vmatpush1.xpose.msra.mxu0 0.0
    %3032 = vmatprep.subr.mxu0 0.0
    %3033 = vmatpush1.xpose.msra.mxu0 0.0
    %3034 = vmatprep.subr.mxu0 0.0
    %3035 = vmatpush1.xpose.msra.mxu0 0.0
    %3036 = vmatprep.subr.mxu0 0.0
    %3037 = vmatpush1.xpose.msra.mxu0 0.0
    %3038 = vmatprep.subr.mxu0 0.0
    %3039 = vmatpush1.xpose.msra.mxu0 0.0
    %3040 = vmatprep.subr.mxu0 0.0
    %3041 = vmatpush1.xpose.msra.mxu0 0.0
    %3042 = vmatprep.subr.mxu0 0.0
    %3043 = vmatpush1.xpose.msra.mxu0 0.0
    %3044 = vmatprep.subr.mxu0 0.0
    %3045 = vmatpush1.xpose.msra.mxu0 0.0
    %3046 = vmatprep.mubr.f32.mxu0 0.0
    %3047 = vmatmul.mubr.f32.gmra.mrb[0].mxu0 %v2978
    %v3048 = vpop.f32.mrb[0].mxu0
    %v3049 = vadd.f32 0.0, %v3048
    %v3050 = vpop.f32.mrb[0].mxu0
    %3051 = vdwg.mxu0
    %3052 = vrot.lane.b32.xlu0 %v101, 48
    %v3053 = vpop.permute.xlu0 %3052
    %3054 = vrot.lane.b32.xlu0 %v104, 48
    %v3055 = vpop.permute.xlu0 %3054
    %v3056 = vsel %vm497, %v3053, 0
    %v3058 = vsel %vm497, %v3055, 0
    %3060 = vmatprep.subr.mxu0 0.0
    %3061 = vmatpush1.xpose.msra.mxu0 %v3056
    %3062 = vmatprep.subr.mxu0 0.0
    %3063 = vmatpush1.xpose.msra.mxu0 %v3058
    %3064 = vmatprep.subr.mxu0 0.0
    %3065 = vmatpush1.xpose.msra.mxu0 0.0
    %3066 = vmatprep.subr.mxu0 0.0
    %3067 = vmatpush1.xpose.msra.mxu0 0.0
    %3068 = vmatprep.subr.mxu0 0.0
    %3069 = vmatpush1.xpose.msra.mxu0 0.0
    %3070 = vmatprep.subr.mxu0 0.0
    %3071 = vmatpush1.xpose.msra.mxu0 0.0
    %3072 = vmatprep.subr.mxu0 0.0
    %3073 = vmatpush1.xpose.msra.mxu0 0.0
    %3074 = vmatprep.subr.mxu0 0.0
    %3075 = vmatpush1.xpose.msra.mxu0 0.0
    %3076 = vmatprep.subr.mxu0 0.0
    %3077 = vmatpush1.xpose.msra.mxu0 0.0
    %3078 = vmatprep.subr.mxu0 0.0
    %3079 = vmatpush1.xpose.msra.mxu0 0.0
    %3080 = vmatprep.subr.mxu0 0.0
    %3081 = vmatpush1.xpose.msra.mxu0 0.0
    %3082 = vmatprep.subr.mxu0 0.0
    %3083 = vmatpush1.xpose.msra.mxu0 0.0
    %3084 = vmatprep.subr.mxu0 0.0
    %3085 = vmatpush1.xpose.msra.mxu0 0.0
    %3086 = vmatprep.subr.mxu0 0.0
    %3087 = vmatpush1.xpose.msra.mxu0 0.0
    %3088 = vmatprep.subr.mxu0 0.0
    %3089 = vmatpush1.xpose.msra.mxu0 0.0
    %3090 = vmatprep.subr.mxu0 0.0
    %3091 = vmatpush1.xpose.msra.mxu0 0.0
    %3092 = vmatprep.subr.mxu0 0.0
    %3093 = vmatpush1.xpose.msra.mxu0 0.0
    %3094 = vmatprep.subr.mxu0 0.0
    %3095 = vmatpush1.xpose.msra.mxu0 0.0
    %3096 = vmatprep.subr.mxu0 0.0
    %3097 = vmatpush1.xpose.msra.mxu0 0.0
    %3098 = vmatprep.subr.mxu0 0.0
    %3099 = vmatpush1.xpose.msra.mxu0 0.0
    %3100 = vmatprep.subr.mxu0 0.0
    %3101 = vmatpush1.xpose.msra.mxu0 0.0
    %3102 = vmatprep.subr.mxu0 0.0
    %3103 = vmatpush1.xpose.msra.mxu0 0.0
    %3104 = vmatprep.subr.mxu0 0.0
    %3105 = vmatpush1.xpose.msra.mxu0 0.0
    %3106 = vmatprep.subr.mxu0 0.0
    %3107 = vmatpush1.xpose.msra.mxu0 0.0
    %3108 = vmatprep.subr.mxu0 0.0
    %3109 = vmatpush1.xpose.msra.mxu0 0.0
    %3110 = vmatprep.subr.mxu0 0.0
    %3111 = vmatpush1.xpose.msra.mxu0 0.0
    %3112 = vmatprep.subr.mxu0 0.0
    %3113 = vmatpush1.xpose.msra.mxu0 0.0
    %3114 = vmatprep.subr.mxu0 0.0
    %3115 = vmatpush1.xpose.msra.mxu0 0.0
    %3116 = vmatprep.subr.mxu0 0.0
    %3117 = vmatpush1.xpose.msra.mxu0 0.0
    %3118 = vmatprep.subr.mxu0 0.0
    %3119 = vmatpush1.xpose.msra.mxu0 0.0
    %3120 = vmatprep.subr.mxu0 0.0
    %3121 = vmatpush1.xpose.msra.mxu0 0.0
    %3122 = vmatprep.subr.mxu0 0.0
    %3123 = vmatpush1.xpose.msra.mxu0 0.0
    %3124 = vmatprep.mubr.f32.mxu0 0.0
    %3125 = vmatmul.mubr.f32.gmra.mrb[0].mxu0 %v2978
    %v3126 = vpop.f32.mrb[0].mxu0
    %v3127 = vadd.f32 0.0, %v3126
    %v3128 = vpop.f32.mrb[0].mxu0
    %3129 = vdwg.mxu0
    %v3130 = vsel %vm650, %v3049, -inf
    %3131 = vmax.xlane.f32.xlu0 %v3130
    %v3132 = vpop.xlane.xlu0 %3131
    %v3133 = vsel %vm654, %v3127, -inf
    %3134 = vmax.xlane.f32.xlu0 %v3133
    %v3135 = vpop.xlane.xlu0 %3134
    %v3136 = vmax.f32 %v3132, %v3135
    %v3137 = vsub.f32 %v3049, %v3136
    %v3138 = vmul.f32 %v3137, 1.442695
    %v3139 = vpow.pop %v3138
    %v3140 = vsub.f32 %v3127, %v3136
    %v3141 = vmul.f32 %v3140, 1.442695
    %v3142 = vpow.pop %v3141
    %v3143 = vsel %vm650, %v3139, 0.0
    %3144 = vadd.xlane.f32.xlu0 %v3143
    %v3145 = vpop.xlane.xlu0 %3144
    %v3146 = vsel %vm654, %v3142, 0.0
    %3147 = vadd.xlane.f32.xlu0 %v3146
    %v3148 = vpop.xlane.xlu0 %3147
    %v3149 = vadd.f32 %v3145, %v3148
    %v3150 = vrcp.pop %v3149
    %3151 = vrot.lane.b32.xlu0 %v101, 16
    %v3152 = vpop.permute.xlu0 %3151
    %3153 = vrot.lane.b32.xlu0 %v104, 16
    %v3154 = vpop.permute.xlu0 %3153
    %v3158 = vsel %vm654, %v3142, 0
    %3160 = vmatprep.subr.mxu0 0.0
    %3161 = vmatpush1.msra.mxu0 %v3152
    %3162 = vmatprep.subr.mxu0 0.0
    %3163 = vmatpush1.msra.mxu0 %v3154
    %3164 = vmatprep.subr.mxu0 0.0
    %3165 = vmatpush1.msra.mxu0 0.0
    %3166 = vmatprep.subr.mxu0 0.0
    %3167 = vmatpush1.msra.mxu0 0.0
    %3168 = vmatprep.subr.mxu0 0.0
    %3169 = vmatpush1.msra.mxu0 0.0
    %3170 = vmatprep.subr.mxu0 0.0
    %3171 = vmatpush1.msra.mxu0 0.0
    %3172 = vmatprep.subr.mxu0 0.0
    %3173 = vmatpush1.msra.mxu0 0.0
    %3174 = vmatprep.subr.mxu0 0.0
    %3175 = vmatpush1.msra.mxu0 0.0
    %3176 = vmatprep.subr.mxu0 0.0
    %3177 = vmatpush1.msra.mxu0 0.0
    %3178 = vmatprep.subr.mxu0 0.0
    %3179 = vmatpush1.msra.mxu0 0.0
    %3180 = vmatprep.subr.mxu0 0.0
    %3181 = vmatpush1.msra.mxu0 0.0
    %3182 = vmatprep.subr.mxu0 0.0
    %3183 = vmatpush1.msra.mxu0 0.0
    %3184 = vmatprep.subr.mxu0 0.0
    %3185 = vmatpush1.msra.mxu0 0.0
    %3186 = vmatprep.subr.mxu0 0.0
    %3187 = vmatpush1.msra.mxu0 0.0
    %3188 = vmatprep.subr.mxu0 0.0
    %3189 = vmatpush1.msra.mxu0 0.0
    %3190 = vmatprep.subr.mxu0 0.0
    %3191 = vmatpush1.msra.mxu0 0.0
    %3192 = vmatprep.subr.mxu0 0.0
    %3193 = vmatpush1.msra.mxu0 0.0
    %3194 = vmatprep.subr.mxu0 0.0
    %3195 = vmatpush1.msra.mxu0 0.0
    %3196 = vmatprep.subr.mxu0 0.0
    %3197 = vmatpush1.msra.mxu0 0.0
    %3198 = vmatprep.subr.mxu0 0.0
    %3199 = vmatpush1.msra.mxu0 0.0
    %3200 = vmatprep.subr.mxu0 0.0
    %3201 = vmatpush1.msra.mxu0 0.0
    %3202 = vmatprep.subr.mxu0 0.0
    %3203 = vmatpush1.msra.mxu0 0.0
    %3204 = vmatprep.subr.mxu0 0.0
    %3205 = vmatpush1.msra.mxu0 0.0
    %3206 = vmatprep.subr.mxu0 0.0
    %3207 = vmatpush1.msra.mxu0 0.0
    %3208 = vmatprep.subr.mxu0 0.0
    %3209 = vmatpush1.msra.mxu0 0.0
    %3210 = vmatprep.subr.mxu0 0.0
    %3211 = vmatpush1.msra.mxu0 0.0
    %3212 = vmatprep.subr.mxu0 0.0
    %3213 = vmatpush1.msra.mxu0 0.0
    %3214 = vmatprep.subr.mxu0 0.0
    %3215 = vmatpush1.msra.mxu0 0.0
    %3216 = vmatprep.subr.mxu0 0.0
    %3217 = vmatpush1.msra.mxu0 0.0
    %3218 = vmatprep.subr.mxu0 0.0
    %3219 = vmatpush1.msra.mxu0 0.0
    %3220 = vmatprep.subr.mxu0 0.0
    %3221 = vmatpush1.msra.mxu0 0.0
    %3222 = vmatprep.subr.mxu0 0.0
    %3223 = vmatpush1.msra.mxu0 0.0
    %3224 = vmatprep.mubr.f32.mxu0 0.0
    %3225 = vmatmul.mubr.f32.gmra.mrb[0].mxu0 %v3158
    %v3226 = vpop.f32.mrb[0].mxu0
    %v3227 = vadd.f32 0.0, %v3226
    %v3228 = vpop.f32.mrb[0].mxu0
    %3229 = vdwg.mxu0
    %3230 = vrot.lane.b32.xlu0 %v108, 16
    %v3231 = vpop.permute.xlu0 %3230
    %v3233 = vsel %vm650, %v3139, 0
    %v3235 = vsel %vm343, %v3231, 0
    %3237 = vmatprep.subr.mxu0 0.0
    %3238 = vmatpush1.msra.mxu0 %v3235
    %3239 = vmatprep.subr.mxu0 0.0
    %3240 = vmatpush1.msra.mxu0 0.0
    %3241 = vmatprep.subr.mxu0 0.0
    %3242 = vmatpush1.msra.mxu0 0.0
    %3243 = vmatprep.subr.mxu0 0.0
    %3244 = vmatpush1.msra.mxu0 0.0
    %3245 = vmatprep.subr.mxu0 0.0
    %3246 = vmatpush1.msra.mxu0 0.0
    %3247 = vmatprep.subr.mxu0 0.0
    %3248 = vmatpush1.msra.mxu0 0.0
    %3249 = vmatprep.subr.mxu0 0.0
    %3250 = vmatpush1.msra.mxu0 0.0
    %3251 = vmatprep.subr.mxu0 0.0
    %3252 = vmatpush1.msra.mxu0 0.0
    %3253 = vmatprep.subr.mxu0 0.0
    %3254 = vmatpush1.msra.mxu0 0.0
    %3255 = vmatprep.subr.mxu0 0.0
    %3256 = vmatpush1.msra.mxu0 0.0
    %3257 = vmatprep.subr.mxu0 0.0
    %3258 = vmatpush1.msra.mxu0 0.0
    %3259 = vmatprep.subr.mxu0 0.0
    %3260 = vmatpush1.msra.mxu0 0.0
    %3261 = vmatprep.subr.mxu0 0.0
    %3262 = vmatpush1.msra.mxu0 0.0
    %3263 = vmatprep.subr.mxu0 0.0
    %3264 = vmatpush1.msra.mxu0 0.0
    %3265 = vmatprep.subr.mxu0 0.0
    %3266 = vmatpush1.msra.mxu0 0.0
    %3267 = vmatprep.subr.mxu0 0.0
    %3268 = vmatpush1.msra.mxu0 0.0
    %3269 = vmatprep.subr.mxu0 0.0
    %3270 = vmatpush1.msra.mxu0 0.0
    %3271 = vmatprep.subr.mxu0 0.0
    %3272 = vmatpush1.msra.mxu0 0.0
    %3273 = vmatprep.subr.mxu0 0.0
    %3274 = vmatpush1.msra.mxu0 0.0
    %3275 = vmatprep.subr.mxu0 0.0
    %3276 = vmatpush1.msra.mxu0 0.0
    %3277 = vmatprep.subr.mxu0 0.0
    %3278 = vmatpush1.msra.mxu0 0.0
    %3279 = vmatprep.subr.mxu0 0.0
    %3280 = vmatpush1.msra.mxu0 0.0
    %3281 = vmatprep.subr.mxu0 0.0
    %3282 = vmatpush1.msra.mxu0 0.0
    %3283 = vmatprep.subr.mxu0 0.0
    %3284 = vmatpush1.msra.mxu0 0.0
    %3285 = vmatprep.subr.mxu0 0.0
    %3286 = vmatpush1.msra.mxu0 0.0
    %3287 = vmatprep.subr.mxu0 0.0
    %3288 = vmatpush1.msra.mxu0 0.0
    %3289 = vmatprep.subr.mxu0 0.0
    %3290 = vmatpush1.msra.mxu0 0.0
    %3291 = vmatprep.subr.mxu0 0.0
    %3292 = vmatpush1.msra.mxu0 0.0
    %3293 = vmatprep.subr.mxu0 0.0
    %3294 = vmatpush1.msra.mxu0 0.0
    %3295 = vmatprep.subr.mxu0 0.0
    %3296 = vmatpush1.msra.mxu0 0.0
    %3297 = vmatprep.subr.mxu0 0.0
    %3298 = vmatpush1.msra.mxu0 0.0
    %3299 = vmatprep.subr.mxu0 0.0
    %3300 = vmatpush1.msra.mxu0 0.0
    %3301 = vmatprep.mubr.f32.mxu0 0.0
    %3302 = vmatmul.mubr.f32.gmra.mrb[0].mxu0 %v3233
    %v3303 = vpop.f32.mrb[0].mxu0
    %v3304 = vadd.f32 %v3227, %v3303
    %v3305 = vpop.f32.mrb[0].mxu0
    %3306 = vdwg.mxu0
    %v3307 = vmul.f32 %v3304, %v3150
    %3309 = vrot.lane.b32.xlu0 %v3307, 16
    %v3310 = vpop.permute.xlu0 %3309
    %3312 = vst.msk [vmem:[#allocation2] sm:$0xff] %vm1509, %v3310
    %3313 = vrot.lane.b32.xlu0 %v2296, 104
    %v3314 = vpop.permute.xlu0 %3313
    %3315 = vrot.lane.b32.xlu0 %v108, 40
    %v3316 = vpop.permute.xlu0 %3315
    %v3317 = vsel %vm497, %v3314, 0
    %v3319 = vsel %vm497, %v3316, 0
    %3321 = vmatprep.subr.mxu0 0.0
    %3322 = vmatpush1.xpose.msra.mxu0 %v3319
    %3323 = vmatprep.subr.mxu0 0.0
    %3324 = vmatpush1.xpose.msra.mxu0 0.0
    %3325 = vmatprep.subr.mxu0 0.0
    %3326 = vmatpush1.xpose.msra.mxu0 0.0
    %3327 = vmatprep.subr.mxu0 0.0
    %3328 = vmatpush1.xpose.msra.mxu0 0.0
    %3329 = vmatprep.subr.mxu0 0.0
    %3330 = vmatpush1.xpose.msra.mxu0 0.0
    %3331 = vmatprep.subr.mxu0 0.0
    %3332 = vmatpush1.xpose.msra.mxu0 0.0
    %3333 = vmatprep.subr.mxu0 0.0
    %3334 = vmatpush1.xpose.msra.mxu0 0.0
    %3335 = vmatprep.subr.mxu0 0.0
    %3336 = vmatpush1.xpose.msra.mxu0 0.0
    %3337 = vmatprep.subr.mxu0 0.0
    %3338 = vmatpush1.xpose.msra.mxu0 0.0
    %3339 = vmatprep.subr.mxu0 0.0
    %3340 = vmatpush1.xpose.msra.mxu0 0.0
    %3341 = vmatprep.subr.mxu0 0.0
    %3342 = vmatpush1.xpose.msra.mxu0 0.0
    %3343 = vmatprep.subr.mxu0 0.0
    %3344 = vmatpush1.xpose.msra.mxu0 0.0
    %3345 = vmatprep.subr.mxu0 0.0
    %3346 = vmatpush1.xpose.msra.mxu0 0.0
    %3347 = vmatprep.subr.mxu0 0.0
    %3348 = vmatpush1.xpose.msra.mxu0 0.0
    %3349 = vmatprep.subr.mxu0 0.0
    %3350 = vmatpush1.xpose.msra.mxu0 0.0
    %3351 = vmatprep.subr.mxu0 0.0
    %3352 = vmatpush1.xpose.msra.mxu0 0.0
    %3353 = vmatprep.subr.mxu0 0.0
    %3354 = vmatpush1.xpose.msra.mxu0 0.0
    %3355 = vmatprep.subr.mxu0 0.0
    %3356 = vmatpush1.xpose.msra.mxu0 0.0
    %3357 = vmatprep.subr.mxu0 0.0
    %3358 = vmatpush1.xpose.msra.mxu0 0.0
    %3359 = vmatprep.subr.mxu0 0.0
    %3360 = vmatpush1.xpose.msra.mxu0 0.0
    %3361 = vmatprep.subr.mxu0 0.0
    %3362 = vmatpush1.xpose.msra.mxu0 0.0
    %3363 = vmatprep.subr.mxu0 0.0
    %3364 = vmatpush1.xpose.msra.mxu0 0.0
    %3365 = vmatprep.subr.mxu0 0.0
    %3366 = vmatpush1.xpose.msra.mxu0 0.0
    %3367 = vmatprep.subr.mxu0 0.0
    %3368 = vmatpush1.xpose.msra.mxu0 0.0
    %3369 = vmatprep.subr.mxu0 0.0
    %3370 = vmatpush1.xpose.msra.mxu0 0.0
    %3371 = vmatprep.subr.mxu0 0.0
    %3372 = vmatpush1.xpose.msra.mxu0 0.0
    %3373 = vmatprep.subr.mxu0 0.0
    %3374 = vmatpush1.xpose.msra.mxu0 0.0
    %3375 = vmatprep.subr.mxu0 0.0
    %3376 = vmatpush1.xpose.msra.mxu0 0.0
    %3377 = vmatprep.subr.mxu0 0.0
    %3378 = vmatpush1.xpose.msra.mxu0 0.0
    %3379 = vmatprep.subr.mxu0 0.0
    %3380 = vmatpush1.xpose.msra.mxu0 0.0
    %3381 = vmatprep.subr.mxu0 0.0
    %3382 = vmatpush1.xpose.msra.mxu0 0.0
    %3383 = vmatprep.subr.mxu0 0.0
    %3384 = vmatpush1.xpose.msra.mxu0 0.0
    %3385 = vmatprep.mubr.f32.mxu0 0.0
    %3386 = vmatmul.mubr.f32.gmra.mrb[0].mxu0 %v3317
    %v3387 = vpop.f32.mrb[0].mxu0
    %v3388 = vadd.f32 0.0, %v3387
    %v3389 = vpop.f32.mrb[0].mxu0
    %3390 = vdwg.mxu0
    %3391 = vrot.lane.b32.xlu0 %v101, 40
    %v3392 = vpop.permute.xlu0 %3391
    %3393 = vrot.lane.b32.xlu0 %v104, 40
    %v3394 = vpop.permute.xlu0 %3393
    %v3395 = vsel %vm497, %v3392, 0
    %v3397 = vsel %vm497, %v3394, 0
    %3399 = vmatprep.subr.mxu0 0.0
    %3400 = vmatpush1.xpose.msra.mxu0 %v3395
    %3401 = vmatprep.subr.mxu0 0.0
    %3402 = vmatpush1.xpose.msra.mxu0 %v3397
    %3403 = vmatprep.subr.mxu0 0.0
    %3404 = vmatpush1.xpose.msra.mxu0 0.0
    %3405 = vmatprep.subr.mxu0 0.0
    %3406 = vmatpush1.xpose.msra.mxu0 0.0
    %3407 = vmatprep.subr.mxu0 0.0
    %3408 = vmatpush1.xpose.msra.mxu0 0.0
    %3409 = vmatprep.subr.mxu0 0.0
    %3410 = vmatpush1.xpose.msra.mxu0 0.0
    %3411 = vmatprep.subr.mxu0 0.0
    %3412 = vmatpush1.xpose.msra.mxu0 0.0
    %3413 = vmatprep.subr.mxu0 0.0
    %3414 = vmatpush1.xpose.msra.mxu0 0.0
    %3415 = vmatprep.subr.mxu0 0.0
    %3416 = vmatpush1.xpose.msra.mxu0 0.0
    %3417 = vmatprep.subr.mxu0 0.0
    %3418 = vmatpush1.xpose.msra.mxu0 0.0
    %3419 = vmatprep.subr.mxu0 0.0
    %3420 = vmatpush1.xpose.msra.mxu0 0.0
    %3421 = vmatprep.subr.mxu0 0.0
    %3422 = vmatpush1.xpose.msra.mxu0 0.0
    %3423 = vmatprep.subr.mxu0 0.0
    %3424 = vmatpush1.xpose.msra.mxu0 0.0
    %3425 = vmatprep.subr.mxu0 0.0
    %3426 = vmatpush1.xpose.msra.mxu0 0.0
    %3427 = vmatprep.subr.mxu0 0.0
    %3428 = vmatpush1.xpose.msra.mxu0 0.0
    %3429 = vmatprep.subr.mxu0 0.0
    %3430 = vmatpush1.xpose.msra.mxu0 0.0
    %3431 = vmatprep.subr.mxu0 0.0
    %3432 = vmatpush1.xpose.msra.mxu0 0.0
    %3433 = vmatprep.subr.mxu0 0.0
    %3434 = vmatpush1.xpose.msra.mxu0 0.0
    %3435 = vmatprep.subr.mxu0 0.0
    %3436 = vmatpush1.xpose.msra.mxu0 0.0
    %3437 = vmatprep.subr.mxu0 0.0
    %3438 = vmatpush1.xpose.msra.mxu0 0.0
    %3439 = vmatprep.subr.mxu0 0.0
    %3440 = vmatpush1.xpose.msra.mxu0 0.0
    %3441 = vmatprep.subr.mxu0 0.0
    %3442 = vmatpush1.xpose.msra.mxu0 0.0
    %3443 = vmatprep.subr.mxu0 0.0
    %3444 = vmatpush1.xpose.msra.mxu0 0.0
    %3445 = vmatprep.subr.mxu0 0.0
    %3446 = vmatpush1.xpose.msra.mxu0 0.0
    %3447 = vmatprep.subr.mxu0 0.0
    %3448 = vmatpush1.xpose.msra.mxu0 0.0
    %3449 = vmatprep.subr.mxu0 0.0
    %3450 = vmatpush1.xpose.msra.mxu0 0.0
    %3451 = vmatprep.subr.mxu0 0.0
    %3452 = vmatpush1.xpose.msra.mxu0 0.0
    %3453 = vmatprep.subr.mxu0 0.0
    %3454 = vmatpush1.xpose.msra.mxu0 0.0
    %3455 = vmatprep.subr.mxu0 0.0
    %3456 = vmatpush1.xpose.msra.mxu0 0.0
    %3457 = vmatprep.subr.mxu0 0.0
    %3458 = vmatpush1.xpose.msra.mxu0 0.0
    %3459 = vmatprep.subr.mxu0 0.0
    %3460 = vmatpush1.xpose.msra.mxu0 0.0
    %3461 = vmatprep.subr.mxu0 0.0
    %3462 = vmatpush1.xpose.msra.mxu0 0.0
    %3463 = vmatprep.mubr.f32.mxu0 0.0
    %3464 = vmatmul.mubr.f32.gmra.mrb[0].mxu0 %v3317
    %v3465 = vpop.f32.mrb[0].mxu0
    %v3466 = vadd.f32 0.0, %v3465
    %v3467 = vpop.f32.mrb[0].mxu0
    %3468 = vdwg.mxu0
    %v3469 = vsel %vm650, %v3388, -inf
    %3470 = vmax.xlane.f32.xlu0 %v3469
    %v3471 = vpop.xlane.xlu0 %3470
    %v3472 = vsel %vm654, %v3466, -inf
    %3473 = vmax.xlane.f32.xlu0 %v3472
    %v3474 = vpop.xlane.xlu0 %3473
    %v3475 = vmax.f32 %v3471, %v3474
    %v3476 = vsub.f32 %v3388, %v3475
    %v3477 = vmul.f32 %v3476, 1.442695
    %v3478 = vpow.pop %v3477
    %v3479 = vsub.f32 %v3466, %v3475
    %v3480 = vmul.f32 %v3479, 1.442695
    %v3481 = vpow.pop %v3480
    %v3482 = vsel %vm650, %v3478, 0.0
    %3483 = vadd.xlane.f32.xlu0 %v3482
    %v3484 = vpop.xlane.xlu0 %3483
    %v3485 = vsel %vm654, %v3481, 0.0
    %3486 = vadd.xlane.f32.xlu0 %v3485
    %v3487 = vpop.xlane.xlu0 %3486
    %v3488 = vadd.f32 %v3484, %v3487
    %v3489 = vrcp.pop %v3488
    %3490 = vrot.lane.b32.xlu0 %v101, 8
    %v3491 = vpop.permute.xlu0 %3490
    %3492 = vrot.lane.b32.xlu0 %v104, 8
    %v3493 = vpop.permute.xlu0 %3492
    %v3497 = vsel %vm654, %v3481, 0
    %3499 = vmatprep.subr.mxu0 0.0
    %3500 = vmatpush1.msra.mxu0 %v3491
    %3501 = vmatprep.subr.mxu0 0.0
    %3502 = vmatpush1.msra.mxu0 %v3493
    %3503 = vmatprep.subr.mxu0 0.0
    %3504 = vmatpush1.msra.mxu0 0.0
    %3505 = vmatprep.subr.mxu0 0.0
    %3506 = vmatpush1.msra.mxu0 0.0
    %3507 = vmatprep.subr.mxu0 0.0
    %3508 = vmatpush1.msra.mxu0 0.0
    %3509 = vmatprep.subr.mxu0 0.0
    %3510 = vmatpush1.msra.mxu0 0.0
    %3511 = vmatprep.subr.mxu0 0.0
    %3512 = vmatpush1.msra.mxu0 0.0
    %3513 = vmatprep.subr.mxu0 0.0
    %3514 = vmatpush1.msra.mxu0 0.0
    %3515 = vmatprep.subr.mxu0 0.0
    %3516 = vmatpush1.msra.mxu0 0.0
    %3517 = vmatprep.subr.mxu0 0.0
    %3518 = vmatpush1.msra.mxu0 0.0
    %3519 = vmatprep.subr.mxu0 0.0
    %3520 = vmatpush1.msra.mxu0 0.0
    %3521 = vmatprep.subr.mxu0 0.0
    %3522 = vmatpush1.msra.mxu0 0.0
    %3523 = vmatprep.subr.mxu0 0.0
    %3524 = vmatpush1.msra.mxu0 0.0
    %3525 = vmatprep.subr.mxu0 0.0
    %3526 = vmatpush1.msra.mxu0 0.0
    %3527 = vmatprep.subr.mxu0 0.0
    %3528 = vmatpush1.msra.mxu0 0.0
    %3529 = vmatprep.subr.mxu0 0.0
    %3530 = vmatpush1.msra.mxu0 0.0
    %3531 = vmatprep.subr.mxu0 0.0
    %3532 = vmatpush1.msra.mxu0 0.0
    %3533 = vmatprep.subr.mxu0 0.0
    %3534 = vmatpush1.msra.mxu0 0.0
    %3535 = vmatprep.subr.mxu0 0.0
    %3536 = vmatpush1.msra.mxu0 0.0
    %3537 = vmatprep.subr.mxu0 0.0
    %3538 = vmatpush1.msra.mxu0 0.0
    %3539 = vmatprep.subr.mxu0 0.0
    %3540 = vmatpush1.msra.mxu0 0.0
    %3541 = vmatprep.subr.mxu0 0.0
    %3542 = vmatpush1.msra.mxu0 0.0
    %3543 = vmatprep.subr.mxu0 0.0
    %3544 = vmatpush1.msra.mxu0 0.0
    %3545 = vmatprep.subr.mxu0 0.0
    %3546 = vmatpush1.msra.mxu0 0.0
    %3547 = vmatprep.subr.mxu0 0.0
    %3548 = vmatpush1.msra.mxu0 0.0
    %3549 = vmatprep.subr.mxu0 0.0
    %3550 = vmatpush1.msra.mxu0 0.0
    %3551 = vmatprep.subr.mxu0 0.0
    %3552 = vmatpush1.msra.mxu0 0.0
    %3553 = vmatprep.subr.mxu0 0.0
    %3554 = vmatpush1.msra.mxu0 0.0
    %3555 = vmatprep.subr.mxu0 0.0
    %3556 = vmatpush1.msra.mxu0 0.0
    %3557 = vmatprep.subr.mxu0 0.0
    %3558 = vmatpush1.msra.mxu0 0.0
    %3559 = vmatprep.subr.mxu0 0.0
    %3560 = vmatpush1.msra.mxu0 0.0
    %3561 = vmatprep.subr.mxu0 0.0
    %3562 = vmatpush1.msra.mxu0 0.0
    %3563 = vmatprep.mubr.f32.mxu0 0.0
    %3564 = vmatmul.mubr.f32.gmra.mrb[0].mxu0 %v3497
    %v3565 = vpop.f32.mrb[0].mxu0
    %v3566 = vadd.f32 0.0, %v3565
    %v3567 = vpop.f32.mrb[0].mxu0
    %3568 = vdwg.mxu0
    %3569 = vrot.lane.b32.xlu0 %v108, 8
    %v3570 = vpop.permute.xlu0 %3569
    %v3572 = vsel %vm650, %v3478, 0
    %v3574 = vsel %vm343, %v3570, 0
    %3576 = vmatprep.subr.mxu0 0.0
    %3577 = vmatpush1.msra.mxu0 %v3574
    %3578 = vmatprep.subr.mxu0 0.0
    %3579 = vmatpush1.msra.mxu0 0.0
    %3580 = vmatprep.subr.mxu0 0.0
    %3581 = vmatpush1.msra.mxu0 0.0
    %3582 = vmatprep.subr.mxu0 0.0
    %3583 = vmatpush1.msra.mxu0 0.0
    %3584 = vmatprep.subr.mxu0 0.0
    %3585 = vmatpush1.msra.mxu0 0.0
    %3586 = vmatprep.subr.mxu0 0.0
    %3587 = vmatpush1.msra.mxu0 0.0
    %3588 = vmatprep.subr.mxu0 0.0
    %3589 = vmatpush1.msra.mxu0 0.0
    %3590 = vmatprep.subr.mxu0 0.0
    %3591 = vmatpush1.msra.mxu0 0.0
    %3592 = vmatprep.subr.mxu0 0.0
    %3593 = vmatpush1.msra.mxu0 0.0
    %3594 = vmatprep.subr.mxu0 0.0
    %3595 = vmatpush1.msra.mxu0 0.0
    %3596 = vmatprep.subr.mxu0 0.0
    %3597 = vmatpush1.msra.mxu0 0.0
    %3598 = vmatprep.subr.mxu0 0.0
    %3599 = vmatpush1.msra.mxu0 0.0
    %3600 = vmatprep.subr.mxu0 0.0
    %3601 = vmatpush1.msra.mxu0 0.0
    %3602 = vmatprep.subr.mxu0 0.0
    %3603 = vmatpush1.msra.mxu0 0.0
    %3604 = vmatprep.subr.mxu0 0.0
    %3605 = vmatpush1.msra.mxu0 0.0
    %3606 = vmatprep.subr.mxu0 0.0
    %3607 = vmatpush1.msra.mxu0 0.0
    %3608 = vmatprep.subr.mxu0 0.0
    %3609 = vmatpush1.msra.mxu0 0.0
    %3610 = vmatprep.subr.mxu0 0.0
    %3611 = vmatpush1.msra.mxu0 0.0
    %3612 = vmatprep.subr.mxu0 0.0
    %3613 = vmatpush1.msra.mxu0 0.0
    %3614 = vmatprep.subr.mxu0 0.0
    %3615 = vmatpush1.msra.mxu0 0.0
    %3616 = vmatprep.subr.mxu0 0.0
    %3617 = vmatpush1.msra.mxu0 0.0
    %3618 = vmatprep.subr.mxu0 0.0
    %3619 = vmatpush1.msra.mxu0 0.0
    %3620 = vmatprep.subr.mxu0 0.0
    %3621 = vmatpush1.msra.mxu0 0.0
    %3622 = vmatprep.subr.mxu0 0.0
    %3623 = vmatpush1.msra.mxu0 0.0
    %3624 = vmatprep.subr.mxu0 0.0
    %3625 = vmatpush1.msra.mxu0 0.0
    %3626 = vmatprep.subr.mxu0 0.0
    %3627 = vmatpush1.msra.mxu0 0.0
    %3628 = vmatprep.subr.mxu0 0.0
    %3629 = vmatpush1.msra.mxu0 0.0
    %3630 = vmatprep.subr.mxu0 0.0
    %3631 = vmatpush1.msra.mxu0 0.0
    %3632 = vmatprep.subr.mxu0 0.0
    %3633 = vmatpush1.msra.mxu0 0.0
    %3634 = vmatprep.subr.mxu0 0.0
    %3635 = vmatpush1.msra.mxu0 0.0
    %3636 = vmatprep.subr.mxu0 0.0
    %3637 = vmatpush1.msra.mxu0 0.0
    %3638 = vmatprep.subr.mxu0 0.0
    %3639 = vmatpush1.msra.mxu0 0.0
    %3640 = vmatprep.mubr.f32.mxu0 0.0
    %3641 = vmatmul.mubr.f32.gmra.mrb[0].mxu0 %v3572
    %v3642 = vpop.f32.mrb[0].mxu0
    %v3643 = vadd.f32 %v3566, %v3642
    %v3644 = vpop.f32.mrb[0].mxu0
    %3645 = vdwg.mxu0
    %v3646 = vmul.f32 %v3643, %v3489
    %3648 = vrot.lane.b32.xlu0 %v3646, 24
    %v3649 = vpop.permute.xlu0 %3648
    %3651 = vst.msk [vmem:[#allocation2] sm:$0xff] %vm1849, %v3649
    %v3652 = vld [vmem:[#allocation2] sm:$0xff]
    %v3653 = vpack.c.bf16 %v3652, %v3652
    %v3654 = vld [vmem:[%s1955 + $0x10] sm:$0xf]
    %v3655 = vld [vmem:[%s1955 + $0x14] sm:$0xf]
    %v3656 = vld [vmem:[%s1955 + $0x18] sm:$0xf]
    %v3657 = vld [vmem:[%s1955 + $0x1c] sm:$0xf]
    %v3658 = vlaneseq
    %v3659 = vshrl.u32 %v3658, 7
    %v3660 = vsub.s32 0, %v3659
    %v3661 = vrot.slane %v1930, %v3660
    %v3666 = vunpack.c.l.b16 %v3654
    %v3667 = vunpack.c.l.b16 %v3655
    %v3668 = vunpack.c.l.b16 %v3656
    %v3669 = vunpack.c.l.b16 %v3657
    %v3670 = vpack.c.b16 %v3667, %v3666
    %v3671 = vpack.c.b16 %v3669, %v3668
    %v3675 = vsel %vm62, %v3653, 0
    %3677 = vmatprep.subr.bf16.mxu0 0
    %3678 = vmatpush1.bf16.msra.mxu0 %v3670
    %3679 = vmatprep.subr.bf16.mxu0 0
    %3680 = vmatpush1.bf16.msra.mxu0 %v3671
    %3681 = vmatprep.subr.bf16.mxu0 0
    %3682 = vmatpush1.bf16.msra.mxu0 0
    %3683 = vmatprep.subr.bf16.mxu0 0
    %3684 = vmatpush1.bf16.msra.mxu0 0
    %3685 = vmatprep.subr.bf16.mxu0 0
    %3686 = vmatpush1.bf16.msra.mxu0 0
    %3687 = vmatprep.subr.bf16.mxu0 0
    %3688 = vmatpush1.bf16.msra.mxu0 0
    %3689 = vmatprep.subr.bf16.mxu0 0
    %3690 = vmatpush1.bf16.msra.mxu0 0
    %3691 = vmatprep.subr.bf16.mxu0 0
    %3692 = vmatpush1.bf16.msra.mxu0 0
    %3693 = vmatprep.subr.bf16.mxu0 0
    %3694 = vmatpush1.bf16.msra.mxu0 0
    %3695 = vmatprep.subr.bf16.mxu0 0
    %3696 = vmatpush1.bf16.msra.mxu0 0
    %3697 = vmatprep.subr.bf16.mxu0 0
    %3698 = vmatpush1.bf16.msra.mxu0 0
    %3699 = vmatprep.subr.bf16.mxu0 0
    %3700 = vmatpush1.bf16.msra.mxu0 0
    %3701 = vmatprep.subr.bf16.mxu0 0
    %3702 = vmatpush1.bf16.msra.mxu0 0
    %3703 = vmatprep.subr.bf16.mxu0 0
    %3704 = vmatpush1.bf16.msra.mxu0 0
    %3705 = vmatprep.subr.bf16.mxu0 0
    %3706 = vmatpush1.bf16.msra.mxu0 0
    %3707 = vmatprep.subr.bf16.mxu0 0
    %3708 = vmatpush1.bf16.msra.mxu0 0
    %3709 = vmatprep.mubr.bf16.mxu0 0
    %3710 = vmatmul.mubr.bf16.gmra.mrb[0].mxu0 %v3675
    %v3711 = vpop.f32.mrb[0].mxu0
    %v3712 = vadd.f32 %v3661, %v3711
    %v3713 = vpop.f32.mrb[0].mxu0
    %v3714 = vpop.f32.mrb[0].mxu0
    %v3715 = vpop.f32.mrb[0].mxu0
    %3716 = vdwg.mxu0
    %v3717 = vadd.f32 %v2210, %v3712
    %v3718 = vld [vmem:[%s8 + $0x1] sm:$0x1]
    %v3719 = vld [vmem:[%s8 + $0x2] sm:$0x1]
    %v3720 = vld [vmem:[%s8 + $0x3] sm:$0x1]
    %v3721 = vld [vmem:[%s8 + $0x4] sm:$0x1]
    %v3722 = vld [vmem:[%s8 + $0x5] sm:$0x1]
    %v3723 = vld [vmem:[%s8 + $0x6] sm:$0x1]
    %v3724 = vld [vmem:[%s8 + $0x7] sm:$0x1]
    %v3725 = vld [vmem:[%s8 + $0x8] sm:$0x1]
    %v3726 = vld [vmem:[%s8 + $0x9] sm:$0x1]
    %v3727 = vsel %vm62, %v3717, 0.0
    %3728 = vadd.xlane.f32.xlu0 %v3727
    %v3729 = vpop.xlane.xlu0 %3728
    %v3730 = vmul.f32 %v3729, %v125
    %v3731 = vsub.f32 %v3717, %v3730
    %v3732 = vmul.f32 %v3731, %v3731
    %v3733 = vsel %vm62, %v3732, 0.0
    %3734 = vadd.xlane.f32.xlu0 %v3733
    %v3735 = vpop.xlane.xlu0 %3734
    %v3736 = vmul.f32 %v3735, %v125
    %v3737 = vadd.f32 %v3736, 1e-05
    %v3738 = vrsqrt.pop %v3737
    %v3739 = vmul.f32 %v3731, %v3738
    %v3740 = vlaneseq
    %v3741 = vshrl.u32 %v3740, 7
    %v3742 = vsub.s32 0, %v3741
    %v3743 = vrot.slane %v3718, %v3742
    %v3744 = vmul.f32 %v3739, %v3743
    %v3745 = vlaneseq
    %v3746 = vshrl.u32 %v3745, 7
    %v3747 = vsub.s32 0, %v3746
    %v3748 = vrot.slane %v3719, %v3747
    %v3749 = vadd.f32 %v3744, %v3748
    %v3750 = vpack.c.bf16 %v3749, %v3749
    %v3751 = vld [vmem:[%s7] sm:$0xf]
    %v3752 = vld [vmem:[%s7 + $0x4] sm:$0xf]
    %v3753 = vld [vmem:[%s7 + $0x8] sm:$0xf]
    %v3754 = vld [vmem:[%s7 + $0xc] sm:$0xf]
    %v3755 = vlaneseq
    %v3756 = vshrl.u32 %v3755, 7
    %v3757 = vsub.s32 0, %v3756
    %v3758 = vrot.slane %v3720, %v3757
    %v3763 = vunpack.c.l.b16 %v3751
    %v3764 = vunpack.c.l.b16 %v3752
    %v3765 = vunpack.c.l.b16 %v3753
    %v3766 = vunpack.c.l.b16 %v3754
    %v3767 = vpack.c.b16 %v3764, %v3763
    %v3768 = vpack.c.b16 %v3766, %v3765
    %v3772 = vsel %vm62, %v3750, 0
    %3774 = vmatprep.subr.bf16.mxu0 0
    %3775 = vmatpush1.bf16.msra.mxu0 %v3767
    %3776 = vmatprep.subr.bf16.mxu0 0
    %3777 = vmatpush1.bf16.msra.mxu0 %v3768
    %3778 = vmatprep.subr.bf16.mxu0 0
    %3779 = vmatpush1.bf16.msra.mxu0 0
    %3780 = vmatprep.subr.bf16.mxu0 0
    %3781 = vmatpush1.bf16.msra.mxu0 0
    %3782 = vmatprep.subr.bf16.mxu0 0
    %3783 = vmatpush1.bf16.msra.mxu0 0
    %3784 = vmatprep.subr.bf16.mxu0 0
    %3785 = vmatpush1.bf16.msra.mxu0 0
    %3786 = vmatprep.subr.bf16.mxu0 0
    %3787 = vmatpush1.bf16.msra.mxu0 0
    %3788 = vmatprep.subr.bf16.mxu0 0
    %3789 = vmatpush1.bf16.msra.mxu0 0
    %3790 = vmatprep.subr.bf16.mxu0 0
    %3791 = vmatpush1.bf16.msra.mxu0 0
    %3792 = vmatprep.subr.bf16.mxu0 0
    %3793 = vmatpush1.bf16.msra.mxu0 0
    %3794 = vmatprep.subr.bf16.mxu0 0
    %3795 = vmatpush1.bf16.msra.mxu0 0
    %3796 = vmatprep.subr.bf16.mxu0 0
    %3797 = vmatpush1.bf16.msra.mxu0 0
    %3798 = vmatprep.subr.bf16.mxu0 0
    %3799 = vmatpush1.bf16.msra.mxu0 0
    %3800 = vmatprep.subr.bf16.mxu0 0
    %3801 = vmatpush1.bf16.msra.mxu0 0
    %3802 = vmatprep.subr.bf16.mxu0 0
    %3803 = vmatpush1.bf16.msra.mxu0 0
    %3804 = vmatprep.subr.bf16.mxu0 0
    %3805 = vmatpush1.bf16.msra.mxu0 0
    %3806 = vmatprep.mubr.bf16.mxu0 0
    %3807 = vmatmul.mubr.bf16.gmra.mrb[0].mxu0 %v3772
    %v3808 = vpop.f32.mrb[0].mxu0
    %v3809 = vadd.f32 %v3758, %v3808
    %v3810 = vpop.f32.mrb[0].mxu0
    %v3811 = vpop.f32.mrb[0].mxu0
    %v3812 = vpop.f32.mrb[0].mxu0
    %3813 = vdwg.mxu0
    %v3814 = vmax.f32 %v3809, 0.0
    %v3815 = vsel %vm211, %v3814, 0.0
    %3816 = vadd.xlane.f32.xlu0 %v3815
    %v3817 = vpop.xlane.xlu0 %3816
    %v3818 = vmul.f32 %v3817, %v215
    %v3819 = vsub.f32 %v3814, %v3818
    %v3820 = vmul.f32 %v3819, %v3819
    %v3821 = vsel %vm211, %v3820, 0.0
    %3822 = vadd.xlane.f32.xlu0 %v3821
    %v3823 = vpop.xlane.xlu0 %3822
    %v3824 = vmul.f32 %v3823, %v215
    %v3825 = vadd.f32 %v3824, 1e-05
    %v3826 = vrsqrt.pop %v3825
    %v3827 = vmul.f32 %v3819, %v3826
    %v3828 = vlaneseq
    %v3829 = vshrl.u32 %v3828, 7
    %v3830 = vsub.s32 0, %v3829
    %v3831 = vrot.slane %v3721, %v3830
    %v3832 = vmul.f32 %v3827, %v3831
    %v3833 = vlaneseq
    %v3834 = vshrl.u32 %v3833, 7
    %v3835 = vsub.s32 0, %v3834
    %v3836 = vrot.slane %v3722, %v3835
    %v3837 = vadd.f32 %v3832, %v3836
    %v3838 = vpack.c.bf16 %v3837, %v3837
    %v3839 = vld [vmem:[%s7 + $0x10] sm:$0xf]
    %v3840 = vld [vmem:[%s7 + $0x14] sm:$0xf]
    %v3841 = vld [vmem:[%s7 + $0x18] sm:$0xf]
    %v3842 = vld [vmem:[%s7 + $0x1c] sm:$0xf]
    %v3843 = vld [vmem:[%s7 + $0x20] sm:$0xf]
    %v3844 = vld [vmem:[%s7 + $0x24] sm:$0xf]
    %v3845 = vld [vmem:[%s7 + $0x28] sm:$0xf]
    %v3846 = vld [vmem:[%s7 + $0x2c] sm:$0xf]
    %v3847 = vlaneseq
    %v3848 = vshrl.u32 %v3847, 7
    %v3849 = vsub.s32 0, %v3848
    %v3850 = vrot.slane %v3723, %v3849
    %v3859 = vunpack.c.l.b16 %v3839
    %v3860 = vunpack.c.l.b16 %v3840
    %v3861 = vunpack.c.l.b16 %v3841
    %v3862 = vunpack.c.l.b16 %v3842
    %v3863 = vunpack.c.l.b16 %v3843
    %v3864 = vunpack.c.l.b16 %v3844
    %v3865 = vunpack.c.l.b16 %v3845
    %v3866 = vunpack.c.l.b16 %v3846
    %v3867 = vpack.c.b16 %v3860, %v3859
    %v3868 = vpack.c.b16 %v3862, %v3861
    %v3869 = vpack.c.b16 %v3864, %v3863
    %v3870 = vpack.c.b16 %v3866, %v3865
    %v3876 = vsel %vm211, %v3838, 0
    %3878 = vmatprep.subr.bf16.mxu0 0
    %3879 = vmatpush1.bf16.msra.mxu0 %v3867
    %3880 = vmatprep.subr.bf16.mxu0 0
    %3881 = vmatpush1.bf16.msra.mxu0 %v3868
    %3882 = vmatprep.subr.bf16.mxu0 0
    %3883 = vmatpush1.bf16.msra.mxu0 %v3869
    %3884 = vmatprep.subr.bf16.mxu0 0
    %3885 = vmatpush1.bf16.msra.mxu0 %v3870
    %3886 = vmatprep.subr.bf16.mxu0 0
    %3887 = vmatpush1.bf16.msra.mxu0 0
    %3888 = vmatprep.subr.bf16.mxu0 0
    %3889 = vmatpush1.bf16.msra.mxu0 0
    %3890 = vmatprep.subr.bf16.mxu0 0
    %3891 = vmatpush1.bf16.msra.mxu0 0
    %3892 = vmatprep.subr.bf16.mxu0 0
    %3893 = vmatpush1.bf16.msra.mxu0 0
    %3894 = vmatprep.subr.bf16.mxu0 0
    %3895 = vmatpush1.bf16.msra.mxu0 0
    %3896 = vmatprep.subr.bf16.mxu0 0
    %3897 = vmatpush1.bf16.msra.mxu0 0
    %3898 = vmatprep.subr.bf16.mxu0 0
    %3899 = vmatpush1.bf16.msra.mxu0 0
    %3900 = vmatprep.subr.bf16.mxu0 0
    %3901 = vmatpush1.bf16.msra.mxu0 0
    %3902 = vmatprep.subr.bf16.mxu0 0
    %3903 = vmatpush1.bf16.msra.mxu0 0
    %3904 = vmatprep.subr.bf16.mxu0 0
    %3905 = vmatpush1.bf16.msra.mxu0 0
    %3906 = vmatprep.subr.bf16.mxu0 0
    %3907 = vmatpush1.bf16.msra.mxu0 0
    %3908 = vmatprep.subr.bf16.mxu0 0
    %3909 = vmatpush1.bf16.msra.mxu0 0
    %3910 = vmatprep.mubr.bf16.mxu0 0
    %3911 = vmatmul.mubr.bf16.gmra.mrb[0].mxu0 %v3876
    %v3912 = vpop.f32.mrb[0].mxu0
    %v3913 = vadd.f32 %v3850, %v3912
    %v3914 = vpop.f32.mrb[0].mxu0
    %v3915 = vpop.f32.mrb[0].mxu0
    %v3916 = vpop.f32.mrb[0].mxu0
    %3917 = vdwg.mxu0
    %v3918 = vsel %vm62, %v3913, 0.0
    %3919 = vadd.xlane.f32.xlu0 %v3918
    %v3920 = vpop.xlane.xlu0 %3919
    %v3921 = vmul.f32 %v3920, %v125
    %v3922 = vsub.f32 %v3913, %v3921
    %v3923 = vmul.f32 %v3922, %v3922
    %v3924 = vsel %vm62, %v3923, 0.0
    %3925 = vadd.xlane.f32.xlu0 %v3924
    %v3926 = vpop.xlane.xlu0 %3925
    %v3927 = vmul.f32 %v3926, %v125
    %v3928 = vadd.f32 %v3927, 1e-05
    %v3929 = vrsqrt.pop %v3928
    %v3930 = vmul.f32 %v3922, %v3929
    %v3931 = vlaneseq
    %v3932 = vshrl.u32 %v3931, 7
    %v3933 = vsub.s32 0, %v3932
    %v3934 = vrot.slane %v3724, %v3933
    %v3935 = vmul.f32 %v3930, %v3934
    %v3936 = vlaneseq
    %v3937 = vshrl.u32 %v3936, 7
    %v3938 = vsub.s32 0, %v3937
    %v3939 = vrot.slane %v3725, %v3938
    %v3940 = vadd.f32 %v3935, %v3939
    %v3941 = vpack.c.bf16 %v3940, %v3940
    %v3942 = vld [vmem:[%s7 + $0x30] sm:$0xf]
    %v3943 = vld [vmem:[%s7 + $0x34] sm:$0xf]
    %v3944 = vld [vmem:[%s7 + $0x38] sm:$0xf]
    %v3945 = vld [vmem:[%s7 + $0x3c] sm:$0xf]
    %v3946 = vlaneseq
    %v3947 = vshrl.u32 %v3946, 7
    %v3948 = vsub.s32 0, %v3947
    %v3949 = vrot.slane %v3726, %v3948
    %v3954 = vunpack.c.l.b16 %v3942
    %v3955 = vunpack.c.l.b16 %v3943
    %v3956 = vunpack.c.l.b16 %v3944
    %v3957 = vunpack.c.l.b16 %v3945
    %v3958 = vpack.c.b16 %v3955, %v3954
    %v3959 = vpack.c.b16 %v3957, %v3956
    %v3963 = vsel %vm62, %v3941, 0
    %3965 = vmatprep.subr.bf16.mxu0 0
    %3966 = vmatpush1.bf16.msra.mxu0 %v3958
    %3967 = vmatprep.subr.bf16.mxu0 0
    %3968 = vmatpush1.bf16.msra.mxu0 %v3959
    %3969 = vmatprep.subr.bf16.mxu0 0
    %3970 = vmatpush1.bf16.msra.mxu0 0
    %3971 = vmatprep.subr.bf16.mxu0 0
    %3972 = vmatpush1.bf16.msra.mxu0 0
    %3973 = vmatprep.subr.bf16.mxu0 0
    %3974 = vmatpush1.bf16.msra.mxu0 0
    %3975 = vmatprep.subr.bf16.mxu0 0
    %3976 = vmatpush1.bf16.msra.mxu0 0
    %3977 = vmatprep.subr.bf16.mxu0 0
    %3978 = vmatpush1.bf16.msra.mxu0 0
    %3979 = vmatprep.subr.bf16.mxu0 0
    %3980 = vmatpush1.bf16.msra.mxu0 0
    %3981 = vmatprep.subr.bf16.mxu0 0
    %3982 = vmatpush1.bf16.msra.mxu0 0
    %3983 = vmatprep.subr.bf16.mxu0 0
    %3984 = vmatpush1.bf16.msra.mxu0 0
    %3985 = vmatprep.subr.bf16.mxu0 0
    %3986 = vmatpush1.bf16.msra.mxu0 0
    %3987 = vmatprep.subr.bf16.mxu0 0
    %3988 = vmatpush1.bf16.msra.mxu0 0
    %3989 = vmatprep.subr.bf16.mxu0 0
    %3990 = vmatpush1.bf16.msra.mxu0 0
    %3991 = vmatprep.subr.bf16.mxu0 0
    %3992 = vmatpush1.bf16.msra.mxu0 0
    %3993 = vmatprep.subr.bf16.mxu0 0
    %3994 = vmatpush1.bf16.msra.mxu0 0
    %3995 = vmatprep.subr.bf16.mxu0 0
    %3996 = vmatpush1.bf16.msra.mxu0 0
    %3997 = vmatprep.mubr.bf16.mxu0 0
    %3998 = vmatmul.mubr.bf16.gmra.mrb[0].mxu0 %v3963
    %v3999 = vpop.f32.mrb[0].mxu0
    %v4000 = vadd.f32 %v3949, %v3999
    %v4001 = vpop.f32.mrb[0].mxu0
    %v4002 = vpop.f32.mrb[0].mxu0
    %v4003 = vpop.f32.mrb[0].mxu0
    %4004 = vdwg.mxu0
    %4005 = vmax.xlane.f32.xlu0 %v4000
    %v4006 = vpop.xlane.xlu0 %4005
    %v4007 = vlaneseq
    %v4008 = vand.u32 %v4007, 127
    %vm4009 = vcmp.eq.f32.partialorder %v4000, %v4006
    %v4010 = vsel %vm4009, %v4008, 128
    %v4011 = vand.u32 %v4010, 65535
    %v4012 = vshra.s32 %v4010, 16
    %v4013 = vcvt.s32.f32 %v4011
    %v4014 = vcvt.s32.f32 %v4012
    %4015 = vmin.xlane.f32.xlu0 %v4014
    %v4016 = vpop.xlane.xlu0 %4015
    %vm4017 = vcmp.eq.f32.partialorder %v4014, %v4016
    %v4018 = vsel %vm4017, %v4013, inf
    %4019 = vmin.xlane.f32.xlu0 %v4018
    %v4020 = vpop.xlane.xlu0 %4019
    %v4021 = vcvt.f32.s32 %v4020
    %v4022 = vcvt.f32.s32 %v4016
    %v4023 = vshll.u32 %v4022, 16
    %v4024 = vadd.s32 %v4023, %v4021
    %4025 = vst [vmem:[%s11] sm:$0xff] %v4024
    // Predicated region
    $region38: #{paraformer_decoder_forward.1} parent=1 // pred_check
      _
    $region39: #{paraformer_decoder_forward.1} parent=1 // pred_check_branch
      %4027 = sbr.rel (0) target = $region41
    $region40: #{paraformer_decoder_forward.1} parent=1 // pred_region
      _
    $region41: #{paraformer_decoder_forward.1} parent=1 // pred_fallthru
      _
    // Predicated region
    $region42: #{paraformer_decoder_forward.1} parent=1 // pred_check
      _
    $region43: #{paraformer_decoder_forward.1} parent=1 // pred_check_branch
      %4029 = sbr.rel (0) target = $region45
    $region44: #{paraformer_decoder_forward.1} parent=1 // pred_region
      %s4031 = ssub.s32 128, 128
      %4032 = vsyncadd [#allocation4], %s4031
      %s4034 = sshll.u32 [#allocation3], 4
      %s4035 = int_to_ptr.vmem [resolvable:$true] %s4034
      %4037 = dma.vmem_to_hbm [thread:$0]  %s4035, 128, %s10, [#allocation4]
    $region45: #{paraformer_decoder_forward.1} parent=1 // pred_fallthru
      _
    // Predicated region
    $region46: #{paraformer_decoder_forward.1} parent=1 // pred_check
      _
    $region47: #{paraformer_decoder_forward.1} parent=1 // pred_check_branch
      %4039 = sbr.rel (0) target = $region49
    $region48: #{paraformer_decoder_forward.1} parent=1 // pred_region
      _
    $region49: #{paraformer_decoder_forward.1} parent=1 // pred_fallthru
      _
    // Predicated region
    $region50: #{paraformer_decoder_forward.1} parent=1 // pred_check
      _
    $region51: #{paraformer_decoder_forward.1} parent=1 // pred_check_branch
      %4041 = sbr.rel (0) target = $region53
    $region52: #{paraformer_decoder_forward.1} parent=1 // pred_region
      _
    $region53: #{paraformer_decoder_forward.1} parent=1 // pred_fallthru
      _
    // Predicated region
    $region54: #{paraformer_decoder_forward.1} parent=1 // pred_check
      _
    $region55: #{paraformer_decoder_forward.1} parent=1 // pred_check_branch
      %4043 = sbr.rel (0) target = $region57
    $region56: #{paraformer_decoder_forward.1} parent=1 // pred_region
      %4044 = dma.done [#allocation4], 128
    $region57: #{paraformer_decoder_forward.1} parent=1 // pred_fallthru
      _
    // Predicated region
    $region58: #{paraformer_decoder_forward.1} parent=1 // pred_check
      _
    $region59: #{paraformer_decoder_forward.1} parent=1 // pred_check_branch
      %4046 = sbr.rel (0) target = $region61
    $region60: #{paraformer_decoder_forward.1} parent=1 // pred_region
      _
    $region61: #{paraformer_decoder_forward.1} parent=1 // pred_fallthru
      _
    %4047 = vsyncpa [#allocation4], 1

</llo_original>
